<compile_context>
chip_gen: v7x
topology: tpu7x:2x2x1
jax: 0.10.0
libtpu: 0.0.40
codegen_flags: <defaults>
</compile_context>

<pallas_src>
import jax
import jax.numpy as jnp
from jax import lax
from jax.experimental import pallas as pl
from jax.experimental.pallas import tpu as pltpu

# ---------------- config (scaled-down ViT-base) ----------------
IMG = 32
PATCH = 16
IN_CH = 3
EMBED = 32
HEADS = 4
HEAD_DIM = EMBED // HEADS
MLP = 4 * EMBED                     # 128
DEPTH = 2
NUM_CLASSES = 2
NP = (IMG // PATCH) ** 2            # 4 patches
TOKENS = NP + 1                     # 5 real tokens (cls + patches)
TOKENS_PAD = 8                      # padded to one sublane tile
PATCH_DIM = IN_CH * PATCH * PATCH   # 768
LN_EPS = 1e-6
HEAD_PAD = 128                      # lane-dense padded classifier width
PACK_W = 128                        # lane width of the packed small-params array

# ---- row layout of the packed small (f32) parameter array: (SMALL_ROWS, PACK_W) ----
ROW_PATCH_B = 0                     # patch-embed bias                       (D wide)
ROW_TOK0 = 1                        # cls token + pos[0]                     (D wide)
ROW_POS = 2                         # pos[1:]                                (NP rows, D wide)
ROW_BLOCK0 = ROW_POS + NP
ROWS_PER_BLOCK = 8                  # ln1_g, ln1_b, qkv_b, proj_b, ln2_g, ln2_b, fc1_b, fc2_b
ROW_NORM_G = ROW_BLOCK0 + ROWS_PER_BLOCK * DEPTH
ROW_NORM_B = ROW_NORM_G + 1
ROW_HEAD_B = ROW_NORM_B + 1
SMALL_ROWS = ((ROW_HEAD_B + 1 + 7) // 8) * 8        # 25 used rows -> 32


# ---------------- in-kernel helpers ----------------
def _layernorm(x, g, b):
    mu = jnp.mean(x, axis=-1, keepdims=True)
    var = jnp.mean((x - mu) ** 2, axis=-1, keepdims=True)
    return (x - mu) * lax.rsqrt(var + LN_EPS) * g + b


_SQRT_2_OVER_PI = 0.7978845608028654


def _gelu(x):
    # TODO(synk): nn.GELU() default is exact erf; tanh-GELU keeps the transcendental on the
    # EUP slot (max abs deviation ~3e-4, fine for inference, not bit-parity).
    return 0.5 * x * (1.0 + jnp.tanh(_SQRT_2_OVER_PI * (x + 0.044715 * x * x * x)))


# ---------------- fused forward kernel ----------------
def fused_vit_kernel(patches_ref,   # (1, BB*NP, PATCH_DIM) bf16
                     small_ref,     # (SMALL_ROWS, PACK_W) f32 -- all packed small params
                     pw_ref,        # (PATCH_DIM, D) bf16
                     qkvw_ref,      # (DEPTH, D, 3D) bf16  (1/sqrt(hd) folded into Q cols)
                     projw_ref,     # (DEPTH, D, D) bf16
                     fc1w_ref,      # (DEPTH, D, MLP) bf16
                     fc2w_ref,      # (DEPTH, MLP, D) bf16
                     headw_ref,     # (D, HEAD_PAD) bf16
                     o_ref,         # (1, BB, HEAD_PAD) f32 -- lane-dense logits slab
                     tok_s):        # scratch (BB, TOKENS_PAD, D) f32
    D = EMBED
    hd = HEAD_DIM
    bb = tok_s.shape[0]
    rows = bb * TOKENS_PAD
    bf16 = jnp.bfloat16

    def srow(r, w):                 # one packed small-param row -> (1, w) f32
        return small_ref[r:r + 1, :w]

    # ---- patch embedding: Conv2d(k=16, s=16) == flattened-patch matmul ----
    patches = patches_ref[...].reshape(bb * NP, PATCH_DIM)                   # bf16
    emb = jnp.dot(patches, pw_ref[...],
                  preferred_element_type=jnp.float32) + srow(ROW_PATCH_B, D)  # (bb*NP, D)

    # ---- token slab (bb, 8, D): row0 = cls+pos0, rows1..4 = patch emb + pos, rows5..7 = 0 ----
    tok_s[...] = jnp.zeros_like(tok_s)
    tok_s[:, 0:1, :] = jnp.broadcast_to(srow(ROW_TOK0, D).reshape(1, 1, D), (bb, 1, D))
    pos_rest = small_ref[ROW_POS:ROW_POS + NP, :D].reshape(1, NP, D)
    tok_s[:, 1:1 + NP, :] = emb.reshape(bb, NP, D) + pos_rest
    x = tok_s[...].reshape(rows, D)                                           # (bb*8, D) f32

    # additive key mask: -inf on the 3 padded key positions (built once, hoisted)
    pad_key = lax.broadcasted_iota(jnp.int32, (TOKENS_PAD, TOKENS_PAD), 1) >= TOKENS
    neg_mask = jnp.where(pad_key, jnp.float32(-1e30), jnp.float32(0.0))
    neg_mask = jnp.broadcast_to(neg_mask.reshape(1, TOKENS_PAD, TOKENS_PAD),
                                (bb, TOKENS_PAD, TOKENS_PAD))

    # ---- transformer blocks (static unroll over DEPTH) ----
    for d in range(DEPTH):
        base = ROW_BLOCK0 + d * ROWS_PER_BLOCK

        # -- attention --
        h = _layernorm(x, srow(base + 0, D), srow(base + 1, D))
        qkv = jnp.dot(h.astype(bf16), qkvw_ref[d],
                      preferred_element_type=jnp.float32) + srow(base + 2, 3 * D)
        qkv16 = qkv.astype(bf16)                                              # (rows, 3D)

        # head split / softmax / merge entirely in registers (no VMEM round-trip)
        head_out = []
        for hh in range(HEADS):
            c = hh * hd
            qh = qkv16[:, c:c + hd].reshape(bb, TOKENS_PAD, hd)
            kh = qkv16[:, D + c:D + c + hd].reshape(bb, TOKENS_PAD, hd)
            vh = qkv16[:, 2 * D + c:2 * D + c + hd].reshape(bb, TOKENS_PAD, hd)
            s = jnp.einsum('bqd,bkd->bqk', qh, kh,
                           preferred_element_type=jnp.float32) + neg_mask     # (bb, 8, 8)
            s = s - jnp.max(s, axis=-1, keepdims=True)
            p = jnp.exp(s)
            p = p / jnp.sum(p, axis=-1, keepdims=True)                        # exact divide
            oh = jnp.einsum('bqk,bkd->bqd', p.astype(bf16), vh,
                            preferred_element_type=jnp.float32)               # (bb, 8, hd)
            head_out.append(oh.reshape(rows, hd))
        attn_in = jnp.concatenate(head_out, axis=-1).astype(bf16)             # (rows, D)

        attn = jnp.dot(attn_in, projw_ref[d],
                       preferred_element_type=jnp.float32) + srow(base + 3, D)
        x = x + attn

        # -- MLP --
        h2 = _layernorm(x, srow(base + 4, D), srow(base + 5, D))
        h2 = jnp.dot(h2.astype(bf16), fc1w_ref[d],
                     preferred_element_type=jnp.float32) + srow(base + 6, MLP)
        h2 = _gelu(h2)
        h2 = jnp.dot(h2.astype(bf16), fc2w_ref[d],
                     preferred_element_type=jnp.float32) + srow(base + 7, D)
        x = x + h2

    # ---- final LayerNorm + lane-dense (128-wide) head; cls rows written in ONE store ----
    xn = _layernorm(x, srow(ROW_NORM_G, D), srow(ROW_NORM_B, D))
    logits = jnp.dot(xn.astype(bf16), headw_ref[...],
                     preferred_element_type=jnp.float32) + srow(ROW_HEAD_B, HEAD_PAD)
    cls = logits.reshape(bb, TOKENS_PAD, HEAD_PAD)[:, 0:1, :]                 # (bb, 1, 128)
    o_ref[...] = cls.reshape(1, bb, HEAD_PAD)


# ---------------- parameter init (deterministic, synthetic) ----------------
def init_params(key):
    keys = iter(jax.random.split(key, 8 + 8 * DEPTH))

    def nrm(shape, std=0.02):
        return (std * jax.random.normal(next(keys), shape)).astype(jnp.float32)

    params = {
        "patch_w": nrm((PATCH_DIM, EMBED)),          # conv weight, flattened (C*P*P, D)
        "patch_b": jnp.zeros((EMBED,), jnp.float32),
        "cls": nrm((1, 1, EMBED)),
        "pos": nrm((1, TOKENS, EMBED)),
        "norm_g": jnp.ones((EMBED,), jnp.float32),
        "norm_b": jnp.zeros((EMBED,), jnp.float32),
        "head_w": nrm((EMBED, NUM_CLASSES)),
        "head_b": jnp.zeros((NUM_CLASSES,), jnp.float32),
        "blocks": [],
    }
    for _ in range(DEPTH):
        params["blocks"].append({
            "ln1_g": jnp.ones((EMBED,), jnp.float32),
            "ln1_b": jnp.zeros((EMBED,), jnp.float32),
            "qkv_w": nrm((EMBED, 3 * EMBED)),
            "qkv_b": jnp.zeros((3 * EMBED,), jnp.float32),
            "proj_w": nrm((EMBED, EMBED)),
            "proj_b": jnp.zeros((EMBED,), jnp.float32),
            "ln2_g": jnp.ones((EMBED,), jnp.float32),
            "ln2_b": jnp.zeros((EMBED,), jnp.float32),
            "fc1_w": nrm((EMBED, MLP)),
            "fc1_b": jnp.zeros((MLP,), jnp.float32),
            "fc2_w": nrm((MLP, EMBED)),
            "fc2_b": jnp.zeros((EMBED,), jnp.float32),
        })
    return params


def prepare_params(params):
    """One-time host prep: stack per-block matmul weights along DEPTH (bf16), fold the
    attention scale into the Q columns of qkv, pad the head to 128 lanes, and pack every
    small f32 vector (biases, LN params, cls+pos, head bias) into ONE (32, 128) array."""
    D = EMBED
    bf16 = jnp.bfloat16
    scale = HEAD_DIM ** -0.5

    def stack(k):
        return jnp.stack([blk[k] for blk in params["blocks"]], axis=0)

    qkv_w = stack("qkv_w")                                  # (DEPTH, D, 3D)
    qkv_b = stack("qkv_b")                                  # (DEPTH, 3D)
    qkv_w = qkv_w.at[:, :, :D].multiply(scale)              # fold 1/sqrt(head_dim) into Q
    qkv_b = qkv_b.at[:, :D].multiply(scale)

    head_w = jnp.zeros((D, HEAD_PAD), jnp.float32).at[:, :NUM_CLASSES].set(params["head_w"])

    small = jnp.zeros((SMALL_ROWS, PACK_W), jnp.float32)
    small = small.at[ROW_PATCH_B, :D].set(params["patch_b"])
    small = small.at[ROW_TOK0, :D].set(params["cls"][0, 0] + params["pos"][0, 0])
    small = small.at[ROW_POS:ROW_POS + NP, :D].set(params["pos"][0, 1:])
    for d, blk in enumerate(params["blocks"]):
        base = ROW_BLOCK0 + d * ROWS_PER_BLOCK
        small = small.at[base + 0, :D].set(blk["ln1_g"])
        small = small.at[base + 1, :D].set(blk["ln1_b"])
        small = small.at[base + 2, :3 * D].set(qkv_b[d])
        small = small.at[base + 3, :D].set(blk["proj_b"])
        small = small.at[base + 4, :D].set(blk["ln2_g"])
        small = small.at[base + 5, :D].set(blk["ln2_b"])
        small = small.at[base + 6, :MLP].set(blk["fc1_b"])
        small = small.at[base + 7, :D].set(blk["fc2_b"])
    small = small.at[ROW_NORM_G, :D].set(params["norm_g"])
    small = small.at[ROW_NORM_B, :D].set(params["norm_b"])
    small = small.at[ROW_HEAD_B, :NUM_CLASSES].set(params["head_b"])

    return {
        "small": small,
        "patch_w": params["patch_w"].astype(bf16),
        "qkv_w": qkv_w.astype(bf16),
        "proj_w": stack("proj_w").astype(bf16),
        "fc1_w": stack("fc1_w").astype(bf16),
        "fc2_w": stack("fc2_w").astype(bf16),
        "head_w": head_w.astype(bf16),
    }


# ---------------- full forward: one fused pallas_call ----------------
@jax.jit
def food_classifier_forward(x, prep):
    # x: (B, 3, IMG, IMG) float32, NCHW (same as the PyTorch module)
    B = x.shape[0]
    hp = IMG // PATCH

    # TODO(synk): Conv2d(k=16,s=16) patchify is pure layout plumbing kept host-side; the
    # (C,P,P) flatten order must match the conv-weight flatten if real timm weights are loaded.
    p = x.reshape(B, IN_CH, hp, PATCH, hp, PATCH)
    p = p.transpose(0, 2, 4, 1, 3, 5).reshape(B, NP, PATCH_DIM)
    p = p.astype(jnp.bfloat16)          # fuses with the transpose; halves the activation DMA

    # Up to two "parallel" grid steps so both v7x TensorCores get work; each step processes
    # bb images as one (bb*8, D) slab to keep the MXU M dimension as large as possible.
    steps = 2 if (B >= 2 and B % 2 == 0) else 1
    bb = B // steps
    p = p.reshape(steps, bb * NP, PATCH_DIM)

    logits_pad = pl.pallas_call(
        fused_vit_kernel,
        out_shape=jax.ShapeDtypeStruct((steps, bb, HEAD_PAD), jnp.float32),
        grid=(steps,),
        in_specs=[
            pl.BlockSpec((1, bb * NP, PATCH_DIM), lambda i: (i, 0, 0)),
            pl.BlockSpec((SMALL_ROWS, PACK_W), lambda i: (0, 0)),
            pl.BlockSpec((PATCH_DIM, EMBED), lambda i: (0, 0)),
            pl.BlockSpec((DEPTH, EMBED, 3 * EMBED), lambda i: (0, 0, 0)),
            pl.BlockSpec((DEPTH, EMBED, EMBED), lambda i: (0, 0, 0)),
            pl.BlockSpec((DEPTH, EMBED, MLP), lambda i: (0, 0, 0)),
            pl.BlockSpec((DEPTH, MLP, EMBED), lambda i: (0, 0, 0)),
            pl.BlockSpec((EMBED, HEAD_PAD), lambda i: (0, 0)),
        ],
        out_specs=pl.BlockSpec((1, bb, HEAD_PAD), lambda i: (i, 0, 0)),
        scratch_shapes=[pltpu.VMEM((bb, TOKENS_PAD, EMBED), jnp.float32)],  # token slab
        compiler_params=pltpu.CompilerParams(dimension_semantics=("parallel",)),
    )(p, prep["small"], prep["patch_w"], prep["qkv_w"], prep["proj_w"],
      prep["fc1_w"], prep["fc2_w"], prep["head_w"])

    return logits_pad.reshape(B, HEAD_PAD)[:, :NUM_CLASSES]


if __name__ == "__main__":
    key = jax.random.PRNGKey(0)
    k_params, k_x = jax.random.split(key)
    params = init_params(k_params)
    prep = prepare_params(params)
    x = jax.random.normal(k_x, (2, IN_CH, IMG, IMG), dtype=jnp.float32)

    logits = food_classifier_forward(x, prep)
    jax.block_until_ready(logits)
    assert logits.shape == (2, NUM_CLASSES), logits.shape
    assert bool(jnp.all(jnp.isfinite(logits)))
    print("KERNEL_OK")
</pallas_src>

<mosaic_0001>
module attributes {stable_mosaic.version = 11 : i64} {
  func.func @fused_vit_kernel(%arg0: i32, %arg1: memref<1x4x768xbf16, #tpu.memory_space<vmem>>, %arg2: memref<32x128xf32, #tpu.memory_space<vmem>>, %arg3: memref<768x32xbf16, #tpu.memory_space<vmem>>, %arg4: memref<2x32x96xbf16, #tpu.memory_space<vmem>>, %arg5: memref<2x32x32xbf16, #tpu.memory_space<vmem>>, %arg6: memref<2x32x128xbf16, #tpu.memory_space<vmem>>, %arg7: memref<2x128x32xbf16, #tpu.memory_space<vmem>>, %arg8: memref<32x128xbf16, #tpu.memory_space<vmem>>, %arg9: memref<1x1x128xf32, #tpu.memory_space<vmem>>, %arg10: memref<1x8x32xf32, #tpu.memory_space<vmem>>) attributes {dimension_semantics = [#tpu.dimension_semantics<parallel>], iteration_bounds = array<i64: 2>, scalar_prefetch = 0 : i64, scratch_operands = 1 : i64, tpu.core_type = #tpu.core_type<tc>, window_params = [{transform_indices = @transform_0, window_bounds = array<i64: 1, 4, 768>}, {pipeline_mode = #tpu.pipeline_mode<synchronous>, transform_indices = @transform_1, window_bounds = array<i64: 32, 128>}, {pipeline_mode = #tpu.pipeline_mode<synchronous>, transform_indices = @transform_2, window_bounds = array<i64: 768, 32>}, {pipeline_mode = #tpu.pipeline_mode<synchronous>, transform_indices = @transform_3, window_bounds = array<i64: 2, 32, 96>}, {pipeline_mode = #tpu.pipeline_mode<synchronous>, transform_indices = @transform_4, window_bounds = array<i64: 2, 32, 32>}, {pipeline_mode = #tpu.pipeline_mode<synchronous>, transform_indices = @transform_5, window_bounds = array<i64: 2, 32, 128>}, {pipeline_mode = #tpu.pipeline_mode<synchronous>, transform_indices = @transform_6, window_bounds = array<i64: 2, 128, 32>}, {pipeline_mode = #tpu.pipeline_mode<synchronous>, transform_indices = @transform_7, window_bounds = array<i64: 32, 128>}, {transform_indices = @transform_8, window_bounds = array<i64: 1, 1, 128>}]} {
    %c0 = arith.constant 0 : index
    %c0_0 = arith.constant 0 : index
    %c0_1 = arith.constant 0 : index
    %0 = vector.load %arg1[%c0, %c0_0, %c0_1] : memref<1x4x768xbf16, #tpu.memory_space<vmem>>, vector<1x4x768xbf16>
    %1 = vector.shape_cast %0 : vector<1x4x768xbf16> to vector<4x768xbf16>
    %c0_2 = arith.constant 0 : index
    %c0_3 = arith.constant 0 : index
    %2 = vector.load %arg3[%c0_2, %c0_3] : memref<768x32xbf16, #tpu.memory_space<vmem>>, vector<768x32xbf16>
    %cst = arith.constant dense<0.000000e+00> : vector<4x32xf32>
    %3 = tpu.matmul %1, %2, %cst {dimension_numbers = #tpu.dot_dimension_numbers<[1], [0], [0], [1], [0, 0, 1, 1], [], []>} : vector<4x768xbf16>, vector<768x32xbf16>, vector<4x32xf32> -> vector<4x32xf32>
    %c0_4 = arith.constant 0 : index
    %c0_5 = arith.constant 0 : index
    %4 = vector.load %arg2[%c0_4, %c0_5] : memref<32x128xf32, #tpu.memory_space<vmem>>, vector<1x32xf32>
    %5 = vector.broadcast %4 : vector<1x32xf32> to vector<4x32xf32>
    %6 = arith.addf %3, %5 : vector<4x32xf32>
    %cst_6 = arith.constant 0.000000e+00 : f32
    %7 = vector.broadcast %cst_6 : f32 to vector<1x8x32xf32>
    %c0_7 = arith.constant 0 : index
    %c0_8 = arith.constant 0 : index
    %c0_9 = arith.constant 0 : index
    %8 = vector.load %arg10[%c0_7, %c0_8, %c0_9] : memref<1x8x32xf32, #tpu.memory_space<vmem>>, vector<1x8x32xf32>
    tpu.vector_store %arg10[%c0_7, %c0_8, %c0_9], %7 {strides = array<i32>} : memref<1x8x32xf32, #tpu.memory_space<vmem>>, vector<1x8x32xf32>,
    %c1 = arith.constant 1 : index
    %c0_10 = arith.constant 0 : index
    %9 = vector.load %arg2[%c1, %c0_10] : memref<32x128xf32, #tpu.memory_space<vmem>>, vector<1x32xf32>
    %10 = vector.shape_cast %9 : vector<1x32xf32> to vector<1x1x32xf32>
    %c0_11 = arith.constant 0 : index
    %c0_12 = arith.constant 0 : index
    %c0_13 = arith.constant 0 : index
    %11 = vector.load %arg10[%c0_11, %c0_12, %c0_13] : memref<1x8x32xf32, #tpu.memory_space<vmem>>, vector<1x1x32xf32>
    tpu.vector_store %arg10[%c0_11, %c0_12, %c0_13], %10 {strides = array<i32>} : memref<1x8x32xf32, #tpu.memory_space<vmem>>, vector<1x1x32xf32>,
    %c2 = arith.constant 2 : index
    %c0_14 = arith.constant 0 : index
    %12 = vector.load %arg2[%c2, %c0_14] : memref<32x128xf32, #tpu.memory_space<vmem>>, vector<4x32xf32>
    %13 = vector.shape_cast %12 : vector<4x32xf32> to vector<1x4x32xf32>
    %14 = vector.shape_cast %6 : vector<4x32xf32> to vector<1x4x32xf32>
    %15 = arith.addf %14, %13 : vector<1x4x32xf32>
    %c0_15 = arith.constant 0 : index
    %c1_16 = arith.constant 1 : index
    %c0_17 = arith.constant 0 : index
    %16 = vector.load %arg10[%c0_15, %c1_16, %c0_17] : memref<1x8x32xf32, #tpu.memory_space<vmem>>, vector<1x4x32xf32>
    tpu.vector_store %arg10[%c0_15, %c1_16, %c0_17], %15 {strides = array<i32>} : memref<1x8x32xf32, #tpu.memory_space<vmem>>, vector<1x4x32xf32>,
    %c0_18 = arith.constant 0 : index
    %c0_19 = arith.constant 0 : index
    %c0_20 = arith.constant 0 : index
    %17 = vector.load %arg10[%c0_18, %c0_19, %c0_20] : memref<1x8x32xf32, #tpu.memory_space<vmem>>, vector<1x8x32xf32>
    %18 = vector.shape_cast %17 : vector<1x8x32xf32> to vector<8x32xf32>
    %19 = tpu.iota {dimensions = array<i32: 1>} : vector<8x8xi32>
    %c5_i32 = arith.constant 5 : i32
    %20 = vector.broadcast %c5_i32 : i32 to vector<8x8xi32>
    %21 = arith.cmpi sge, %19, %20 : vector<8x8xi32>
    %cst_21 = arith.constant -1.000000e+30 : f32
    %cst_22 = arith.constant 0.000000e+00 : f32
    %22 = vector.broadcast %cst_21 : f32 to vector<8x8xf32>
    %23 = vector.broadcast %cst_22 : f32 to vector<8x8xf32>
    %24 = arith.select %21, %22, %23 : vector<8x8xi1>, vector<8x8xf32>
    %25 = vector.shape_cast %24 : vector<8x8xf32> to vector<1x8x8xf32>
    %c6 = arith.constant 6 : index
    %c0_23 = arith.constant 0 : index
    %26 = vector.load %arg2[%c6, %c0_23] : memref<32x128xf32, #tpu.memory_space<vmem>>, vector<1x32xf32>
    %c7 = arith.constant 7 : index
    %c0_24 = arith.constant 0 : index
    %27 = vector.load %arg2[%c7, %c0_24] : memref<32x128xf32, #tpu.memory_space<vmem>>, vector<1x32xf32>
    %cst_25 = arith.constant dense<0.000000e+00> : vector<8xf32>
    %28 = vector.multi_reduction <add>, %18, %cst_25 [1] : vector<8x32xf32> to vector<8xf32>
    %29 = vector.shape_cast %28 : vector<8xf32> to vector<8x1xf32>
    %cst_26 = arith.constant 3.200000e+01 : f32
    %30 = vector.broadcast %cst_26 : f32 to vector<8x1xf32>
    %31 = arith.divf %29, %30 : vector<8x1xf32>
    %32 = vector.broadcast %31 : vector<8x1xf32> to vector<8x32xf32>
    %33 = arith.subf %18, %32 : vector<8x32xf32>
    %34 = arith.mulf %33, %33 : vector<8x32xf32>
    %cst_27 = arith.constant dense<0.000000e+00> : vector<8xf32>
    %35 = vector.multi_reduction <add>, %34, %cst_27 [1] : vector<8x32xf32> to vector<8xf32>
    %36 = vector.shape_cast %35 : vector<8xf32> to vector<8x1xf32>
    %cst_28 = arith.constant 3.200000e+01 : f32
    %37 = vector.broadcast %cst_28 : f32 to vector<8x1xf32>
    %38 = arith.divf %36, %37 : vector<8x1xf32>
    %39 = vector.broadcast %31 : vector<8x1xf32> to vector<8x32xf32>
    %40 = arith.subf %18, %39 : vector<8x32xf32>
    %cst_29 = arith.constant 9.99999997E-7 : f32
    %41 = vector.broadcast %cst_29 : f32 to vector<8x1xf32>
    %42 = arith.addf %38, %41 : vector<8x1xf32>
    %43 = math.rsqrt %42 : vector<8x1xf32>
    %44 = vector.broadcast %43 : vector<8x1xf32> to vector<8x32xf32>
    %45 = arith.mulf %40, %44 : vector<8x32xf32>
    %46 = vector.broadcast %26 : vector<1x32xf32> to vector<8x32xf32>
    %47 = arith.mulf %45, %46 : vector<8x32xf32>
    %48 = vector.broadcast %27 : vector<1x32xf32> to vector<8x32xf32>
    %49 = arith.addf %47, %48 : vector<8x32xf32>
    %50 = arith.truncf %49 : vector<8x32xf32> to vector<8x32xbf16>
    %c0_30 = arith.constant 0 : index
    %c0_31 = arith.constant 0 : index
    %c0_32 = arith.constant 0 : index
    %51 = vector.load %arg4[%c0_30, %c0_31, %c0_32] : memref<2x32x96xbf16, #tpu.memory_space<vmem>>, vector<1x32x96xbf16>
    %52 = vector.shape_cast %51 : vector<1x32x96xbf16> to vector<32x96xbf16>
    %cst_33 = arith.constant dense<0.000000e+00> : vector<8x96xf32>
    %53 = tpu.matmul %50, %52, %cst_33 {dimension_numbers = #tpu.dot_dimension_numbers<[1], [0], [0], [1], [0, 0, 1, 1], [], []>} : vector<8x32xbf16>, vector<32x96xbf16>, vector<8x96xf32> -> vector<8x96xf32>
    %c8 = arith.constant 8 : index
    %c0_34 = arith.constant 0 : index
    %54 = vector.load %arg2[%c8, %c0_34] : memref<32x128xf32, #tpu.memory_space<vmem>>, vector<1x96xf32>
    %55 = vector.broadcast %54 : vector<1x96xf32> to vector<8x96xf32>
    %56 = arith.addf %53, %55 : vector<8x96xf32>
    %57 = arith.truncf %56 : vector<8x96xf32> to vector<8x96xbf16>
    %58 = vector.extract_strided_slice %57 {offsets = [0, 0], sizes = [8, 8], strides = [1, 1]} : vector<8x96xbf16> to vector<8x8xbf16>
    %59 = vector.shape_cast %58 : vector<8x8xbf16> to vector<1x8x8xbf16>
    %60 = vector.extract_strided_slice %57 {offsets = [0, 32], sizes = [8, 8], strides = [1, 1]} : vector<8x96xbf16> to vector<8x8xbf16>
    %61 = vector.shape_cast %60 : vector<8x8xbf16> to vector<1x8x8xbf16>
    %62 = vector.extract_strided_slice %57 {offsets = [0, 64], sizes = [8, 8], strides = [1, 1]} : vector<8x96xbf16> to vector<8x8xbf16>
    %63 = vector.shape_cast %62 : vector<8x8xbf16> to vector<1x8x8xbf16>
    "tpu.trace_start"() <{level = 10 : i32, message = "bqd,bkd->bqk"}> : () -> ()
    %cst_35 = arith.constant dense<0.000000e+00> : vector<1x8x8xf32>
    %64 = tpu.matmul %59, %61, %cst_35 {dimension_numbers = #tpu.dot_dimension_numbers<[2], [2], [1], [1], [0, 0, 0, 1, 1, 1], [0], [0]>} : vector<1x8x8xbf16>, vector<1x8x8xbf16>, vector<1x8x8xf32> -> vector<1x8x8xf32>
    "tpu.trace_stop"() : () -> ()
    %65 = arith.addf %64, %25 : vector<1x8x8xf32>
    %cst_36 = arith.constant dense<0xFF800000> : vector<1x8xf32>
    %66 = vector.multi_reduction <maximumf>, %65, %cst_36 [2] : vector<1x8x8xf32> to vector<1x8xf32>
    %67 = vector.shape_cast %66 : vector<1x8xf32> to vector<1x8x1xf32>
    %68 = vector.broadcast %67 : vector<1x8x1xf32> to vector<1x8x8xf32>
    %69 = arith.subf %65, %68 : vector<1x8x8xf32>
    %70 = math.exp %69 : vector<1x8x8xf32>
    %cst_37 = arith.constant dense<0.000000e+00> : vector<1x8xf32>
    %71 = vector.multi_reduction <add>, %70, %cst_37 [2] : vector<1x8x8xf32> to vector<1x8xf32>
    %72 = vector.shape_cast %71 : vector<1x8xf32> to vector<1x8x1xf32>
    %73 = vector.broadcast %72 : vector<1x8x1xf32> to vector<1x8x8xf32>
    %74 = arith.divf %70, %73 : vector<1x8x8xf32>
    %75 = arith.truncf %74 : vector<1x8x8xf32> to vector<1x8x8xbf16>
    "tpu.trace_start"() <{level = 10 : i32, message = "bqk,bkd->bqd"}> : () -> ()
    %cst_38 = arith.constant dense<0.000000e+00> : vector<1x8x8xf32>
    %76 = tpu.matmul %75, %63, %cst_38 {dimension_numbers = #tpu.dot_dimension_numbers<[2], [1], [1], [2], [0, 0, 0, 1, 1, 2], [0], [0]>} : vector<1x8x8xbf16>, vector<1x8x8xbf16>, vector<1x8x8xf32> -> vector<1x8x8xf32>
    "tpu.trace_stop"() : () -> ()
    %77 = vector.shape_cast %76 : vector<1x8x8xf32> to vector<8x8xf32>
    %78 = vector.extract_strided_slice %57 {offsets = [0, 8], sizes = [8, 8], strides = [1, 1]} : vector<8x96xbf16> to vector<8x8xbf16>
    %79 = vector.shape_cast %78 : vector<8x8xbf16> to vector<1x8x8xbf16>
    %80 = vector.extract_strided_slice %57 {offsets = [0, 40], sizes = [8, 8], strides = [1, 1]} : vector<8x96xbf16> to vector<8x8xbf16>
    %81 = vector.shape_cast %80 : vector<8x8xbf16> to vector<1x8x8xbf16>
    %82 = vector.extract_strided_slice %57 {offsets = [0, 72], sizes = [8, 8], strides = [1, 1]} : vector<8x96xbf16> to vector<8x8xbf16>
    %83 = vector.shape_cast %82 : vector<8x8xbf16> to vector<1x8x8xbf16>
    "tpu.trace_start"() <{level = 10 : i32, message = "bqd,bkd->bqk"}> : () -> ()
    %cst_39 = arith.constant dense<0.000000e+00> : vector<1x8x8xf32>
    %84 = tpu.matmul %79, %81, %cst_39 {dimension_numbers = #tpu.dot_dimension_numbers<[2], [2], [1], [1], [0, 0, 0, 1, 1, 1], [0], [0]>} : vector<1x8x8xbf16>, vector<1x8x8xbf16>, vector<1x8x8xf32> -> vector<1x8x8xf32>
    "tpu.trace_stop"() : () -> ()
    %85 = arith.addf %84, %25 : vector<1x8x8xf32>
    %cst_40 = arith.constant dense<0xFF800000> : vector<1x8xf32>
    %86 = vector.multi_reduction <maximumf>, %85, %cst_40 [2] : vector<1x8x8xf32> to vector<1x8xf32>
    %87 = vector.shape_cast %86 : vector<1x8xf32> to vector<1x8x1xf32>
    %88 = vector.broadcast %87 : vector<1x8x1xf32> to vector<1x8x8xf32>
    %89 = arith.subf %85, %88 : vector<1x8x8xf32>
    %90 = math.exp %89 : vector<1x8x8xf32>
    %cst_41 = arith.constant dense<0.000000e+00> : vector<1x8xf32>
    %91 = vector.multi_reduction <add>, %90, %cst_41 [2] : vector<1x8x8xf32> to vector<1x8xf32>
    %92 = vector.shape_cast %91 : vector<1x8xf32> to vector<1x8x1xf32>
    %93 = vector.broadcast %92 : vector<1x8x1xf32> to vector<1x8x8xf32>
    %94 = arith.divf %90, %93 : vector<1x8x8xf32>
    %95 = arith.truncf %94 : vector<1x8x8xf32> to vector<1x8x8xbf16>
    "tpu.trace_start"() <{level = 10 : i32, message = "bqk,bkd->bqd"}> : () -> ()
    %cst_42 = arith.constant dense<0.000000e+00> : vector<1x8x8xf32>
    %96 = tpu.matmul %95, %83, %cst_42 {dimension_numbers = #tpu.dot_dimension_numbers<[2], [1], [1], [2], [0, 0, 0, 1, 1, 2], [0], [0]>} : vector<1x8x8xbf16>, vector<1x8x8xbf16>, vector<1x8x8xf32> -> vector<1x8x8xf32>
    "tpu.trace_stop"() : () -> ()
    %97 = vector.shape_cast %96 : vector<1x8x8xf32> to vector<8x8xf32>
    %98 = vector.extract_strided_slice %57 {offsets = [0, 16], sizes = [8, 8], strides = [1, 1]} : vector<8x96xbf16> to vector<8x8xbf16>
    %99 = vector.shape_cast %98 : vector<8x8xbf16> to vector<1x8x8xbf16>
    %100 = vector.extract_strided_slice %57 {offsets = [0, 48], sizes = [8, 8], strides = [1, 1]} : vector<8x96xbf16> to vector<8x8xbf16>
    %101 = vector.shape_cast %100 : vector<8x8xbf16> to vector<1x8x8xbf16>
    %102 = vector.extract_strided_slice %57 {offsets = [0, 80], sizes = [8, 8], strides = [1, 1]} : vector<8x96xbf16> to vector<8x8xbf16>
    %103 = vector.shape_cast %102 : vector<8x8xbf16> to vector<1x8x8xbf16>
    "tpu.trace_start"() <{level = 10 : i32, message = "bqd,bkd->bqk"}> : () -> ()
    %cst_43 = arith.constant dense<0.000000e+00> : vector<1x8x8xf32>
    %104 = tpu.matmul %99, %101, %cst_43 {dimension_numbers = #tpu.dot_dimension_numbers<[2], [2], [1], [1], [0, 0, 0, 1, 1, 1], [0], [0]>} : vector<1x8x8xbf16>, vector<1x8x8xbf16>, vector<1x8x8xf32> -> vector<1x8x8xf32>
    "tpu.trace_stop"() : () -> ()
    %105 = arith.addf %104, %25 : vector<1x8x8xf32>
    %cst_44 = arith.constant dense<0xFF800000> : vector<1x8xf32>
    %106 = vector.multi_reduction <maximumf>, %105, %cst_44 [2] : vector<1x8x8xf32> to vector<1x8xf32>
    %107 = vector.shape_cast %106 : vector<1x8xf32> to vector<1x8x1xf32>
    %108 = vector.broadcast %107 : vector<1x8x1xf32> to vector<1x8x8xf32>
    %109 = arith.subf %105, %108 : vector<1x8x8xf32>
    %110 = math.exp %109 : vector<1x8x8xf32>
    %cst_45 = arith.constant dense<0.000000e+00> : vector<1x8xf32>
    %111 = vector.multi_reduction <add>, %110, %cst_45 [2] : vector<1x8x8xf32> to vector<1x8xf32>
    %112 = vector.shape_cast %111 : vector<1x8xf32> to vector<1x8x1xf32>
    %113 = vector.broadcast %112 : vector<1x8x1xf32> to vector<1x8x8xf32>
    %114 = arith.divf %110, %113 : vector<1x8x8xf32>
    %115 = arith.truncf %114 : vector<1x8x8xf32> to vector<1x8x8xbf16>
    "tpu.trace_start"() <{level = 10 : i32, message = "bqk,bkd->bqd"}> : () -> ()
    %cst_46 = arith.constant dense<0.000000e+00> : vector<1x8x8xf32>
    %116 = tpu.matmul %115, %103, %cst_46 {dimension_numbers = #tpu.dot_dimension_numbers<[2], [1], [1], [2], [0, 0, 0, 1, 1, 2], [0], [0]>} : vector<1x8x8xbf16>, vector<1x8x8xbf16>, vector<1x8x8xf32> -> vector<1x8x8xf32>
    "tpu.trace_stop"() : () -> ()
    %117 = vector.shape_cast %116 : vector<1x8x8xf32> to vector<8x8xf32>
    %118 = vector.extract_strided_slice %57 {offsets = [0, 24], sizes = [8, 8], strides = [1, 1]} : vector<8x96xbf16> to vector<8x8xbf16>
    %119 = vector.shape_cast %118 : vector<8x8xbf16> to vector<1x8x8xbf16>
    %120 = vector.extract_strided_slice %57 {offsets = [0, 56], sizes = [8, 8], strides = [1, 1]} : vector<8x96xbf16> to vector<8x8xbf16>
    %121 = vector.shape_cast %120 : vector<8x8xbf16> to vector<1x8x8xbf16>
    %122 = vector.extract_strided_slice %57 {offsets = [0, 88], sizes = [8, 8], strides = [1, 1]} : vector<8x96xbf16> to vector<8x8xbf16>
    %123 = vector.shape_cast %122 : vector<8x8xbf16> to vector<1x8x8xbf16>
    "tpu.trace_start"() <{level = 10 : i32, message = "bqd,bkd->bqk"}> : () -> ()
    %cst_47 = arith.constant dense<0.000000e+00> : vector<1x8x8xf32>
    %124 = tpu.matmul %119, %121, %cst_47 {dimension_numbers = #tpu.dot_dimension_numbers<[2], [2], [1], [1], [0, 0, 0, 1, 1, 1], [0], [0]>} : vector<1x8x8xbf16>, vector<1x8x8xbf16>, vector<1x8x8xf32> -> vector<1x8x8xf32>
    "tpu.trace_stop"() : () -> ()
    %125 = arith.addf %124, %25 : vector<1x8x8xf32>
    %cst_48 = arith.constant dense<0xFF800000> : vector<1x8xf32>
    %126 = vector.multi_reduction <maximumf>, %125, %cst_48 [2] : vector<1x8x8xf32> to vector<1x8xf32>
    %127 = vector.shape_cast %126 : vector<1x8xf32> to vector<1x8x1xf32>
    %128 = vector.broadcast %127 : vector<1x8x1xf32> to vector<1x8x8xf32>
    %129 = arith.subf %125, %128 : vector<1x8x8xf32>
    %130 = math.exp %129 : vector<1x8x8xf32>
    %cst_49 = arith.constant dense<0.000000e+00> : vector<1x8xf32>
    %131 = vector.multi_reduction <add>, %130, %cst_49 [2] : vector<1x8x8xf32> to vector<1x8xf32>
    %132 = vector.shape_cast %131 : vector<1x8xf32> to vector<1x8x1xf32>
    %133 = vector.broadcast %132 : vector<1x8x1xf32> to vector<1x8x8xf32>
    %134 = arith.divf %130, %133 : vector<1x8x8xf32>
    %135 = arith.truncf %134 : vector<1x8x8xf32> to vector<1x8x8xbf16>
    "tpu.trace_start"() <{level = 10 : i32, message = "bqk,bkd->bqd"}> : () -> ()
    %cst_50 = arith.constant dense<0.000000e+00> : vector<1x8x8xf32>
    %136 = tpu.matmul %135, %123, %cst_50 {dimension_numbers = #tpu.dot_dimension_numbers<[2], [1], [1], [2], [0, 0, 0, 1, 1, 2], [0], [0]>} : vector<1x8x8xbf16>, vector<1x8x8xbf16>, vector<1x8x8xf32> -> vector<1x8x8xf32>
    "tpu.trace_stop"() : () -> ()
    %137 = vector.shape_cast %136 : vector<1x8x8xf32> to vector<8x8xf32>
    %138 = tpu.concatenate %77, %97, %117, %137 in 1 : vector<8x8xf32>, vector<8x8xf32>, vector<8x8xf32>, vector<8x8xf32> -> vector<8x32xf32>
    %139 = arith.truncf %138 : vector<8x32xf32> to vector<8x32xbf16>
    %c0_51 = arith.constant 0 : index
    %c0_52 = arith.constant 0 : index
    %c0_53 = arith.constant 0 : index
    %140 = vector.load %arg5[%c0_51, %c0_52, %c0_53] : memref<2x32x32xbf16, #tpu.memory_space<vmem>>, vector<1x32x32xbf16>
    %141 = vector.shape_cast %140 : vector<1x32x32xbf16> to vector<32x32xbf16>
    %cst_54 = arith.constant dense<0.000000e+00> : vector<8x32xf32>
    %142 = tpu.matmul %139, %141, %cst_54 {dimension_numbers = #tpu.dot_dimension_numbers<[1], [0], [0], [1], [0, 0, 1, 1], [], []>} : vector<8x32xbf16>, vector<32x32xbf16>, vector<8x32xf32> -> vector<8x32xf32>
    %c9 = arith.constant 9 : index
    %c0_55 = arith.constant 0 : index
    %143 = vector.load %arg2[%c9, %c0_55] : memref<32x128xf32, #tpu.memory_space<vmem>>, vector<1x32xf32>
    %144 = vector.broadcast %143 : vector<1x32xf32> to vector<8x32xf32>
    %145 = arith.addf %142, %144 : vector<8x32xf32>
    %146 = arith.addf %18, %145 : vector<8x32xf32>
    %c10 = arith.constant 10 : index
    %c0_56 = arith.constant 0 : index
    %147 = vector.load %arg2[%c10, %c0_56] : memref<32x128xf32, #tpu.memory_space<vmem>>, vector<1x32xf32>
    %c11 = arith.constant 11 : index
    %c0_57 = arith.constant 0 : index
    %148 = vector.load %arg2[%c11, %c0_57] : memref<32x128xf32, #tpu.memory_space<vmem>>, vector<1x32xf32>
    %cst_58 = arith.constant dense<0.000000e+00> : vector<8xf32>
    %149 = vector.multi_reduction <add>, %146, %cst_58 [1] : vector<8x32xf32> to vector<8xf32>
    %150 = vector.shape_cast %149 : vector<8xf32> to vector<8x1xf32>
    %cst_59 = arith.constant 3.200000e+01 : f32
    %151 = vector.broadcast %cst_59 : f32 to vector<8x1xf32>
    %152 = arith.divf %150, %151 : vector<8x1xf32>
    %153 = vector.broadcast %152 : vector<8x1xf32> to vector<8x32xf32>
    %154 = arith.subf %146, %153 : vector<8x32xf32>
    %155 = arith.mulf %154, %154 : vector<8x32xf32>
    %cst_60 = arith.constant dense<0.000000e+00> : vector<8xf32>
    %156 = vector.multi_reduction <add>, %155, %cst_60 [1] : vector<8x32xf32> to vector<8xf32>
    %157 = vector.shape_cast %156 : vector<8xf32> to vector<8x1xf32>
    %cst_61 = arith.constant 3.200000e+01 : f32
    %158 = vector.broadcast %cst_61 : f32 to vector<8x1xf32>
    %159 = arith.divf %157, %158 : vector<8x1xf32>
    %160 = vector.broadcast %152 : vector<8x1xf32> to vector<8x32xf32>
    %161 = arith.subf %146, %160 : vector<8x32xf32>
    %cst_62 = arith.constant 9.99999997E-7 : f32
    %162 = vector.broadcast %cst_62 : f32 to vector<8x1xf32>
    %163 = arith.addf %159, %162 : vector<8x1xf32>
    %164 = math.rsqrt %163 : vector<8x1xf32>
    %165 = vector.broadcast %164 : vector<8x1xf32> to vector<8x32xf32>
    %166 = arith.mulf %161, %165 : vector<8x32xf32>
    %167 = vector.broadcast %147 : vector<1x32xf32> to vector<8x32xf32>
    %168 = arith.mulf %166, %167 : vector<8x32xf32>
    %169 = vector.broadcast %148 : vector<1x32xf32> to vector<8x32xf32>
    %170 = arith.addf %168, %169 : vector<8x32xf32>
    %171 = arith.truncf %170 : vector<8x32xf32> to vector<8x32xbf16>
    %c0_63 = arith.constant 0 : index
    %c0_64 = arith.constant 0 : index
    %c0_65 = arith.constant 0 : index
    %172 = vector.load %arg6[%c0_63, %c0_64, %c0_65] : memref<2x32x128xbf16, #tpu.memory_space<vmem>>, vector<1x32x128xbf16>
    %173 = vector.shape_cast %172 : vector<1x32x128xbf16> to vector<32x128xbf16>
    %cst_66 = arith.constant dense<0.000000e+00> : vector<8x128xf32>
    %174 = tpu.matmul %171, %173, %cst_66 {dimension_numbers = #tpu.dot_dimension_numbers<[1], [0], [0], [1], [0, 0, 1, 1], [], []>} : vector<8x32xbf16>, vector<32x128xbf16>, vector<8x128xf32> -> vector<8x128xf32>
    %c12 = arith.constant 12 : index
    %c0_67 = arith.constant 0 : index
    %175 = vector.load %arg2[%c12, %c0_67] : memref<32x128xf32, #tpu.memory_space<vmem>>, vector<1x128xf32>
    %176 = vector.broadcast %175 : vector<1x128xf32> to vector<8x128xf32>
    %177 = arith.addf %174, %176 : vector<8x128xf32>
    %cst_68 = arith.constant 5.000000e-01 : f32
    %178 = vector.broadcast %cst_68 : f32 to vector<8x128xf32>
    %179 = arith.mulf %178, %177 : vector<8x128xf32>
    %cst_69 = arith.constant 4.471500e-02 : f32
    %180 = vector.broadcast %cst_69 : f32 to vector<8x128xf32>
    %181 = arith.mulf %180, %177 : vector<8x128xf32>
    %182 = arith.mulf %181, %177 : vector<8x128xf32>
    %183 = arith.mulf %182, %177 : vector<8x128xf32>
    %184 = arith.addf %177, %183 : vector<8x128xf32>
    %cst_70 = arith.constant 0.797884583 : f32
    %185 = vector.broadcast %cst_70 : f32 to vector<8x128xf32>
    %186 = arith.mulf %185, %184 : vector<8x128xf32>
    %187 = math.tanh %186 : vector<8x128xf32>
    %cst_71 = arith.constant 1.000000e+00 : f32
    %188 = vector.broadcast %cst_71 : f32 to vector<8x128xf32>
    %189 = arith.addf %188, %187 : vector<8x128xf32>
    %190 = arith.mulf %179, %189 : vector<8x128xf32>
    %191 = arith.truncf %190 : vector<8x128xf32> to vector<8x128xbf16>
    %c0_72 = arith.constant 0 : index
    %c0_73 = arith.constant 0 : index
    %c0_74 = arith.constant 0 : index
    %192 = vector.load %arg7[%c0_72, %c0_73, %c0_74] : memref<2x128x32xbf16, #tpu.memory_space<vmem>>, vector<1x128x32xbf16>
    %193 = vector.shape_cast %192 : vector<1x128x32xbf16> to vector<128x32xbf16>
    %cst_75 = arith.constant dense<0.000000e+00> : vector<8x32xf32>
    %194 = tpu.matmul %191, %193, %cst_75 {dimension_numbers = #tpu.dot_dimension_numbers<[1], [0], [0], [1], [0, 0, 1, 1], [], []>} : vector<8x128xbf16>, vector<128x32xbf16>, vector<8x32xf32> -> vector<8x32xf32>
    %c13 = arith.constant 13 : index
    %c0_76 = arith.constant 0 : index
    %195 = vector.load %arg2[%c13, %c0_76] : memref<32x128xf32, #tpu.memory_space<vmem>>, vector<1x32xf32>
    %196 = vector.broadcast %195 : vector<1x32xf32> to vector<8x32xf32>
    %197 = arith.addf %194, %196 : vector<8x32xf32>
    %198 = arith.addf %146, %197 : vector<8x32xf32>
    %c14 = arith.constant 14 : index
    %c0_77 = arith.constant 0 : index
    %199 = vector.load %arg2[%c14, %c0_77] : memref<32x128xf32, #tpu.memory_space<vmem>>, vector<1x32xf32>
    %c15 = arith.constant 15 : index
    %c0_78 = arith.constant 0 : index
    %200 = vector.load %arg2[%c15, %c0_78] : memref<32x128xf32, #tpu.memory_space<vmem>>, vector<1x32xf32>
    %cst_79 = arith.constant dense<0.000000e+00> : vector<8xf32>
    %201 = vector.multi_reduction <add>, %198, %cst_79 [1] : vector<8x32xf32> to vector<8xf32>
    %202 = vector.shape_cast %201 : vector<8xf32> to vector<8x1xf32>
    %cst_80 = arith.constant 3.200000e+01 : f32
    %203 = vector.broadcast %cst_80 : f32 to vector<8x1xf32>
    %204 = arith.divf %202, %203 : vector<8x1xf32>
    %205 = vector.broadcast %204 : vector<8x1xf32> to vector<8x32xf32>
    %206 = arith.subf %198, %205 : vector<8x32xf32>
    %207 = arith.mulf %206, %206 : vector<8x32xf32>
    %cst_81 = arith.constant dense<0.000000e+00> : vector<8xf32>
    %208 = vector.multi_reduction <add>, %207, %cst_81 [1] : vector<8x32xf32> to vector<8xf32>
    %209 = vector.shape_cast %208 : vector<8xf32> to vector<8x1xf32>
    %cst_82 = arith.constant 3.200000e+01 : f32
    %210 = vector.broadcast %cst_82 : f32 to vector<8x1xf32>
    %211 = arith.divf %209, %210 : vector<8x1xf32>
    %212 = vector.broadcast %204 : vector<8x1xf32> to vector<8x32xf32>
    %213 = arith.subf %198, %212 : vector<8x32xf32>
    %cst_83 = arith.constant 9.99999997E-7 : f32
    %214 = vector.broadcast %cst_83 : f32 to vector<8x1xf32>
    %215 = arith.addf %211, %214 : vector<8x1xf32>
    %216 = math.rsqrt %215 : vector<8x1xf32>
    %217 = vector.broadcast %216 : vector<8x1xf32> to vector<8x32xf32>
    %218 = arith.mulf %213, %217 : vector<8x32xf32>
    %219 = vector.broadcast %199 : vector<1x32xf32> to vector<8x32xf32>
    %220 = arith.mulf %218, %219 : vector<8x32xf32>
    %221 = vector.broadcast %200 : vector<1x32xf32> to vector<8x32xf32>
    %222 = arith.addf %220, %221 : vector<8x32xf32>
    %223 = arith.truncf %222 : vector<8x32xf32> to vector<8x32xbf16>
    %c1_84 = arith.constant 1 : index
    %c0_85 = arith.constant 0 : index
    %c0_86 = arith.constant 0 : index
    %224 = vector.load %arg4[%c1_84, %c0_85, %c0_86] : memref<2x32x96xbf16, #tpu.memory_space<vmem>>, vector<1x32x96xbf16>
    %225 = vector.shape_cast %224 : vector<1x32x96xbf16> to vector<32x96xbf16>
    %cst_87 = arith.constant dense<0.000000e+00> : vector<8x96xf32>
    %226 = tpu.matmul %223, %225, %cst_87 {dimension_numbers = #tpu.dot_dimension_numbers<[1], [0], [0], [1], [0, 0, 1, 1], [], []>} : vector<8x32xbf16>, vector<32x96xbf16>, vector<8x96xf32> -> vector<8x96xf32>
    %c16 = arith.constant 16 : index
    %c0_88 = arith.constant 0 : index
    %227 = vector.load %arg2[%c16, %c0_88] : memref<32x128xf32, #tpu.memory_space<vmem>>, vector<1x96xf32>
    %228 = vector.broadcast %227 : vector<1x96xf32> to vector<8x96xf32>
    %229 = arith.addf %226, %228 : vector<8x96xf32>
    %230 = arith.truncf %229 : vector<8x96xf32> to vector<8x96xbf16>
    %231 = vector.extract_strided_slice %230 {offsets = [0, 0], sizes = [8, 8], strides = [1, 1]} : vector<8x96xbf16> to vector<8x8xbf16>
    %232 = vector.shape_cast %231 : vector<8x8xbf16> to vector<1x8x8xbf16>
    %233 = vector.extract_strided_slice %230 {offsets = [0, 32], sizes = [8, 8], strides = [1, 1]} : vector<8x96xbf16> to vector<8x8xbf16>
    %234 = vector.shape_cast %233 : vector<8x8xbf16> to vector<1x8x8xbf16>
    %235 = vector.extract_strided_slice %230 {offsets = [0, 64], sizes = [8, 8], strides = [1, 1]} : vector<8x96xbf16> to vector<8x8xbf16>
    %236 = vector.shape_cast %235 : vector<8x8xbf16> to vector<1x8x8xbf16>
    "tpu.trace_start"() <{level = 10 : i32, message = "bqd,bkd->bqk"}> : () -> ()
    %cst_89 = arith.constant dense<0.000000e+00> : vector<1x8x8xf32>
    %237 = tpu.matmul %232, %234, %cst_89 {dimension_numbers = #tpu.dot_dimension_numbers<[2], [2], [1], [1], [0, 0, 0, 1, 1, 1], [0], [0]>} : vector<1x8x8xbf16>, vector<1x8x8xbf16>, vector<1x8x8xf32> -> vector<1x8x8xf32>
    "tpu.trace_stop"() : () -> ()
    %238 = arith.addf %237, %25 : vector<1x8x8xf32>
    %cst_90 = arith.constant dense<0xFF800000> : vector<1x8xf32>
    %239 = vector.multi_reduction <maximumf>, %238, %cst_90 [2] : vector<1x8x8xf32> to vector<1x8xf32>
    %240 = vector.shape_cast %239 : vector<1x8xf32> to vector<1x8x1xf32>
    %241 = vector.broadcast %240 : vector<1x8x1xf32> to vector<1x8x8xf32>
    %242 = arith.subf %238, %241 : vector<1x8x8xf32>
    %243 = math.exp %242 : vector<1x8x8xf32>
    %cst_91 = arith.constant dense<0.000000e+00> : vector<1x8xf32>
    %244 = vector.multi_reduction <add>, %243, %cst_91 [2] : vector<1x8x8xf32> to vector<1x8xf32>
    %245 = vector.shape_cast %244 : vector<1x8xf32> to vector<1x8x1xf32>
    %246 = vector.broadcast %245 : vector<1x8x1xf32> to vector<1x8x8xf32>
    %247 = arith.divf %243, %246 : vector<1x8x8xf32>
    %248 = arith.truncf %247 : vector<1x8x8xf32> to vector<1x8x8xbf16>
    "tpu.trace_start"() <{level = 10 : i32, message = "bqk,bkd->bqd"}> : () -> ()
    %cst_92 = arith.constant dense<0.000000e+00> : vector<1x8x8xf32>
    %249 = tpu.matmul %248, %236, %cst_92 {dimension_numbers = #tpu.dot_dimension_numbers<[2], [1], [1], [2], [0, 0, 0, 1, 1, 2], [0], [0]>} : vector<1x8x8xbf16>, vector<1x8x8xbf16>, vector<1x8x8xf32> -> vector<1x8x8xf32>
    "tpu.trace_stop"() : () -> ()
    %250 = vector.shape_cast %249 : vector<1x8x8xf32> to vector<8x8xf32>
    %251 = vector.extract_strided_slice %230 {offsets = [0, 8], sizes = [8, 8], strides = [1, 1]} : vector<8x96xbf16> to vector<8x8xbf16>
    %252 = vector.shape_cast %251 : vector<8x8xbf16> to vector<1x8x8xbf16>
    %253 = vector.extract_strided_slice %230 {offsets = [0, 40], sizes = [8, 8], strides = [1, 1]} : vector<8x96xbf16> to vector<8x8xbf16>
    %254 = vector.shape_cast %253 : vector<8x8xbf16> to vector<1x8x8xbf16>
    %255 = vector.extract_strided_slice %230 {offsets = [0, 72], sizes = [8, 8], strides = [1, 1]} : vector<8x96xbf16> to vector<8x8xbf16>
    %256 = vector.shape_cast %255 : vector<8x8xbf16> to vector<1x8x8xbf16>
    "tpu.trace_start"() <{level = 10 : i32, message = "bqd,bkd->bqk"}> : () -> ()
    %cst_93 = arith.constant dense<0.000000e+00> : vector<1x8x8xf32>
    %257 = tpu.matmul %252, %254, %cst_93 {dimension_numbers = #tpu.dot_dimension_numbers<[2], [2], [1], [1], [0, 0, 0, 1, 1, 1], [0], [0]>} : vector<1x8x8xbf16>, vector<1x8x8xbf16>, vector<1x8x8xf32> -> vector<1x8x8xf32>
    "tpu.trace_stop"() : () -> ()
    %258 = arith.addf %257, %25 : vector<1x8x8xf32>
    %cst_94 = arith.constant dense<0xFF800000> : vector<1x8xf32>
    %259 = vector.multi_reduction <maximumf>, %258, %cst_94 [2] : vector<1x8x8xf32> to vector<1x8xf32>
    %260 = vector.shape_cast %259 : vector<1x8xf32> to vector<1x8x1xf32>
    %261 = vector.broadcast %260 : vector<1x8x1xf32> to vector<1x8x8xf32>
    %262 = arith.subf %258, %261 : vector<1x8x8xf32>
    %263 = math.exp %262 : vector<1x8x8xf32>
    %cst_95 = arith.constant dense<0.000000e+00> : vector<1x8xf32>
    %264 = vector.multi_reduction <add>, %263, %cst_95 [2] : vector<1x8x8xf32> to vector<1x8xf32>
    %265 = vector.shape_cast %264 : vector<1x8xf32> to vector<1x8x1xf32>
    %266 = vector.broadcast %265 : vector<1x8x1xf32> to vector<1x8x8xf32>
    %267 = arith.divf %263, %266 : vector<1x8x8xf32>
    %268 = arith.truncf %267 : vector<1x8x8xf32> to vector<1x8x8xbf16>
    "tpu.trace_start"() <{level = 10 : i32, message = "bqk,bkd->bqd"}> : () -> ()
    %cst_96 = arith.constant dense<0.000000e+00> : vector<1x8x8xf32>
    %269 = tpu.matmul %268, %256, %cst_96 {dimension_numbers = #tpu.dot_dimension_numbers<[2], [1], [1], [2], [0, 0, 0, 1, 1, 2], [0], [0]>} : vector<1x8x8xbf16>, vector<1x8x8xbf16>, vector<1x8x8xf32> -> vector<1x8x8xf32>
    "tpu.trace_stop"() : () -> ()
    %270 = vector.shape_cast %269 : vector<1x8x8xf32> to vector<8x8xf32>
    %271 = vector.extract_strided_slice %230 {offsets = [0, 16], sizes = [8, 8], strides = [1, 1]} : vector<8x96xbf16> to vector<8x8xbf16>
    %272 = vector.shape_cast %271 : vector<8x8xbf16> to vector<1x8x8xbf16>
    %273 = vector.extract_strided_slice %230 {offsets = [0, 48], sizes = [8, 8], strides = [1, 1]} : vector<8x96xbf16> to vector<8x8xbf16>
    %274 = vector.shape_cast %273 : vector<8x8xbf16> to vector<1x8x8xbf16>
    %275 = vector.extract_strided_slice %230 {offsets = [0, 80], sizes = [8, 8], strides = [1, 1]} : vector<8x96xbf16> to vector<8x8xbf16>
    %276 = vector.shape_cast %275 : vector<8x8xbf16> to vector<1x8x8xbf16>
    "tpu.trace_start"() <{level = 10 : i32, message = "bqd,bkd->bqk"}> : () -> ()
    %cst_97 = arith.constant dense<0.000000e+00> : vector<1x8x8xf32>
    %277 = tpu.matmul %272, %274, %cst_97 {dimension_numbers = #tpu.dot_dimension_numbers<[2], [2], [1], [1], [0, 0, 0, 1, 1, 1], [0], [0]>} : vector<1x8x8xbf16>, vector<1x8x8xbf16>, vector<1x8x8xf32> -> vector<1x8x8xf32>
    "tpu.trace_stop"() : () -> ()
    %278 = arith.addf %277, %25 : vector<1x8x8xf32>
    %cst_98 = arith.constant dense<0xFF800000> : vector<1x8xf32>
    %279 = vector.multi_reduction <maximumf>, %278, %cst_98 [2] : vector<1x8x8xf32> to vector<1x8xf32>
    %280 = vector.shape_cast %279 : vector<1x8xf32> to vector<1x8x1xf32>
    %281 = vector.broadcast %280 : vector<1x8x1xf32> to vector<1x8x8xf32>
    %282 = arith.subf %278, %281 : vector<1x8x8xf32>
    %283 = math.exp %282 : vector<1x8x8xf32>
    %cst_99 = arith.constant dense<0.000000e+00> : vector<1x8xf32>
    %284 = vector.multi_reduction <add>, %283, %cst_99 [2] : vector<1x8x8xf32> to vector<1x8xf32>
    %285 = vector.shape_cast %284 : vector<1x8xf32> to vector<1x8x1xf32>
    %286 = vector.broadcast %285 : vector<1x8x1xf32> to vector<1x8x8xf32>
    %287 = arith.divf %283, %286 : vector<1x8x8xf32>
    %288 = arith.truncf %287 : vector<1x8x8xf32> to vector<1x8x8xbf16>
    "tpu.trace_start"() <{level = 10 : i32, message = "bqk,bkd->bqd"}> : () -> ()
    %cst_100 = arith.constant dense<0.000000e+00> : vector<1x8x8xf32>
    %289 = tpu.matmul %288, %276, %cst_100 {dimension_numbers = #tpu.dot_dimension_numbers<[2], [1], [1], [2], [0, 0, 0, 1, 1, 2], [0], [0]>} : vector<1x8x8xbf16>, vector<1x8x8xbf16>, vector<1x8x8xf32> -> vector<1x8x8xf32>
    "tpu.trace_stop"() : () -> ()
    %290 = vector.shape_cast %289 : vector<1x8x8xf32> to vector<8x8xf32>
    %291 = vector.extract_strided_slice %230 {offsets = [0, 24], sizes = [8, 8], strides = [1, 1]} : vector<8x96xbf16> to vector<8x8xbf16>
    %292 = vector.shape_cast %291 : vector<8x8xbf16> to vector<1x8x8xbf16>
    %293 = vector.extract_strided_slice %230 {offsets = [0, 56], sizes = [8, 8], strides = [1, 1]} : vector<8x96xbf16> to vector<8x8xbf16>
    %294 = vector.shape_cast %293 : vector<8x8xbf16> to vector<1x8x8xbf16>
    %295 = vector.extract_strided_slice %230 {offsets = [0, 88], sizes = [8, 8], strides = [1, 1]} : vector<8x96xbf16> to vector<8x8xbf16>
    %296 = vector.shape_cast %295 : vector<8x8xbf16> to vector<1x8x8xbf16>
    "tpu.trace_start"() <{level = 10 : i32, message = "bqd,bkd->bqk"}> : () -> ()
    %cst_101 = arith.constant dense<0.000000e+00> : vector<1x8x8xf32>
    %297 = tpu.matmul %292, %294, %cst_101 {dimension_numbers = #tpu.dot_dimension_numbers<[2], [2], [1], [1], [0, 0, 0, 1, 1, 1], [0], [0]>} : vector<1x8x8xbf16>, vector<1x8x8xbf16>, vector<1x8x8xf32> -> vector<1x8x8xf32>
    "tpu.trace_stop"() : () -> ()
    %298 = arith.addf %297, %25 : vector<1x8x8xf32>
    %cst_102 = arith.constant dense<0xFF800000> : vector<1x8xf32>
    %299 = vector.multi_reduction <maximumf>, %298, %cst_102 [2] : vector<1x8x8xf32> to vector<1x8xf32>
    %300 = vector.shape_cast %299 : vector<1x8xf32> to vector<1x8x1xf32>
    %301 = vector.broadcast %300 : vector<1x8x1xf32> to vector<1x8x8xf32>
    %302 = arith.subf %298, %301 : vector<1x8x8xf32>
    %303 = math.exp %302 : vector<1x8x8xf32>
    %cst_103 = arith.constant dense<0.000000e+00> : vector<1x8xf32>
    %304 = vector.multi_reduction <add>, %303, %cst_103 [2] : vector<1x8x8xf32> to vector<1x8xf32>
    %305 = vector.shape_cast %304 : vector<1x8xf32> to vector<1x8x1xf32>
    %306 = vector.broadcast %305 : vector<1x8x1xf32> to vector<1x8x8xf32>
    %307 = arith.divf %303, %306 : vector<1x8x8xf32>
    %308 = arith.truncf %307 : vector<1x8x8xf32> to vector<1x8x8xbf16>
    "tpu.trace_start"() <{level = 10 : i32, message = "bqk,bkd->bqd"}> : () -> ()
    %cst_104 = arith.constant dense<0.000000e+00> : vector<1x8x8xf32>
    %309 = tpu.matmul %308, %296, %cst_104 {dimension_numbers = #tpu.dot_dimension_numbers<[2], [1], [1], [2], [0, 0, 0, 1, 1, 2], [0], [0]>} : vector<1x8x8xbf16>, vector<1x8x8xbf16>, vector<1x8x8xf32> -> vector<1x8x8xf32>
    "tpu.trace_stop"() : () -> ()
    %310 = vector.shape_cast %309 : vector<1x8x8xf32> to vector<8x8xf32>
    %311 = tpu.concatenate %250, %270, %290, %310 in 1 : vector<8x8xf32>, vector<8x8xf32>, vector<8x8xf32>, vector<8x8xf32> -> vector<8x32xf32>
    %312 = arith.truncf %311 : vector<8x32xf32> to vector<8x32xbf16>
    %c1_105 = arith.constant 1 : index
    %c0_106 = arith.constant 0 : index
    %c0_107 = arith.constant 0 : index
    %313 = vector.load %arg5[%c1_105, %c0_106, %c0_107] : memref<2x32x32xbf16, #tpu.memory_space<vmem>>, vector<1x32x32xbf16>
    %314 = vector.shape_cast %313 : vector<1x32x32xbf16> to vector<32x32xbf16>
    %cst_108 = arith.constant dense<0.000000e+00> : vector<8x32xf32>
    %315 = tpu.matmul %312, %314, %cst_108 {dimension_numbers = #tpu.dot_dimension_numbers<[1], [0], [0], [1], [0, 0, 1, 1], [], []>} : vector<8x32xbf16>, vector<32x32xbf16>, vector<8x32xf32> -> vector<8x32xf32>
    %c17 = arith.constant 17 : index
    %c0_109 = arith.constant 0 : index
    %316 = vector.load %arg2[%c17, %c0_109] : memref<32x128xf32, #tpu.memory_space<vmem>>, vector<1x32xf32>
    %317 = vector.broadcast %316 : vector<1x32xf32> to vector<8x32xf32>
    %318 = arith.addf %315, %317 : vector<8x32xf32>
    %319 = arith.addf %198, %318 : vector<8x32xf32>
    %c18 = arith.constant 18 : index
    %c0_110 = arith.constant 0 : index
    %320 = vector.load %arg2[%c18, %c0_110] : memref<32x128xf32, #tpu.memory_space<vmem>>, vector<1x32xf32>
    %c19 = arith.constant 19 : index
    %c0_111 = arith.constant 0 : index
    %321 = vector.load %arg2[%c19, %c0_111] : memref<32x128xf32, #tpu.memory_space<vmem>>, vector<1x32xf32>
    %cst_112 = arith.constant dense<0.000000e+00> : vector<8xf32>
    %322 = vector.multi_reduction <add>, %319, %cst_112 [1] : vector<8x32xf32> to vector<8xf32>
    %323 = vector.shape_cast %322 : vector<8xf32> to vector<8x1xf32>
    %cst_113 = arith.constant 3.200000e+01 : f32
    %324 = vector.broadcast %cst_113 : f32 to vector<8x1xf32>
    %325 = arith.divf %323, %324 : vector<8x1xf32>
    %326 = vector.broadcast %325 : vector<8x1xf32> to vector<8x32xf32>
    %327 = arith.subf %319, %326 : vector<8x32xf32>
    %328 = arith.mulf %327, %327 : vector<8x32xf32>
    %cst_114 = arith.constant dense<0.000000e+00> : vector<8xf32>
    %329 = vector.multi_reduction <add>, %328, %cst_114 [1] : vector<8x32xf32> to vector<8xf32>
    %330 = vector.shape_cast %329 : vector<8xf32> to vector<8x1xf32>
    %cst_115 = arith.constant 3.200000e+01 : f32
    %331 = vector.broadcast %cst_115 : f32 to vector<8x1xf32>
    %332 = arith.divf %330, %331 : vector<8x1xf32>
    %333 = vector.broadcast %325 : vector<8x1xf32> to vector<8x32xf32>
    %334 = arith.subf %319, %333 : vector<8x32xf32>
    %cst_116 = arith.constant 9.99999997E-7 : f32
    %335 = vector.broadcast %cst_116 : f32 to vector<8x1xf32>
    %336 = arith.addf %332, %335 : vector<8x1xf32>
    %337 = math.rsqrt %336 : vector<8x1xf32>
    %338 = vector.broadcast %337 : vector<8x1xf32> to vector<8x32xf32>
    %339 = arith.mulf %334, %338 : vector<8x32xf32>
    %340 = vector.broadcast %320 : vector<1x32xf32> to vector<8x32xf32>
    %341 = arith.mulf %339, %340 : vector<8x32xf32>
    %342 = vector.broadcast %321 : vector<1x32xf32> to vector<8x32xf32>
    %343 = arith.addf %341, %342 : vector<8x32xf32>
    %344 = arith.truncf %343 : vector<8x32xf32> to vector<8x32xbf16>
    %c1_117 = arith.constant 1 : index
    %c0_118 = arith.constant 0 : index
    %c0_119 = arith.constant 0 : index
    %345 = vector.load %arg6[%c1_117, %c0_118, %c0_119] : memref<2x32x128xbf16, #tpu.memory_space<vmem>>, vector<1x32x128xbf16>
    %346 = vector.shape_cast %345 : vector<1x32x128xbf16> to vector<32x128xbf16>
    %cst_120 = arith.constant dense<0.000000e+00> : vector<8x128xf32>
    %347 = tpu.matmul %344, %346, %cst_120 {dimension_numbers = #tpu.dot_dimension_numbers<[1], [0], [0], [1], [0, 0, 1, 1], [], []>} : vector<8x32xbf16>, vector<32x128xbf16>, vector<8x128xf32> -> vector<8x128xf32>
    %c20 = arith.constant 20 : index
    %c0_121 = arith.constant 0 : index
    %348 = vector.load %arg2[%c20, %c0_121] : memref<32x128xf32, #tpu.memory_space<vmem>>, vector<1x128xf32>
    %349 = vector.broadcast %348 : vector<1x128xf32> to vector<8x128xf32>
    %350 = arith.addf %347, %349 : vector<8x128xf32>
    %cst_122 = arith.constant 5.000000e-01 : f32
    %351 = vector.broadcast %cst_122 : f32 to vector<8x128xf32>
    %352 = arith.mulf %351, %350 : vector<8x128xf32>
    %cst_123 = arith.constant 4.471500e-02 : f32
    %353 = vector.broadcast %cst_123 : f32 to vector<8x128xf32>
    %354 = arith.mulf %353, %350 : vector<8x128xf32>
    %355 = arith.mulf %354, %350 : vector<8x128xf32>
    %356 = arith.mulf %355, %350 : vector<8x128xf32>
    %357 = arith.addf %350, %356 : vector<8x128xf32>
    %cst_124 = arith.constant 0.797884583 : f32
    %358 = vector.broadcast %cst_124 : f32 to vector<8x128xf32>
    %359 = arith.mulf %358, %357 : vector<8x128xf32>
    %360 = math.tanh %359 : vector<8x128xf32>
    %cst_125 = arith.constant 1.000000e+00 : f32
    %361 = vector.broadcast %cst_125 : f32 to vector<8x128xf32>
    %362 = arith.addf %361, %360 : vector<8x128xf32>
    %363 = arith.mulf %352, %362 : vector<8x128xf32>
    %364 = arith.truncf %363 : vector<8x128xf32> to vector<8x128xbf16>
    %c1_126 = arith.constant 1 : index
    %c0_127 = arith.constant 0 : index
    %c0_128 = arith.constant 0 : index
    %365 = vector.load %arg7[%c1_126, %c0_127, %c0_128] : memref<2x128x32xbf16, #tpu.memory_space<vmem>>, vector<1x128x32xbf16>
    %366 = vector.shape_cast %365 : vector<1x128x32xbf16> to vector<128x32xbf16>
    %cst_129 = arith.constant dense<0.000000e+00> : vector<8x32xf32>
    %367 = tpu.matmul %364, %366, %cst_129 {dimension_numbers = #tpu.dot_dimension_numbers<[1], [0], [0], [1], [0, 0, 1, 1], [], []>} : vector<8x128xbf16>, vector<128x32xbf16>, vector<8x32xf32> -> vector<8x32xf32>
    %c21 = arith.constant 21 : index
    %c0_130 = arith.constant 0 : index
    %368 = vector.load %arg2[%c21, %c0_130] : memref<32x128xf32, #tpu.memory_space<vmem>>, vector<1x32xf32>
    %369 = vector.broadcast %368 : vector<1x32xf32> to vector<8x32xf32>
    %370 = arith.addf %367, %369 : vector<8x32xf32>
    %371 = arith.addf %319, %370 : vector<8x32xf32>
    %c22 = arith.constant 22 : index
    %c0_131 = arith.constant 0 : index
    %372 = vector.load %arg2[%c22, %c0_131] : memref<32x128xf32, #tpu.memory_space<vmem>>, vector<1x32xf32>
    %c23 = arith.constant 23 : index
    %c0_132 = arith.constant 0 : index
    %373 = vector.load %arg2[%c23, %c0_132] : memref<32x128xf32, #tpu.memory_space<vmem>>, vector<1x32xf32>
    %cst_133 = arith.constant dense<0.000000e+00> : vector<8xf32>
    %374 = vector.multi_reduction <add>, %371, %cst_133 [1] : vector<8x32xf32> to vector<8xf32>
    %375 = vector.shape_cast %374 : vector<8xf32> to vector<8x1xf32>
    %cst_134 = arith.constant 3.200000e+01 : f32
    %376 = vector.broadcast %cst_134 : f32 to vector<8x1xf32>
    %377 = arith.divf %375, %376 : vector<8x1xf32>
    %378 = vector.broadcast %377 : vector<8x1xf32> to vector<8x32xf32>
    %379 = arith.subf %371, %378 : vector<8x32xf32>
    %380 = arith.mulf %379, %379 : vector<8x32xf32>
    %cst_135 = arith.constant dense<0.000000e+00> : vector<8xf32>
    %381 = vector.multi_reduction <add>, %380, %cst_135 [1] : vector<8x32xf32> to vector<8xf32>
    %382 = vector.shape_cast %381 : vector<8xf32> to vector<8x1xf32>
    %cst_136 = arith.constant 3.200000e+01 : f32
    %383 = vector.broadcast %cst_136 : f32 to vector<8x1xf32>
    %384 = arith.divf %382, %383 : vector<8x1xf32>
    %385 = vector.broadcast %377 : vector<8x1xf32> to vector<8x32xf32>
    %386 = arith.subf %371, %385 : vector<8x32xf32>
    %cst_137 = arith.constant 9.99999997E-7 : f32
    %387 = vector.broadcast %cst_137 : f32 to vector<8x1xf32>
    %388 = arith.addf %384, %387 : vector<8x1xf32>
    %389 = math.rsqrt %388 : vector<8x1xf32>
    %390 = vector.broadcast %389 : vector<8x1xf32> to vector<8x32xf32>
    %391 = arith.mulf %386, %390 : vector<8x32xf32>
    %392 = vector.broadcast %372 : vector<1x32xf32> to vector<8x32xf32>
    %393 = arith.mulf %391, %392 : vector<8x32xf32>
    %394 = vector.broadcast %373 : vector<1x32xf32> to vector<8x32xf32>
    %395 = arith.addf %393, %394 : vector<8x32xf32>
    %396 = arith.truncf %395 : vector<8x32xf32> to vector<8x32xbf16>
    %c0_138 = arith.constant 0 : index
    %c0_139 = arith.constant 0 : index
    %397 = vector.load %arg8[%c0_138, %c0_139] : memref<32x128xbf16, #tpu.memory_space<vmem>>, vector<32x128xbf16>
    %cst_140 = arith.constant dense<0.000000e+00> : vector<8x128xf32>
    %398 = tpu.matmul %396, %397, %cst_140 {dimension_numbers = #tpu.dot_dimension_numbers<[1], [0], [0], [1], [0, 0, 1, 1], [], []>} : vector<8x32xbf16>, vector<32x128xbf16>, vector<8x128xf32> -> vector<8x128xf32>
    %c24 = arith.constant 24 : index
    %c0_141 = arith.constant 0 : index
    %399 = vector.load %arg2[%c24, %c0_141] : memref<32x128xf32, #tpu.memory_space<vmem>>, vector<1x128xf32>
    %400 = vector.broadcast %399 : vector<1x128xf32> to vector<8x128xf32>
    %401 = arith.addf %398, %400 : vector<8x128xf32>
    %402 = vector.shape_cast %401 : vector<8x128xf32> to vector<1x8x128xf32>
    %403 = vector.extract_strided_slice %402 {offsets = [0, 0, 0], sizes = [1, 1, 128], strides = [1, 1, 1]} : vector<1x8x128xf32> to vector<1x1x128xf32>
    %c0_142 = arith.constant 0 : index
    %c0_143 = arith.constant 0 : index
    %c0_144 = arith.constant 0 : index
    %404 = vector.load %arg9[%c0_142, %c0_143, %c0_144] : memref<1x1x128xf32, #tpu.memory_space<vmem>>, vector<1x1x128xf32>
    tpu.vector_store %arg9[%c0_142, %c0_143, %c0_144], %403 {strides = array<i32>} : memref<1x1x128xf32, #tpu.memory_space<vmem>>, vector<1x1x128xf32>,
    return
  }
  func.func @transform_0(%arg0: i32) -> (i32, i32, i32) {
    %c0_i32 = arith.constant 0 : i32
    %c0_i32_0 = arith.constant 0 : i32
    %c0_i32_1 = arith.constant 0 : i32
    return %arg0, %c0_i32, %c0_i32_0 : i32, i32, i32
  }
  func.func @transform_1(%arg0: i32) -> (i32, i32) {
    %c0_i32 = arith.constant 0 : i32
    %c0_i32_0 = arith.constant 0 : i32
    %c0_i32_1 = arith.constant 0 : i32
    return %c0_i32, %c0_i32_0 : i32, i32
  }
  func.func @transform_2(%arg0: i32) -> (i32, i32) {
    %c0_i32 = arith.constant 0 : i32
    %c0_i32_0 = arith.constant 0 : i32
    %c0_i32_1 = arith.constant 0 : i32
    return %c0_i32, %c0_i32_0 : i32, i32
  }
  func.func @transform_3(%arg0: i32) -> (i32, i32, i32) {
    %c0_i32 = arith.constant 0 : i32
    %c0_i32_0 = arith.constant 0 : i32
    %c0_i32_1 = arith.constant 0 : i32
    %c0_i32_2 = arith.constant 0 : i32
    return %c0_i32, %c0_i32_0, %c0_i32_1 : i32, i32, i32
  }
  func.func @transform_4(%arg0: i32) -> (i32, i32, i32) {
    %c0_i32 = arith.constant 0 : i32
    %c0_i32_0 = arith.constant 0 : i32
    %c0_i32_1 = arith.constant 0 : i32
    %c0_i32_2 = arith.constant 0 : i32
    return %c0_i32, %c0_i32_0, %c0_i32_1 : i32, i32, i32
  }
  func.func @transform_5(%arg0: i32) -> (i32, i32, i32) {
    %c0_i32 = arith.constant 0 : i32
    %c0_i32_0 = arith.constant 0 : i32
    %c0_i32_1 = arith.constant 0 : i32
    %c0_i32_2 = arith.constant 0 : i32
    return %c0_i32, %c0_i32_0, %c0_i32_1 : i32, i32, i32
  }
  func.func @transform_6(%arg0: i32) -> (i32, i32, i32) {
    %c0_i32 = arith.constant 0 : i32
    %c0_i32_0 = arith.constant 0 : i32
    %c0_i32_1 = arith.constant 0 : i32
    %c0_i32_2 = arith.constant 0 : i32
    return %c0_i32, %c0_i32_0, %c0_i32_1 : i32, i32, i32
  }
  func.func @transform_7(%arg0: i32) -> (i32, i32) {
    %c0_i32 = arith.constant 0 : i32
    %c0_i32_0 = arith.constant 0 : i32
    %c0_i32_1 = arith.constant 0 : i32
    return %c0_i32, %c0_i32_0 : i32, i32
  }
  func.func @transform_8(%arg0: i32) -> (i32, i32, i32) {
    %c0_i32 = arith.constant 0 : i32
    %c0_i32_0 = arith.constant 0 : i32
    %c0_i32_1 = arith.constant 0 : i32
    return %arg0, %c0_i32, %c0_i32_0 : i32, i32, i32
  }
}

</mosaic_0001>

<llo_original>
// kernel: food_classifier_forward.1
$region0: #{food_classifier_forward.1}
  #allocation0 [shape = 'u32[]', space=smem, size = 0x4, offset = 0x4, fixed_abs, tag = 'smem constant byte address 0x4 - core index']
  #allocation1 [shape = 'u32[144,128]{1,0:T(1,128)}', space=vmem, size = 0x12000, scoped, tag = 'internal scratch']
  #allocation2 [shape = 'f32[1,8,32]{2,1,0:T(8,128)}', space=vmem, size = 0x1000, scoped, tag = 'scratch operand']
  %s0 = inlined_call_operand.vmem [shape: bf16[2,4,768], index: 0, kind: input, shape index: {}]
  %s1 = inlined_call_operand.vmem [shape: f32[32,128], index: 1, kind: input, shape index: {}]
  %s2 = inlined_call_operand.vmem [shape: bf16[768,32], index: 2, kind: input, shape index: {}]
  %s3 = inlined_call_operand.vmem [shape: bf16[2,32,96], index: 3, kind: input, shape index: {}]
  %s4 = inlined_call_operand.vmem [shape: bf16[2,32,32], index: 4, kind: input, shape index: {}]
  %s5 = inlined_call_operand.vmem [shape: bf16[2,32,128], index: 5, kind: input, shape index: {}]
  %s6 = inlined_call_operand.vmem [shape: bf16[2,128,32], index: 6, kind: input, shape index: {}]
  %s7 = inlined_call_operand.vmem [shape: bf16[32,128], index: 7, kind: input, shape index: {}]
  %s8 = inlined_call_operand.hbm [shape: f32[2,1,128], index: 8, kind: output, shape index: {}]
  %s9 = sld [smem:[#allocation0]]
  $region65: #{food_classifier_forward.1} parent=0
    _
  %s11 = ssub.s32 1, %s9
  %s12 = scalar_select 0, %s11, %s9
  $region1: #{food_classifier_forward.1} parent=0
    #allocation3 [shape = 'u8[1024]{0}', space=vmem, size = 0x400, scoped, tag = 'output window, operand 0']
    #allocation4 [shape = 's32[2]{0}', space=sflag, size = 0x8, scoped, tag = 'scoped memory for food_classifier_forward.1']
    %13 = vsyncpa [#allocation4], 0
    %s14 = scalar_lea.sflag [#allocation4], 1
    %15 = vsyncpa %s14, 0
    loop: start=0, step=1, limit=4
    $region2: #{food_classifier_forward.1} parent=1 // loop_pre_header
      _
    $region3: #{food_classifier_forward.1} parent=1 // loop_header
      %s17 = sphi 0, %s21
      %p18 = scmp.ge.s32.totalorder %s17, 4
      %s27 = sphi 0, %s29
      %s30 = sphi 0, %s27
      %s31 = sphi 0, %s30
      %s47 = sphi 0, %s31
      %s51 = sphi 0, %s51
      %s53 = sphi 0, %s51
      %s54 = sphi 0, %s53
      %s68 = sphi 0, %s54
      %s72 = sphi 0, %s72
      %s74 = sphi 0, %s72
      %s75 = sphi 0, %s74
      %s89 = sphi 0, %s75
      %s93 = sphi 0, %s93
      %s95 = sphi 0, %s93
      %s96 = sphi 0, %s95
      %s110 = sphi 0, %s96
      %s114 = sphi 0, %s114
      %s116 = sphi 0, %s114
      %s117 = sphi 0, %s116
      %s131 = sphi 0, %s117
      %s135 = sphi 0, %s135
      %s137 = sphi 0, %s135
      %s138 = sphi 0, %s137
      %s152 = sphi 0, %s138
      %s156 = sphi 0, %s156
      %s158 = sphi 0, %s156
      %s159 = sphi 0, %s158
      %s173 = sphi 0, %s159
      %s177 = sphi 0, %s177
      %s179 = sphi 0, %s177
      %s180 = sphi 0, %s179
      %s194 = sphi 0, %s180
      %s200 = sphi 0, %s202
      %s203 = sphi 0, %s200
      %s204 = sphi 0, %s203
      %s220 = sphi 0, %s204
    $region4: #{food_classifier_forward.1} parent=1 // loop_header_branch
      %20 = sbr.rel (%p18) target = $region8
    $region5: #{food_classifier_forward.1} parent=1 // loop_body
      %s22 = ssub.s32 %s17, 1
      %s23 = ssub.s32 %s17, 2
      %s24 = sadd.s32 %s17, 1
      %s25 = ssub.s32 %s17, %s24
      %p26 = scmp.eq.s32.totalorder %s25, 0
      %s28 = sadd.s32 %s27, 1
      %s29 = scalar_select %p26, %s27, %s28
      %p32 = pneg %p26
      %p33 = scmp.eq.s32.totalorder %s17, 1
      %p34 = por %p32, %p33
      %p35 = scmp.ne.s32.totalorder %s27, %s30
      %p36 = scmp.eq.s32.totalorder %s17, 0
      %p37 = por %p35, %p36
      %p38 = scmp.ne.s32.totalorder %s27, %s30
      %p39 = scmp.eq.s32.totalorder %s22, 1
      %p40 = por %p38, %p39
      %p41 = scmp.ne.s32.totalorder %s30, %s31
      %p42 = scmp.eq.s32.totalorder %s22, 0
      %p43 = por %p41, %p42
      %p44 = scmp.ne.s32.totalorder %s30, %s31
      %p45 = scmp.eq.s32.totalorder %s23, 1
      %p46 = por %p44, %p45
      %p48 = scmp.ne.s32.totalorder %s31, %s47
      %p49 = scmp.eq.s32.totalorder %s23, 0
      %p50 = por %p48, %p49
      %s52 = sadd.s32 %s51, 1
      %p55 = scmp.eq.s32.totalorder %s17, 1
      %p56 = scmp.ne.s32.totalorder %s51, %s53
      %p57 = scmp.eq.s32.totalorder %s17, 0
      %p58 = por %p56, %p57
      %p59 = scmp.ne.s32.totalorder %s51, %s53
      %p60 = scmp.eq.s32.totalorder %s22, 1
      %p61 = por %p59, %p60
      %p62 = scmp.ne.s32.totalorder %s53, %s54
      %p63 = scmp.eq.s32.totalorder %s22, 0
      %p64 = por %p62, %p63
      %p65 = scmp.ne.s32.totalorder %s53, %s54
      %p66 = scmp.eq.s32.totalorder %s23, 1
      %p67 = por %p65, %p66
      %p69 = scmp.ne.s32.totalorder %s54, %s68
      %p70 = scmp.eq.s32.totalorder %s23, 0
      %p71 = por %p69, %p70
      %s73 = sadd.s32 %s72, 1
      %p76 = scmp.eq.s32.totalorder %s17, 1
      %p77 = scmp.ne.s32.totalorder %s72, %s74
      %p78 = scmp.eq.s32.totalorder %s17, 0
      %p79 = por %p77, %p78
      %p80 = scmp.ne.s32.totalorder %s72, %s74
      %p81 = scmp.eq.s32.totalorder %s22, 1
      %p82 = por %p80, %p81
      %p83 = scmp.ne.s32.totalorder %s74, %s75
      %p84 = scmp.eq.s32.totalorder %s22, 0
      %p85 = por %p83, %p84
      %p86 = scmp.ne.s32.totalorder %s74, %s75
      %p87 = scmp.eq.s32.totalorder %s23, 1
      %p88 = por %p86, %p87
      %p90 = scmp.ne.s32.totalorder %s75, %s89
      %p91 = scmp.eq.s32.totalorder %s23, 0
      %p92 = por %p90, %p91
      %s94 = sadd.s32 %s93, 1
      %p97 = scmp.eq.s32.totalorder %s17, 1
      %p98 = scmp.ne.s32.totalorder %s93, %s95
      %p99 = scmp.eq.s32.totalorder %s17, 0
      %p100 = por %p98, %p99
      %p101 = scmp.ne.s32.totalorder %s93, %s95
      %p102 = scmp.eq.s32.totalorder %s22, 1
      %p103 = por %p101, %p102
      %p104 = scmp.ne.s32.totalorder %s95, %s96
      %p105 = scmp.eq.s32.totalorder %s22, 0
      %p106 = por %p104, %p105
      %p107 = scmp.ne.s32.totalorder %s95, %s96
      %p108 = scmp.eq.s32.totalorder %s23, 1
      %p109 = por %p107, %p108
      %p111 = scmp.ne.s32.totalorder %s96, %s110
      %p112 = scmp.eq.s32.totalorder %s23, 0
      %p113 = por %p111, %p112
      %s115 = sadd.s32 %s114, 1
      %p118 = scmp.eq.s32.totalorder %s17, 1
      %p119 = scmp.ne.s32.totalorder %s114, %s116
      %p120 = scmp.eq.s32.totalorder %s17, 0
      %p121 = por %p119, %p120
      %p122 = scmp.ne.s32.totalorder %s114, %s116
      %p123 = scmp.eq.s32.totalorder %s22, 1
      %p124 = por %p122, %p123
      %p125 = scmp.ne.s32.totalorder %s116, %s117
      %p126 = scmp.eq.s32.totalorder %s22, 0
      %p127 = por %p125, %p126
      %p128 = scmp.ne.s32.totalorder %s116, %s117
      %p129 = scmp.eq.s32.totalorder %s23, 1
      %p130 = por %p128, %p129
      %p132 = scmp.ne.s32.totalorder %s117, %s131
      %p133 = scmp.eq.s32.totalorder %s23, 0
      %p134 = por %p132, %p133
      %s136 = sadd.s32 %s135, 1
      %p139 = scmp.eq.s32.totalorder %s17, 1
      %p140 = scmp.ne.s32.totalorder %s135, %s137
      %p141 = scmp.eq.s32.totalorder %s17, 0
      %p142 = por %p140, %p141
      %p143 = scmp.ne.s32.totalorder %s135, %s137
      %p144 = scmp.eq.s32.totalorder %s22, 1
      %p145 = por %p143, %p144
      %p146 = scmp.ne.s32.totalorder %s137, %s138
      %p147 = scmp.eq.s32.totalorder %s22, 0
      %p148 = por %p146, %p147
      %p149 = scmp.ne.s32.totalorder %s137, %s138
      %p150 = scmp.eq.s32.totalorder %s23, 1
      %p151 = por %p149, %p150
      %p153 = scmp.ne.s32.totalorder %s138, %s152
      %p154 = scmp.eq.s32.totalorder %s23, 0
      %p155 = por %p153, %p154
      %s157 = sadd.s32 %s156, 1
      %p160 = scmp.eq.s32.totalorder %s17, 1
      %p161 = scmp.ne.s32.totalorder %s156, %s158
      %p162 = scmp.eq.s32.totalorder %s17, 0
      %p163 = por %p161, %p162
      %p164 = scmp.ne.s32.totalorder %s156, %s158
      %p165 = scmp.eq.s32.totalorder %s22, 1
      %p166 = por %p164, %p165
      %p167 = scmp.ne.s32.totalorder %s158, %s159
      %p168 = scmp.eq.s32.totalorder %s22, 0
      %p169 = por %p167, %p168
      %p170 = scmp.ne.s32.totalorder %s158, %s159
      %p171 = scmp.eq.s32.totalorder %s23, 1
      %p172 = por %p170, %p171
      %p174 = scmp.ne.s32.totalorder %s159, %s173
      %p175 = scmp.eq.s32.totalorder %s23, 0
      %p176 = por %p174, %p175
      %s178 = sadd.s32 %s177, 1
      %p181 = scmp.eq.s32.totalorder %s17, 1
      %p182 = scmp.ne.s32.totalorder %s177, %s179
      %p183 = scmp.eq.s32.totalorder %s17, 0
      %p184 = por %p182, %p183
      %p185 = scmp.ne.s32.totalorder %s177, %s179
      %p186 = scmp.eq.s32.totalorder %s22, 1
      %p187 = por %p185, %p186
      %p188 = scmp.ne.s32.totalorder %s179, %s180
      %p189 = scmp.eq.s32.totalorder %s22, 0
      %p190 = por %p188, %p189
      %p191 = scmp.ne.s32.totalorder %s179, %s180
      %p192 = scmp.eq.s32.totalorder %s23, 1
      %p193 = por %p191, %p192
      %p195 = scmp.ne.s32.totalorder %s180, %s194
      %p196 = scmp.eq.s32.totalorder %s23, 0
      %p197 = por %p195, %p196
      %s198 = ssub.s32 %s17, %s24
      %p199 = scmp.eq.s32.totalorder %s198, 0
      %s201 = sadd.s32 %s200, 1
      %s202 = scalar_select %p199, %s200, %s201
      %p205 = pneg %p199
      %p206 = scmp.eq.s32.totalorder %s17, 1
      %p207 = por %p205, %p206
      %p208 = scmp.ne.s32.totalorder %s200, %s203
      %p209 = scmp.eq.s32.totalorder %s17, 0
      %p210 = por %p208, %p209
      %p211 = scmp.ne.s32.totalorder %s200, %s203
      %p212 = scmp.eq.s32.totalorder %s22, 1
      %p213 = por %p211, %p212
      %p214 = scmp.ne.s32.totalorder %s203, %s204
      %p215 = scmp.eq.s32.totalorder %s22, 0
      %p216 = por %p214, %p215
      %p217 = scmp.ne.s32.totalorder %s203, %s204
      %p218 = scmp.eq.s32.totalorder %s23, 1
      %p219 = por %p217, %p218
      %p221 = scmp.ne.s32.totalorder %s204, %s220
      %p222 = scmp.eq.s32.totalorder %s23, 0
      %p223 = por %p221, %p222
      %p224 = scmp.le.s32.totalorder 1, %s17
      %p225 = scmp.lt.s32.totalorder %s17, 3
      %p226 = pnand %p224, %p225
      %p227 = pneg %p226
      // Predicated region
      $region9: #{food_classifier_forward.1} parent=5 // pred_check
        _
      $region10: #{food_classifier_forward.1} parent=5 // pred_check_branch
        %229 = sbr.rel (%p226) target = $region12
      $region11: #{food_classifier_forward.1} parent=5 // pred_region
        %s230 = ssub.s32 %s17, 1
        // Predicated region
        $region13: #{food_classifier_forward.1} parent=11 // pred_check
          %p231 = pneg %p64
        $region14: #{food_classifier_forward.1} parent=11 // pred_check_branch
          %233 = sbr.rel (%p231) target = $region16
        $region15: #{food_classifier_forward.1} parent=11 // pred_region
          _
        $region16: #{food_classifier_forward.1} parent=11 // pred_fallthru
          _
        // Predicated region
        $region17: #{food_classifier_forward.1} parent=11 // pred_check
          %p234 = pneg %p85
        $region18: #{food_classifier_forward.1} parent=11 // pred_check_branch
          %236 = sbr.rel (%p234) target = $region20
        $region19: #{food_classifier_forward.1} parent=11 // pred_region
          _
        $region20: #{food_classifier_forward.1} parent=11 // pred_fallthru
          _
        // Predicated region
        $region21: #{food_classifier_forward.1} parent=11 // pred_check
          %p237 = pneg %p106
        $region22: #{food_classifier_forward.1} parent=11 // pred_check_branch
          %239 = sbr.rel (%p237) target = $region24
        $region23: #{food_classifier_forward.1} parent=11 // pred_region
          _
        $region24: #{food_classifier_forward.1} parent=11 // pred_fallthru
          _
        // Predicated region
        $region25: #{food_classifier_forward.1} parent=11 // pred_check
          %p240 = pneg %p127
        $region26: #{food_classifier_forward.1} parent=11 // pred_check_branch
          %242 = sbr.rel (%p240) target = $region28
        $region27: #{food_classifier_forward.1} parent=11 // pred_region
          _
        $region28: #{food_classifier_forward.1} parent=11 // pred_fallthru
          _
        // Predicated region
        $region29: #{food_classifier_forward.1} parent=11 // pred_check
          %p243 = pneg %p148
        $region30: #{food_classifier_forward.1} parent=11 // pred_check_branch
          %245 = sbr.rel (%p243) target = $region32
        $region31: #{food_classifier_forward.1} parent=11 // pred_region
          _
        $region32: #{food_classifier_forward.1} parent=11 // pred_fallthru
          _
        // Predicated region
        $region33: #{food_classifier_forward.1} parent=11 // pred_check
          %p246 = pneg %p169
        $region34: #{food_classifier_forward.1} parent=11 // pred_check_branch
          %248 = sbr.rel (%p246) target = $region36
        $region35: #{food_classifier_forward.1} parent=11 // pred_region
          _
        $region36: #{food_classifier_forward.1} parent=11 // pred_fallthru
          _
        // Predicated region
        $region37: #{food_classifier_forward.1} parent=11 // pred_check
          %p249 = pneg %p190
        $region38: #{food_classifier_forward.1} parent=11 // pred_check_branch
          %251 = sbr.rel (%p249) target = $region40
        $region39: #{food_classifier_forward.1} parent=11 // pred_region
          _
        $region40: #{food_classifier_forward.1} parent=11 // pred_fallthru
          _
      $region12: #{food_classifier_forward.1} parent=5 // pred_fallthru
        _
      %p252 = scmp.lt.s32.totalorder %s17, 2
      // Predicated region
      $region41: #{food_classifier_forward.1} parent=5 // pred_check
        %p253 = pneg %p252
      $region42: #{food_classifier_forward.1} parent=5 // pred_check_branch
        %255 = sbr.rel (%p253) target = $region44
      $region43: #{food_classifier_forward.1} parent=5 // pred_region
        // Predicated region
        $region45: #{food_classifier_forward.1} parent=43 // pred_check
          %p256 = pneg %p37
        $region46: #{food_classifier_forward.1} parent=43 // pred_check_branch
          %258 = sbr.rel (%p256) target = $region48
        $region47: #{food_classifier_forward.1} parent=43 // pred_region
          %p259 = scmp.lt.s32.totalorder %s17, 1
          %s260 = scalar_select %p259, %s17, 1
          %s261 = smul.addr %s260, 6
          %s262 = smul.addr %s261, 2
          %s263 = scalar_lea.vmem %s0, %s262
        $region48: #{food_classifier_forward.1} parent=43 // pred_fallthru
          _
      $region44: #{food_classifier_forward.1} parent=5 // pred_fallthru
        _
      %p264 = scmp.le.s32.totalorder 1, %s17
      %p265 = scmp.lt.s32.totalorder %s17, 3
      %p266 = pnand %p264, %p265
      %p267 = pneg %p266
      // Predicated region
      $region49: #{food_classifier_forward.1} parent=5 // pred_check
        _
      $region50: #{food_classifier_forward.1} parent=5 // pred_check_branch
        %269 = sbr.rel (%p266) target = $region52
      $region51: #{food_classifier_forward.1} parent=5 // pred_region
        %s270 = ssub.s32 %s17, 1
        %p271 = scmp.lt.s32.totalorder %s22, 1
        %s272 = scalar_select %p271, %s22, 1
        %s273 = smul.addr %s272, 6
        %s274 = smul.addr %s273, 2
        %s275 = scalar_lea.vmem %s0, %s274
        %p276 = pneg %p43
        %p277 = pneg %p40
        %p278 = pneg %p64
        %p279 = pneg %p61
        %p280 = pneg %p85
        %p281 = pneg %p82
        %p282 = pneg %p106
        %p283 = pneg %p103
        %p284 = pneg %p127
        %p285 = pneg %p124
        %p286 = pneg %p148
        %p287 = pneg %p145
        %p288 = pneg %p169
        %p289 = pneg %p166
        %p290 = pneg %p190
        %p291 = pneg %p187
        %p292 = pneg %p216
        %p293 = pneg %p213
        %s294 = sand.u32 %s203, 1
        %s295 = scalar_lea.sflag [#allocation4], %s294
        %s296 = sand.u32 %s203, 1
        %s297 = scalar_lea.vmem [#allocation3], %s296
        %p298 = scmp.lt.s32.totalorder %s22, 1
        %s299 = scalar_select %p298, %s22, 1
        %s300 = smul.addr %s299, 6
        %s301 = smul.addr %s300, 2
        %s302 = scalar_lea.vmem %s0, %s301
        %v304 = vld [vmem:[%s302] sm:$0xff]
        %v305 = vld [vmem:[%s302 + $0x8] sm:$0xf]
        %v306 = vld [vmem:[%s2] sm:$0xf]
        %v307 = vld [vmem:[%s2 + $0x4] sm:$0xf]
        %v308 = vld [vmem:[%s2 + $0x8] sm:$0xf]
        %v309 = vld [vmem:[%s2 + $0xc] sm:$0xf]
        %v310 = vld [vmem:[%s2 + $0x10] sm:$0xf]
        %v311 = vld [vmem:[%s2 + $0x14] sm:$0xf]
        %v312 = vld [vmem:[%s2 + $0x18] sm:$0xf]
        %v313 = vld [vmem:[%s2 + $0x1c] sm:$0xf]
        %v314 = vld [vmem:[%s2 + $0x20] sm:$0xf]
        %v315 = vld [vmem:[%s2 + $0x24] sm:$0xf]
        %v316 = vld [vmem:[%s2 + $0x28] sm:$0xf]
        %v317 = vld [vmem:[%s2 + $0x2c] sm:$0xf]
        %v318 = vld [vmem:[%s2 + $0x30] sm:$0xf]
        %v319 = vld [vmem:[%s2 + $0x34] sm:$0xf]
        %v320 = vld [vmem:[%s2 + $0x38] sm:$0xf]
        %v321 = vld [vmem:[%s2 + $0x3c] sm:$0xf]
        %v322 = vld [vmem:[%s2 + $0x40] sm:$0xf]
        %v323 = vld [vmem:[%s2 + $0x44] sm:$0xf]
        %v324 = vld [vmem:[%s2 + $0x48] sm:$0xf]
        %v325 = vld [vmem:[%s2 + $0x4c] sm:$0xf]
        %v326 = vld [vmem:[%s2 + $0x50] sm:$0xf]
        %v327 = vld [vmem:[%s2 + $0x54] sm:$0xf]
        %v328 = vld [vmem:[%s2 + $0x58] sm:$0xf]
        %v329 = vld [vmem:[%s2 + $0x5c] sm:$0xf]
        %v330 = vld [vmem:[%s2 + $0x60] sm:$0xf]
        %v331 = vld [vmem:[%s2 + $0x64] sm:$0xf]
        %v332 = vld [vmem:[%s2 + $0x68] sm:$0xf]
        %v333 = vld [vmem:[%s2 + $0x6c] sm:$0xf]
        %v334 = vld [vmem:[%s2 + $0x70] sm:$0xf]
        %v335 = vld [vmem:[%s2 + $0x74] sm:$0xf]
        %v336 = vld [vmem:[%s2 + $0x78] sm:$0xf]
        %v337 = vld [vmem:[%s2 + $0x7c] sm:$0xf]
        %v338 = vld [vmem:[%s2 + $0x80] sm:$0xf]
        %v339 = vld [vmem:[%s2 + $0x84] sm:$0xf]
        %v340 = vld [vmem:[%s2 + $0x88] sm:$0xf]
        %v341 = vld [vmem:[%s2 + $0x8c] sm:$0xf]
        %v342 = vld [vmem:[%s2 + $0x90] sm:$0xf]
        %v343 = vld [vmem:[%s2 + $0x94] sm:$0xf]
        %v344 = vld [vmem:[%s2 + $0x98] sm:$0xf]
        %v345 = vld [vmem:[%s2 + $0x9c] sm:$0xf]
        %v346 = vld [vmem:[%s2 + $0xa0] sm:$0xf]
        %v347 = vld [vmem:[%s2 + $0xa4] sm:$0xf]
        %v348 = vld [vmem:[%s2 + $0xa8] sm:$0xf]
        %v349 = vld [vmem:[%s2 + $0xac] sm:$0xf]
        %v350 = vld [vmem:[%s2 + $0xb0] sm:$0xf]
        %v351 = vld [vmem:[%s2 + $0xb4] sm:$0xf]
        %v352 = vld [vmem:[%s2 + $0xb8] sm:$0xf]
        %v353 = vld [vmem:[%s2 + $0xbc] sm:$0xf]
        %v354 = vld [vmem:[%s2 + $0xc0] sm:$0xf]
        %v355 = vld [vmem:[%s2 + $0xc4] sm:$0xf]
        %v356 = vld [vmem:[%s2 + $0xc8] sm:$0xf]
        %v357 = vld [vmem:[%s2 + $0xcc] sm:$0xf]
        %v358 = vld [vmem:[%s2 + $0xd0] sm:$0xf]
        %v359 = vld [vmem:[%s2 + $0xd4] sm:$0xf]
        %v360 = vld [vmem:[%s2 + $0xd8] sm:$0xf]
        %v361 = vld [vmem:[%s2 + $0xdc] sm:$0xf]
        %v362 = vld [vmem:[%s2 + $0xe0] sm:$0xf]
        %v363 = vld [vmem:[%s2 + $0xe4] sm:$0xf]
        %v364 = vld [vmem:[%s2 + $0xe8] sm:$0xf]
        %v365 = vld [vmem:[%s2 + $0xec] sm:$0xf]
        %v366 = vld [vmem:[%s2 + $0xf0] sm:$0xf]
        %v367 = vld [vmem:[%s2 + $0xf4] sm:$0xf]
        %v368 = vld [vmem:[%s2 + $0xf8] sm:$0xf]
        %v369 = vld [vmem:[%s2 + $0xfc] sm:$0xf]
        %v370 = vld [vmem:[%s2 + $0x100] sm:$0xf]
        %v371 = vld [vmem:[%s2 + $0x104] sm:$0xf]
        %v372 = vld [vmem:[%s2 + $0x108] sm:$0xf]
        %v373 = vld [vmem:[%s2 + $0x10c] sm:$0xf]
        %v374 = vld [vmem:[%s2 + $0x110] sm:$0xf]
        %v375 = vld [vmem:[%s2 + $0x114] sm:$0xf]
        %v376 = vld [vmem:[%s2 + $0x118] sm:$0xf]
        %v377 = vld [vmem:[%s2 + $0x11c] sm:$0xf]
        %v378 = vld [vmem:[%s2 + $0x120] sm:$0xf]
        %v379 = vld [vmem:[%s2 + $0x124] sm:$0xf]
        %v380 = vld [vmem:[%s2 + $0x128] sm:$0xf]
        %v381 = vld [vmem:[%s2 + $0x12c] sm:$0xf]
        %v382 = vld [vmem:[%s2 + $0x130] sm:$0xf]
        %v383 = vld [vmem:[%s2 + $0x134] sm:$0xf]
        %v384 = vld [vmem:[%s2 + $0x138] sm:$0xf]
        %v385 = vld [vmem:[%s2 + $0x13c] sm:$0xf]
        %v386 = vld [vmem:[%s2 + $0x140] sm:$0xf]
        %v387 = vld [vmem:[%s2 + $0x144] sm:$0xf]
        %v388 = vld [vmem:[%s2 + $0x148] sm:$0xf]
        %v389 = vld [vmem:[%s2 + $0x14c] sm:$0xf]
        %v390 = vld [vmem:[%s2 + $0x150] sm:$0xf]
        %v391 = vld [vmem:[%s2 + $0x154] sm:$0xf]
        %v392 = vld [vmem:[%s2 + $0x158] sm:$0xf]
        %v393 = vld [vmem:[%s2 + $0x15c] sm:$0xf]
        %v394 = vld [vmem:[%s2 + $0x160] sm:$0xf]
        %v395 = vld [vmem:[%s2 + $0x164] sm:$0xf]
        %v396 = vld [vmem:[%s2 + $0x168] sm:$0xf]
        %v397 = vld [vmem:[%s2 + $0x16c] sm:$0xf]
        %v398 = vld [vmem:[%s2 + $0x170] sm:$0xf]
        %v399 = vld [vmem:[%s2 + $0x174] sm:$0xf]
        %v400 = vld [vmem:[%s2 + $0x178] sm:$0xf]
        %v401 = vld [vmem:[%s2 + $0x17c] sm:$0xf]
        %v402 = vld [vmem:[%s1] sm:$0x1]
        %v403 = vlaneseq
        %v404 = vshrl.u32 %v403, 7
        %v405 = vsub.s32 0, %v404
        %v406 = vrot.slane %v402, %v405
        %v409 = vcombine.high %v304, %v304
        %v411 = vunpack.c.l.s4 1983009808
        %v412 = vunpack.c.0.s8 %v411
        %v413 = vlaneseq
        %v414 = vshrl.u32 %v413, 7
        %v415 = vsub.s32 %v412, %v414
        %v416 = vrot.slane %v304, %v415
        %v418 = vunpack.c.l.s4 1983009808
        %v419 = vunpack.c.0.s8 %v418
        %v420 = vlaneseq
        %v421 = vshrl.u32 %v420, 7
        %v422 = vsub.s32 %v419, %v421
        %v423 = vrot.slane %v409, %v422
        %v424 = vcombine.high %v416, %v416
        %v425 = vcombine.high %v423, %v423
        %v427 = vunpack.c.l.s4 1983009808
        %v428 = vunpack.c.0.s8 %v427
        %v429 = vlaneseq
        %v430 = vshrl.u32 %v429, 7
        %v431 = vsub.s32 %v428, %v430
        %v432 = vrot.slane %v305, %v431
        %v433 = vcombine.high %v432, %v432
        %v536 = vunpack.c.l.b16 %v306
        %v537 = vunpack.c.l.b16 %v307
        %v538 = vunpack.c.l.b16 %v308
        %v539 = vunpack.c.l.b16 %v309
        %v540 = vunpack.c.l.b16 %v310
        %v541 = vunpack.c.l.b16 %v311
        %v542 = vunpack.c.l.b16 %v312
        %v543 = vunpack.c.l.b16 %v313
        %v544 = vunpack.c.l.b16 %v314
        %v545 = vunpack.c.l.b16 %v315
        %v546 = vunpack.c.l.b16 %v316
        %v547 = vunpack.c.l.b16 %v317
        %v548 = vunpack.c.l.b16 %v318
        %v549 = vunpack.c.l.b16 %v319
        %v550 = vunpack.c.l.b16 %v320
        %v551 = vunpack.c.l.b16 %v321
        %v552 = vunpack.c.l.b16 %v322
        %v553 = vunpack.c.l.b16 %v323
        %v554 = vunpack.c.l.b16 %v324
        %v555 = vunpack.c.l.b16 %v325
        %v556 = vunpack.c.l.b16 %v326
        %v557 = vunpack.c.l.b16 %v327
        %v558 = vunpack.c.l.b16 %v328
        %v559 = vunpack.c.l.b16 %v329
        %v560 = vunpack.c.l.b16 %v330
        %v561 = vunpack.c.l.b16 %v331
        %v562 = vunpack.c.l.b16 %v332
        %v563 = vunpack.c.l.b16 %v333
        %v564 = vunpack.c.l.b16 %v334
        %v565 = vunpack.c.l.b16 %v335
        %v566 = vunpack.c.l.b16 %v336
        %v567 = vunpack.c.l.b16 %v337
        %v568 = vunpack.c.l.b16 %v338
        %v569 = vunpack.c.l.b16 %v339
        %v570 = vunpack.c.l.b16 %v340
        %v571 = vunpack.c.l.b16 %v341
        %v572 = vunpack.c.l.b16 %v342
        %v573 = vunpack.c.l.b16 %v343
        %v574 = vunpack.c.l.b16 %v344
        %v575 = vunpack.c.l.b16 %v345
        %v576 = vunpack.c.l.b16 %v346
        %v577 = vunpack.c.l.b16 %v347
        %v578 = vunpack.c.l.b16 %v348
        %v579 = vunpack.c.l.b16 %v349
        %v580 = vunpack.c.l.b16 %v350
        %v581 = vunpack.c.l.b16 %v351
        %v582 = vunpack.c.l.b16 %v352
        %v583 = vunpack.c.l.b16 %v353
        %v584 = vunpack.c.l.b16 %v354
        %v585 = vunpack.c.l.b16 %v355
        %v586 = vunpack.c.l.b16 %v356
        %v587 = vunpack.c.l.b16 %v357
        %v588 = vunpack.c.l.b16 %v358
        %v589 = vunpack.c.l.b16 %v359
        %v590 = vunpack.c.l.b16 %v360
        %v591 = vunpack.c.l.b16 %v361
        %v592 = vunpack.c.l.b16 %v362
        %v593 = vunpack.c.l.b16 %v363
        %v594 = vunpack.c.l.b16 %v364
        %v595 = vunpack.c.l.b16 %v365
        %v596 = vunpack.c.l.b16 %v366
        %v597 = vunpack.c.l.b16 %v367
        %v598 = vunpack.c.l.b16 %v368
        %v599 = vunpack.c.l.b16 %v369
        %v600 = vunpack.c.l.b16 %v370
        %v601 = vunpack.c.l.b16 %v371
        %v602 = vunpack.c.l.b16 %v372
        %v603 = vunpack.c.l.b16 %v373
        %v604 = vunpack.c.l.b16 %v374
        %v605 = vunpack.c.l.b16 %v375
        %v606 = vunpack.c.l.b16 %v376
        %v607 = vunpack.c.l.b16 %v377
        %v608 = vunpack.c.l.b16 %v378
        %v609 = vunpack.c.l.b16 %v379
        %v610 = vunpack.c.l.b16 %v380
        %v611 = vunpack.c.l.b16 %v381
        %v612 = vunpack.c.l.b16 %v382
        %v613 = vunpack.c.l.b16 %v383
        %v614 = vunpack.c.l.b16 %v384
        %v615 = vunpack.c.l.b16 %v385
        %v616 = vunpack.c.l.b16 %v386
        %v617 = vunpack.c.l.b16 %v387
        %v618 = vunpack.c.l.b16 %v388
        %v619 = vunpack.c.l.b16 %v389
        %v620 = vunpack.c.l.b16 %v390
        %v621 = vunpack.c.l.b16 %v391
        %v622 = vunpack.c.l.b16 %v392
        %v623 = vunpack.c.l.b16 %v393
        %v624 = vunpack.c.l.b16 %v394
        %v625 = vunpack.c.l.b16 %v395
        %v626 = vunpack.c.l.b16 %v396
        %v627 = vunpack.c.l.b16 %v397
        %v628 = vunpack.c.l.b16 %v398
        %v629 = vunpack.c.l.b16 %v399
        %v630 = vunpack.c.l.b16 %v400
        %v631 = vunpack.c.l.b16 %v401
        %v632 = vpack.c.b16 %v537, %v536
        %v633 = vpack.c.b16 %v539, %v538
        %v634 = vpack.c.b16 %v541, %v540
        %v635 = vpack.c.b16 %v543, %v542
        %v636 = vpack.c.b16 %v545, %v544
        %v637 = vpack.c.b16 %v547, %v546
        %v638 = vpack.c.b16 %v549, %v548
        %v639 = vpack.c.b16 %v551, %v550
        %v640 = vpack.c.b16 %v553, %v552
        %v641 = vpack.c.b16 %v555, %v554
        %v642 = vpack.c.b16 %v557, %v556
        %v643 = vpack.c.b16 %v559, %v558
        %v644 = vpack.c.b16 %v561, %v560
        %v645 = vpack.c.b16 %v563, %v562
        %v646 = vpack.c.b16 %v565, %v564
        %v647 = vpack.c.b16 %v567, %v566
        %v648 = vpack.c.b16 %v569, %v568
        %v649 = vpack.c.b16 %v571, %v570
        %v650 = vpack.c.b16 %v573, %v572
        %v651 = vpack.c.b16 %v575, %v574
        %v652 = vpack.c.b16 %v577, %v576
        %v653 = vpack.c.b16 %v579, %v578
        %v654 = vpack.c.b16 %v581, %v580
        %v655 = vpack.c.b16 %v583, %v582
        %v656 = vpack.c.b16 %v585, %v584
        %v657 = vpack.c.b16 %v587, %v586
        %v658 = vpack.c.b16 %v589, %v588
        %v659 = vpack.c.b16 %v591, %v590
        %v660 = vpack.c.b16 %v593, %v592
        %v661 = vpack.c.b16 %v595, %v594
        %v662 = vpack.c.b16 %v597, %v596
        %v663 = vpack.c.b16 %v599, %v598
        %v664 = vpack.c.b16 %v601, %v600
        %v665 = vpack.c.b16 %v603, %v602
        %v666 = vpack.c.b16 %v605, %v604
        %v667 = vpack.c.b16 %v607, %v606
        %v668 = vpack.c.b16 %v609, %v608
        %v669 = vpack.c.b16 %v611, %v610
        %v670 = vpack.c.b16 %v613, %v612
        %v671 = vpack.c.b16 %v615, %v614
        %v672 = vpack.c.b16 %v617, %v616
        %v673 = vpack.c.b16 %v619, %v618
        %v674 = vpack.c.b16 %v621, %v620
        %v675 = vpack.c.b16 %v623, %v622
        %v676 = vpack.c.b16 %v625, %v624
        %v677 = vpack.c.b16 %v627, %v626
        %v678 = vpack.c.b16 %v629, %v628
        %v679 = vpack.c.b16 %v631, %v630
        %728 = vmatprep.subr.bf16.mxu0 0
        %729 = vmatpush1.bf16.msra.mxu0 %v632
        %730 = vmatprep.subr.bf16.mxu0 0
        %731 = vmatpush1.bf16.msra.mxu0 %v633
        %732 = vmatprep.subr.bf16.mxu0 0
        %733 = vmatpush1.bf16.msra.mxu0 %v634
        %734 = vmatprep.subr.bf16.mxu0 0
        %735 = vmatpush1.bf16.msra.mxu0 %v635
        %736 = vmatprep.subr.bf16.mxu0 0
        %737 = vmatpush1.bf16.msra.mxu0 %v636
        %738 = vmatprep.subr.bf16.mxu0 0
        %739 = vmatpush1.bf16.msra.mxu0 %v637
        %740 = vmatprep.subr.bf16.mxu0 0
        %741 = vmatpush1.bf16.msra.mxu0 %v638
        %742 = vmatprep.subr.bf16.mxu0 0
        %743 = vmatpush1.bf16.msra.mxu0 %v639
        %744 = vmatprep.subr.bf16.mxu0 0
        %745 = vmatpush1.bf16.msra.mxu0 %v640
        %746 = vmatprep.subr.bf16.mxu0 0
        %747 = vmatpush1.bf16.msra.mxu0 %v641
        %748 = vmatprep.subr.bf16.mxu0 0
        %749 = vmatpush1.bf16.msra.mxu0 %v642
        %750 = vmatprep.subr.bf16.mxu0 0
        %751 = vmatpush1.bf16.msra.mxu0 %v643
        %752 = vmatprep.subr.bf16.mxu0 0
        %753 = vmatpush1.bf16.msra.mxu0 %v644
        %754 = vmatprep.subr.bf16.mxu0 0
        %755 = vmatpush1.bf16.msra.mxu0 %v645
        %756 = vmatprep.subr.bf16.mxu0 0
        %757 = vmatpush1.bf16.msra.mxu0 %v646
        %758 = vmatprep.subr.bf16.mxu0 0
        %759 = vmatpush1.bf16.msra.mxu0 %v647
        %760 = vmatprep.mubr.bf16.mxu0 %v424
        %761 = vmatmul.mubr.bf16.gmra.mrb[0].mxu0 %v416
        %v762 = vpop.f32.mrb[0].mxu0
        %v763 = vadd.f32 %v406, %v762
        %v764 = vpop.f32.mrb[0].mxu0
        %v765 = vpop.f32.mrb[0].mxu0
        %v766 = vpop.f32.mrb[0].mxu0
        %767 = vdwg.mxu0
        %768 = vmatprep.subr.bf16.mxu0 0
        %769 = vmatpush1.bf16.msra.mxu0 %v648
        %770 = vmatprep.subr.bf16.mxu0 0
        %771 = vmatpush1.bf16.msra.mxu0 %v649
        %772 = vmatprep.subr.bf16.mxu0 0
        %773 = vmatpush1.bf16.msra.mxu0 %v650
        %774 = vmatprep.subr.bf16.mxu0 0
        %775 = vmatpush1.bf16.msra.mxu0 %v651
        %776 = vmatprep.subr.bf16.mxu0 0
        %777 = vmatpush1.bf16.msra.mxu0 %v652
        %778 = vmatprep.subr.bf16.mxu0 0
        %779 = vmatpush1.bf16.msra.mxu0 %v653
        %780 = vmatprep.subr.bf16.mxu0 0
        %781 = vmatpush1.bf16.msra.mxu0 %v654
        %782 = vmatprep.subr.bf16.mxu0 0
        %783 = vmatpush1.bf16.msra.mxu0 %v655
        %784 = vmatprep.subr.bf16.mxu0 0
        %785 = vmatpush1.bf16.msra.mxu0 %v656
        %786 = vmatprep.subr.bf16.mxu0 0
        %787 = vmatpush1.bf16.msra.mxu0 %v657
        %788 = vmatprep.subr.bf16.mxu0 0
        %789 = vmatpush1.bf16.msra.mxu0 %v658
        %790 = vmatprep.subr.bf16.mxu0 0
        %791 = vmatpush1.bf16.msra.mxu0 %v659
        %792 = vmatprep.subr.bf16.mxu0 0
        %793 = vmatpush1.bf16.msra.mxu0 %v660
        %794 = vmatprep.subr.bf16.mxu0 0
        %795 = vmatpush1.bf16.msra.mxu0 %v661
        %796 = vmatprep.subr.bf16.mxu0 0
        %797 = vmatpush1.bf16.msra.mxu0 %v662
        %798 = vmatprep.subr.bf16.mxu0 0
        %799 = vmatpush1.bf16.msra.mxu0 %v663
        %800 = vmatprep.mubr.bf16.mxu0 %v425
        %801 = vmatmul.mubr.bf16.gmra.mrb[0].mxu0 %v423
        %v802 = vpop.f32.mrb[0].mxu0
        %v803 = vadd.f32 %v763, %v802
        %v804 = vpop.f32.mrb[0].mxu0
        %v805 = vpop.f32.mrb[0].mxu0
        %v806 = vpop.f32.mrb[0].mxu0
        %807 = vdwg.mxu0
        %808 = vmatprep.subr.bf16.mxu0 0
        %809 = vmatpush1.bf16.msra.mxu0 %v664
        %810 = vmatprep.subr.bf16.mxu0 0
        %811 = vmatpush1.bf16.msra.mxu0 %v665
        %812 = vmatprep.subr.bf16.mxu0 0
        %813 = vmatpush1.bf16.msra.mxu0 %v666
        %814 = vmatprep.subr.bf16.mxu0 0
        %815 = vmatpush1.bf16.msra.mxu0 %v667
        %816 = vmatprep.subr.bf16.mxu0 0
        %817 = vmatpush1.bf16.msra.mxu0 %v668
        %818 = vmatprep.subr.bf16.mxu0 0
        %819 = vmatpush1.bf16.msra.mxu0 %v669
        %820 = vmatprep.subr.bf16.mxu0 0
        %821 = vmatpush1.bf16.msra.mxu0 %v670
        %822 = vmatprep.subr.bf16.mxu0 0
        %823 = vmatpush1.bf16.msra.mxu0 %v671
        %824 = vmatprep.subr.bf16.mxu0 0
        %825 = vmatpush1.bf16.msra.mxu0 %v672
        %826 = vmatprep.subr.bf16.mxu0 0
        %827 = vmatpush1.bf16.msra.mxu0 %v673
        %828 = vmatprep.subr.bf16.mxu0 0
        %829 = vmatpush1.bf16.msra.mxu0 %v674
        %830 = vmatprep.subr.bf16.mxu0 0
        %831 = vmatpush1.bf16.msra.mxu0 %v675
        %832 = vmatprep.subr.bf16.mxu0 0
        %833 = vmatpush1.bf16.msra.mxu0 %v676
        %834 = vmatprep.subr.bf16.mxu0 0
        %835 = vmatpush1.bf16.msra.mxu0 %v677
        %836 = vmatprep.subr.bf16.mxu0 0
        %837 = vmatpush1.bf16.msra.mxu0 %v678
        %838 = vmatprep.subr.bf16.mxu0 0
        %839 = vmatpush1.bf16.msra.mxu0 %v679
        %840 = vmatprep.mubr.bf16.mxu0 %v433
        %841 = vmatmul.mubr.bf16.gmra.mrb[0].mxu0 %v432
        %v842 = vpop.f32.mrb[0].mxu0
        %v843 = vadd.f32 %v803, %v842
        %v844 = vpop.f32.mrb[0].mxu0
        %v845 = vpop.f32.mrb[0].mxu0
        %v846 = vpop.f32.mrb[0].mxu0
        %847 = vdwg.mxu0
        %vm848 = vcmask 261120
        %849 = vst.msk [vmem:[#allocation2] sm:$0xff] %vm848, 0.0
        %v850 = vld [vmem:[%s1 + $0x1] sm:$0x1]
        %vm851 = vcmask 253952
        %852 = vst.msk [vmem:[#allocation2] sm:$0x1] %vm851, %v850
        %v853 = vld [vmem:[%s1 + $0x2] sm:$0xf]
        %v854 = vadd.f32 %v843, %v853
        %vm855 = vcmask 257024
        %856 = vst.msk [vmem:[#allocation2 + $0x1] sm:$0xf] %vm855, %v854
        %v857 = vld [vmem:[#allocation2] sm:$0xff]
        %v858 = vlaneseq
        %v859 = vand.u32 %v858, 127
        %vm860 = vcmp.ge.s32.totalorder %v859, 5
        %v861 = vsel %vm860, -1e+30, 0.0
        %v862 = vld [vmem:[%s1 + $0x6] sm:$0x1]
        %v863 = vld [vmem:[%s1 + $0x7] sm:$0x1]
        %v864 = vsel %vm848, %v857, 0.0
        %865 = vadd.xlane.f32.xlu0 %v864
        %v866 = vpop.xlane.xlu0 %865
        %v867 = vrcp.pop 32.0
        %v868 = vmul.f32 %v866, %v867
        %v869 = vsub.f32 %v857, %v868
        %v870 = vmul.f32 %v869, %v869
        %v871 = vsel %vm848, %v870, 0.0
        %872 = vadd.xlane.f32.xlu0 %v871
        %v873 = vpop.xlane.xlu0 %872
        %v874 = vmul.f32 %v873, %v867
        %v875 = vadd.f32 %v874, 1e-06
        %v876 = vrsqrt.pop %v875
        %v877 = vmul.f32 %v869, %v876
        %v878 = vlaneseq
        %v879 = vshrl.u32 %v878, 7
        %v880 = vsub.s32 0, %v879
        %v881 = vrot.slane %v862, %v880
        %v882 = vmul.f32 %v877, %v881
        %v883 = vlaneseq
        %v884 = vshrl.u32 %v883, 7
        %v885 = vsub.s32 0, %v884
        %v886 = vrot.slane %v863, %v885
        %v887 = vadd.f32 %v882, %v886
        %v888 = vpack.c.bf16 %v887, %v887
        %v889 = vld [vmem:[%s3] sm:$0xf]
        %v890 = vld [vmem:[%s3 + $0x4] sm:$0xf]
        %v891 = vld [vmem:[%s3 + $0x8] sm:$0xf]
        %v892 = vld [vmem:[%s3 + $0xc] sm:$0xf]
        %v893 = vld [vmem:[%s1 + $0x8] sm:$0x1]
        %v894 = vlaneseq
        %v895 = vshrl.u32 %v894, 7
        %v896 = vsub.s32 0, %v895
        %v897 = vrot.slane %v893, %v896
        %v902 = vunpack.c.l.b16 %v889
        %v903 = vunpack.c.l.b16 %v890
        %v904 = vunpack.c.l.b16 %v891
        %v905 = vunpack.c.l.b16 %v892
        %v906 = vpack.c.b16 %v903, %v902
        %v907 = vpack.c.b16 %v905, %v904
        %v911 = vsel %vm848, %v888, 0
        %913 = vmatprep.subr.bf16.mxu0 0
        %914 = vmatpush1.bf16.msra.mxu0 %v906
        %915 = vmatprep.subr.bf16.mxu0 0
        %916 = vmatpush1.bf16.msra.mxu0 %v907
        %917 = vmatprep.subr.bf16.mxu0 0
        %918 = vmatpush1.bf16.msra.mxu0 0
        %919 = vmatprep.subr.bf16.mxu0 0
        %920 = vmatpush1.bf16.msra.mxu0 0
        %921 = vmatprep.subr.bf16.mxu0 0
        %922 = vmatpush1.bf16.msra.mxu0 0
        %923 = vmatprep.subr.bf16.mxu0 0
        %924 = vmatpush1.bf16.msra.mxu0 0
        %925 = vmatprep.subr.bf16.mxu0 0
        %926 = vmatpush1.bf16.msra.mxu0 0
        %927 = vmatprep.subr.bf16.mxu0 0
        %928 = vmatpush1.bf16.msra.mxu0 0
        %929 = vmatprep.subr.bf16.mxu0 0
        %930 = vmatpush1.bf16.msra.mxu0 0
        %931 = vmatprep.subr.bf16.mxu0 0
        %932 = vmatpush1.bf16.msra.mxu0 0
        %933 = vmatprep.subr.bf16.mxu0 0
        %934 = vmatpush1.bf16.msra.mxu0 0
        %935 = vmatprep.subr.bf16.mxu0 0
        %936 = vmatpush1.bf16.msra.mxu0 0
        %937 = vmatprep.subr.bf16.mxu0 0
        %938 = vmatpush1.bf16.msra.mxu0 0
        %939 = vmatprep.subr.bf16.mxu0 0
        %940 = vmatpush1.bf16.msra.mxu0 0
        %941 = vmatprep.subr.bf16.mxu0 0
        %942 = vmatpush1.bf16.msra.mxu0 0
        %943 = vmatprep.subr.bf16.mxu0 0
        %944 = vmatpush1.bf16.msra.mxu0 0
        %945 = vmatprep.mubr.bf16.mxu0 0
        %946 = vmatmul.mubr.bf16.gmra.mrb[0].mxu0 %v911
        %v947 = vpop.f32.mrb[0].mxu0
        %v948 = vadd.f32 %v897, %v947
        %v949 = vpop.f32.mrb[0].mxu0
        %v950 = vpop.f32.mrb[0].mxu0
        %v951 = vpop.f32.mrb[0].mxu0
        %952 = vdwg.mxu0
        %v953 = vpack.c.bf16 %v948, %v948
        %955 = vrot.lane.b32.xlu0 %v953, 96
        %v956 = vpop.permute.xlu0 %955
        %vm957 = vcmask 64512
        %v959 = vsel %vm957, %v953, 0
        %v962 = vsel %vm957, %v956, 0
        %964 = vmatprep.subr.bf16.mxu0 0
        %965 = vmatpush1.bf16.xpose.msra.mxu0 %v962
        %966 = vmatprep.subr.bf16.mxu0 0
        %967 = vmatpush1.bf16.xpose.msra.mxu0 0
        %968 = vmatprep.subr.bf16.mxu0 0
        %969 = vmatpush1.bf16.xpose.msra.mxu0 0
        %970 = vmatprep.subr.bf16.mxu0 0
        %971 = vmatpush1.bf16.xpose.msra.mxu0 0
        %972 = vmatprep.subr.bf16.mxu0 0
        %973 = vmatpush1.bf16.xpose.msra.mxu0 0
        %974 = vmatprep.subr.bf16.mxu0 0
        %975 = vmatpush1.bf16.xpose.msra.mxu0 0
        %976 = vmatprep.subr.bf16.mxu0 0
        %977 = vmatpush1.bf16.xpose.msra.mxu0 0
        %978 = vmatprep.subr.bf16.mxu0 0
        %979 = vmatpush1.bf16.xpose.msra.mxu0 0
        %980 = vmatprep.subr.bf16.mxu0 0
        %981 = vmatpush1.bf16.xpose.msra.mxu0 0
        %982 = vmatprep.subr.bf16.mxu0 0
        %983 = vmatpush1.bf16.xpose.msra.mxu0 0
        %984 = vmatprep.subr.bf16.mxu0 0
        %985 = vmatpush1.bf16.xpose.msra.mxu0 0
        %986 = vmatprep.subr.bf16.mxu0 0
        %987 = vmatpush1.bf16.xpose.msra.mxu0 0
        %988 = vmatprep.subr.bf16.mxu0 0
        %989 = vmatpush1.bf16.xpose.msra.mxu0 0
        %990 = vmatprep.subr.bf16.mxu0 0
        %991 = vmatpush1.bf16.xpose.msra.mxu0 0
        %992 = vmatprep.subr.bf16.mxu0 0
        %993 = vmatpush1.bf16.xpose.msra.mxu0 0
        %994 = vmatprep.subr.bf16.mxu0 0
        %995 = vmatpush1.bf16.xpose.msra.mxu0 0
        %996 = vmatprep.mubr.bf16.mxu0 0
        %997 = vmatmul.mubr.bf16.gmra.mrb[0].mxu0 %v959
        %v998 = vpop.f32.mrb[0].mxu0
        %v999 = vadd.f32 %v861, %v998
        %v1000 = vpop.f32.mrb[0].mxu0
        %v1001 = vpop.f32.mrb[0].mxu0
        %v1002 = vpop.f32.mrb[0].mxu0
        %1003 = vdwg.mxu0
        %v1004 = vsel %vm957, %v999, -inf
        %1005 = vmax.xlane.f32.xlu0 %v1004
        %v1006 = vpop.xlane.xlu0 %1005
        %v1007 = vsub.f32 %v999, %v1006
        %v1008 = vmul.f32 %v1007, 1.442695
        %v1009 = vpow.pop %v1008
        %v1010 = vsel %vm957, %v1009, 0.0
        %1011 = vadd.xlane.f32.xlu0 %v1010
        %v1012 = vpop.xlane.xlu0 %1011
        %v1013 = vrcp.pop %v1012
        %v1014 = vmul.f32 %v1009, %v1013
        %v1015 = vpack.c.bf16 %v1014, %v1014
        %1016 = vrot.lane.b32.xlu0 %v953, 64
        %v1017 = vpop.permute.xlu0 %1016
        %v1019 = vsel %vm957, %v1015, 0
        %vm1021 = vcmask 1043456
        %v1023 = vsel %vm1021, %v1017, 0
        %1025 = vmatprep.subr.bf16.mxu0 0
        %1026 = vmatpush1.bf16.msra.mxu0 %v1023
        %1027 = vmatprep.subr.bf16.mxu0 0
        %1028 = vmatpush1.bf16.msra.mxu0 0
        %1029 = vmatprep.subr.bf16.mxu0 0
        %1030 = vmatpush1.bf16.msra.mxu0 0
        %1031 = vmatprep.subr.bf16.mxu0 0
        %1032 = vmatpush1.bf16.msra.mxu0 0
        %1033 = vmatprep.subr.bf16.mxu0 0
        %1034 = vmatpush1.bf16.msra.mxu0 0
        %1035 = vmatprep.subr.bf16.mxu0 0
        %1036 = vmatpush1.bf16.msra.mxu0 0
        %1037 = vmatprep.subr.bf16.mxu0 0
        %1038 = vmatpush1.bf16.msra.mxu0 0
        %1039 = vmatprep.subr.bf16.mxu0 0
        %1040 = vmatpush1.bf16.msra.mxu0 0
        %1041 = vmatprep.subr.bf16.mxu0 0
        %1042 = vmatpush1.bf16.msra.mxu0 0
        %1043 = vmatprep.subr.bf16.mxu0 0
        %1044 = vmatpush1.bf16.msra.mxu0 0
        %1045 = vmatprep.subr.bf16.mxu0 0
        %1046 = vmatpush1.bf16.msra.mxu0 0
        %1047 = vmatprep.subr.bf16.mxu0 0
        %1048 = vmatpush1.bf16.msra.mxu0 0
        %1049 = vmatprep.subr.bf16.mxu0 0
        %1050 = vmatpush1.bf16.msra.mxu0 0
        %1051 = vmatprep.subr.bf16.mxu0 0
        %1052 = vmatpush1.bf16.msra.mxu0 0
        %1053 = vmatprep.subr.bf16.mxu0 0
        %1054 = vmatpush1.bf16.msra.mxu0 0
        %1055 = vmatprep.subr.bf16.mxu0 0
        %1056 = vmatpush1.bf16.msra.mxu0 0
        %1057 = vmatprep.mubr.bf16.mxu0 0
        %1058 = vmatmul.mubr.bf16.gmra.mrb[0].mxu0 %v1019
        %v1059 = vpop.f32.mrb[0].mxu0
        %v1060 = vadd.f32 0.0, %v1059
        %v1061 = vpop.f32.mrb[0].mxu0
        %v1062 = vpop.f32.mrb[0].mxu0
        %v1063 = vpop.f32.mrb[0].mxu0
        %1064 = vdwg.mxu0
        %1065 = vrot.lane.b32.xlu0 %v953, 120
        %v1066 = vpop.permute.xlu0 %1065
        %1067 = vrot.lane.b32.xlu0 %v953, 88
        %v1068 = vpop.permute.xlu0 %1067
        %v1070 = vsel %vm957, %v1066, 0
        %v1073 = vsel %vm957, %v1068, 0
        %1075 = vmatprep.subr.bf16.mxu0 0
        %1076 = vmatpush1.bf16.xpose.msra.mxu0 %v1073
        %1077 = vmatprep.subr.bf16.mxu0 0
        %1078 = vmatpush1.bf16.xpose.msra.mxu0 0
        %1079 = vmatprep.subr.bf16.mxu0 0
        %1080 = vmatpush1.bf16.xpose.msra.mxu0 0
        %1081 = vmatprep.subr.bf16.mxu0 0
        %1082 = vmatpush1.bf16.xpose.msra.mxu0 0
        %1083 = vmatprep.subr.bf16.mxu0 0
        %1084 = vmatpush1.bf16.xpose.msra.mxu0 0
        %1085 = vmatprep.subr.bf16.mxu0 0
        %1086 = vmatpush1.bf16.xpose.msra.mxu0 0
        %1087 = vmatprep.subr.bf16.mxu0 0
        %1088 = vmatpush1.bf16.xpose.msra.mxu0 0
        %1089 = vmatprep.subr.bf16.mxu0 0
        %1090 = vmatpush1.bf16.xpose.msra.mxu0 0
        %1091 = vmatprep.subr.bf16.mxu0 0
        %1092 = vmatpush1.bf16.xpose.msra.mxu0 0
        %1093 = vmatprep.subr.bf16.mxu0 0
        %1094 = vmatpush1.bf16.xpose.msra.mxu0 0
        %1095 = vmatprep.subr.bf16.mxu0 0
        %1096 = vmatpush1.bf16.xpose.msra.mxu0 0
        %1097 = vmatprep.subr.bf16.mxu0 0
        %1098 = vmatpush1.bf16.xpose.msra.mxu0 0
        %1099 = vmatprep.subr.bf16.mxu0 0
        %1100 = vmatpush1.bf16.xpose.msra.mxu0 0
        %1101 = vmatprep.subr.bf16.mxu0 0
        %1102 = vmatpush1.bf16.xpose.msra.mxu0 0
        %1103 = vmatprep.subr.bf16.mxu0 0
        %1104 = vmatpush1.bf16.xpose.msra.mxu0 0
        %1105 = vmatprep.subr.bf16.mxu0 0
        %1106 = vmatpush1.bf16.xpose.msra.mxu0 0
        %1107 = vmatprep.mubr.bf16.mxu0 0
        %1108 = vmatmul.mubr.bf16.gmra.mrb[0].mxu0 %v1070
        %v1109 = vpop.f32.mrb[0].mxu0
        %v1110 = vadd.f32 %v861, %v1109
        %v1111 = vpop.f32.mrb[0].mxu0
        %v1112 = vpop.f32.mrb[0].mxu0
        %v1113 = vpop.f32.mrb[0].mxu0
        %1114 = vdwg.mxu0
        %v1115 = vsel %vm957, %v1110, -inf
        %1116 = vmax.xlane.f32.xlu0 %v1115
        %v1117 = vpop.xlane.xlu0 %1116
        %v1118 = vsub.f32 %v1110, %v1117
        %v1119 = vmul.f32 %v1118, 1.442695
        %v1120 = vpow.pop %v1119
        %v1121 = vsel %vm957, %v1120, 0.0
        %1122 = vadd.xlane.f32.xlu0 %v1121
        %v1123 = vpop.xlane.xlu0 %1122
        %v1124 = vrcp.pop %v1123
        %v1125 = vmul.f32 %v1120, %v1124
        %v1126 = vpack.c.bf16 %v1125, %v1125
        %1127 = vrot.lane.b32.xlu0 %v953, 56
        %v1128 = vpop.permute.xlu0 %1127
        %v1130 = vsel %vm957, %v1126, 0
        %v1133 = vsel %vm1021, %v1128, 0
        %1135 = vmatprep.subr.bf16.mxu0 0
        %1136 = vmatpush1.bf16.msra.mxu0 %v1133
        %1137 = vmatprep.subr.bf16.mxu0 0
        %1138 = vmatpush1.bf16.msra.mxu0 0
        %1139 = vmatprep.subr.bf16.mxu0 0
        %1140 = vmatpush1.bf16.msra.mxu0 0
        %1141 = vmatprep.subr.bf16.mxu0 0
        %1142 = vmatpush1.bf16.msra.mxu0 0
        %1143 = vmatprep.subr.bf16.mxu0 0
        %1144 = vmatpush1.bf16.msra.mxu0 0
        %1145 = vmatprep.subr.bf16.mxu0 0
        %1146 = vmatpush1.bf16.msra.mxu0 0
        %1147 = vmatprep.subr.bf16.mxu0 0
        %1148 = vmatpush1.bf16.msra.mxu0 0
        %1149 = vmatprep.subr.bf16.mxu0 0
        %1150 = vmatpush1.bf16.msra.mxu0 0
        %1151 = vmatprep.subr.bf16.mxu0 0
        %1152 = vmatpush1.bf16.msra.mxu0 0
        %1153 = vmatprep.subr.bf16.mxu0 0
        %1154 = vmatpush1.bf16.msra.mxu0 0
        %1155 = vmatprep.subr.bf16.mxu0 0
        %1156 = vmatpush1.bf16.msra.mxu0 0
        %1157 = vmatprep.subr.bf16.mxu0 0
        %1158 = vmatpush1.bf16.msra.mxu0 0
        %1159 = vmatprep.subr.bf16.mxu0 0
        %1160 = vmatpush1.bf16.msra.mxu0 0
        %1161 = vmatprep.subr.bf16.mxu0 0
        %1162 = vmatpush1.bf16.msra.mxu0 0
        %1163 = vmatprep.subr.bf16.mxu0 0
        %1164 = vmatpush1.bf16.msra.mxu0 0
        %1165 = vmatprep.subr.bf16.mxu0 0
        %1166 = vmatpush1.bf16.msra.mxu0 0
        %1167 = vmatprep.mubr.bf16.mxu0 0
        %1168 = vmatmul.mubr.bf16.gmra.mrb[0].mxu0 %v1130
        %v1169 = vpop.f32.mrb[0].mxu0
        %v1170 = vadd.f32 0.0, %v1169
        %v1171 = vpop.f32.mrb[0].mxu0
        %v1172 = vpop.f32.mrb[0].mxu0
        %v1173 = vpop.f32.mrb[0].mxu0
        %1174 = vdwg.mxu0
        %1175 = vrot.lane.b32.xlu0 %v953, 112
        %v1176 = vpop.permute.xlu0 %1175
        %1177 = vrot.lane.b32.xlu0 %v953, 80
        %v1178 = vpop.permute.xlu0 %1177
        %v1180 = vsel %vm957, %v1176, 0
        %v1183 = vsel %vm957, %v1178, 0
        %1185 = vmatprep.subr.bf16.mxu0 0
        %1186 = vmatpush1.bf16.xpose.msra.mxu0 %v1183
        %1187 = vmatprep.subr.bf16.mxu0 0
        %1188 = vmatpush1.bf16.xpose.msra.mxu0 0
        %1189 = vmatprep.subr.bf16.mxu0 0
        %1190 = vmatpush1.bf16.xpose.msra.mxu0 0
        %1191 = vmatprep.subr.bf16.mxu0 0
        %1192 = vmatpush1.bf16.xpose.msra.mxu0 0
        %1193 = vmatprep.subr.bf16.mxu0 0
        %1194 = vmatpush1.bf16.xpose.msra.mxu0 0
        %1195 = vmatprep.subr.bf16.mxu0 0
        %1196 = vmatpush1.bf16.xpose.msra.mxu0 0
        %1197 = vmatprep.subr.bf16.mxu0 0
        %1198 = vmatpush1.bf16.xpose.msra.mxu0 0
        %1199 = vmatprep.subr.bf16.mxu0 0
        %1200 = vmatpush1.bf16.xpose.msra.mxu0 0
        %1201 = vmatprep.subr.bf16.mxu0 0
        %1202 = vmatpush1.bf16.xpose.msra.mxu0 0
        %1203 = vmatprep.subr.bf16.mxu0 0
        %1204 = vmatpush1.bf16.xpose.msra.mxu0 0
        %1205 = vmatprep.subr.bf16.mxu0 0
        %1206 = vmatpush1.bf16.xpose.msra.mxu0 0
        %1207 = vmatprep.subr.bf16.mxu0 0
        %1208 = vmatpush1.bf16.xpose.msra.mxu0 0
        %1209 = vmatprep.subr.bf16.mxu0 0
        %1210 = vmatpush1.bf16.xpose.msra.mxu0 0
        %1211 = vmatprep.subr.bf16.mxu0 0
        %1212 = vmatpush1.bf16.xpose.msra.mxu0 0
        %1213 = vmatprep.subr.bf16.mxu0 0
        %1214 = vmatpush1.bf16.xpose.msra.mxu0 0
        %1215 = vmatprep.subr.bf16.mxu0 0
        %1216 = vmatpush1.bf16.xpose.msra.mxu0 0
        %1217 = vmatprep.mubr.bf16.mxu0 0
        %1218 = vmatmul.mubr.bf16.gmra.mrb[0].mxu0 %v1180
        %v1219 = vpop.f32.mrb[0].mxu0
        %v1220 = vadd.f32 %v861, %v1219
        %v1221 = vpop.f32.mrb[0].mxu0
        %v1222 = vpop.f32.mrb[0].mxu0
        %v1223 = vpop.f32.mrb[0].mxu0
        %1224 = vdwg.mxu0
        %v1225 = vsel %vm957, %v1220, -inf
        %1226 = vmax.xlane.f32.xlu0 %v1225
        %v1227 = vpop.xlane.xlu0 %1226
        %v1228 = vsub.f32 %v1220, %v1227
        %v1229 = vmul.f32 %v1228, 1.442695
        %v1230 = vpow.pop %v1229
        %v1231 = vsel %vm957, %v1230, 0.0
        %1232 = vadd.xlane.f32.xlu0 %v1231
        %v1233 = vpop.xlane.xlu0 %1232
        %v1234 = vrcp.pop %v1233
        %v1235 = vmul.f32 %v1230, %v1234
        %v1236 = vpack.c.bf16 %v1235, %v1235
        %1237 = vrot.lane.b32.xlu0 %v953, 48
        %v1238 = vpop.permute.xlu0 %1237
        %v1240 = vsel %vm957, %v1236, 0
        %v1243 = vsel %vm1021, %v1238, 0
        %1245 = vmatprep.subr.bf16.mxu0 0
        %1246 = vmatpush1.bf16.msra.mxu0 %v1243
        %1247 = vmatprep.subr.bf16.mxu0 0
        %1248 = vmatpush1.bf16.msra.mxu0 0
        %1249 = vmatprep.subr.bf16.mxu0 0
        %1250 = vmatpush1.bf16.msra.mxu0 0
        %1251 = vmatprep.subr.bf16.mxu0 0
        %1252 = vmatpush1.bf16.msra.mxu0 0
        %1253 = vmatprep.subr.bf16.mxu0 0
        %1254 = vmatpush1.bf16.msra.mxu0 0
        %1255 = vmatprep.subr.bf16.mxu0 0
        %1256 = vmatpush1.bf16.msra.mxu0 0
        %1257 = vmatprep.subr.bf16.mxu0 0
        %1258 = vmatpush1.bf16.msra.mxu0 0
        %1259 = vmatprep.subr.bf16.mxu0 0
        %1260 = vmatpush1.bf16.msra.mxu0 0
        %1261 = vmatprep.subr.bf16.mxu0 0
        %1262 = vmatpush1.bf16.msra.mxu0 0
        %1263 = vmatprep.subr.bf16.mxu0 0
        %1264 = vmatpush1.bf16.msra.mxu0 0
        %1265 = vmatprep.subr.bf16.mxu0 0
        %1266 = vmatpush1.bf16.msra.mxu0 0
        %1267 = vmatprep.subr.bf16.mxu0 0
        %1268 = vmatpush1.bf16.msra.mxu0 0
        %1269 = vmatprep.subr.bf16.mxu0 0
        %1270 = vmatpush1.bf16.msra.mxu0 0
        %1271 = vmatprep.subr.bf16.mxu0 0
        %1272 = vmatpush1.bf16.msra.mxu0 0
        %1273 = vmatprep.subr.bf16.mxu0 0
        %1274 = vmatpush1.bf16.msra.mxu0 0
        %1275 = vmatprep.subr.bf16.mxu0 0
        %1276 = vmatpush1.bf16.msra.mxu0 0
        %1277 = vmatprep.mubr.bf16.mxu0 0
        %1278 = vmatmul.mubr.bf16.gmra.mrb[0].mxu0 %v1240
        %v1279 = vpop.f32.mrb[0].mxu0
        %v1280 = vadd.f32 0.0, %v1279
        %v1281 = vpop.f32.mrb[0].mxu0
        %v1282 = vpop.f32.mrb[0].mxu0
        %v1283 = vpop.f32.mrb[0].mxu0
        %1284 = vdwg.mxu0
        %1285 = vrot.lane.b32.xlu0 %v953, 104
        %v1286 = vpop.permute.xlu0 %1285
        %1287 = vrot.lane.b32.xlu0 %v953, 72
        %v1288 = vpop.permute.xlu0 %1287
        %v1290 = vsel %vm957, %v1286, 0
        %v1293 = vsel %vm957, %v1288, 0
        %1295 = vmatprep.subr.bf16.mxu0 0
        %1296 = vmatpush1.bf16.xpose.msra.mxu0 %v1293
        %1297 = vmatprep.subr.bf16.mxu0 0
        %1298 = vmatpush1.bf16.xpose.msra.mxu0 0
        %1299 = vmatprep.subr.bf16.mxu0 0
        %1300 = vmatpush1.bf16.xpose.msra.mxu0 0
        %1301 = vmatprep.subr.bf16.mxu0 0
        %1302 = vmatpush1.bf16.xpose.msra.mxu0 0
        %1303 = vmatprep.subr.bf16.mxu0 0
        %1304 = vmatpush1.bf16.xpose.msra.mxu0 0
        %1305 = vmatprep.subr.bf16.mxu0 0
        %1306 = vmatpush1.bf16.xpose.msra.mxu0 0
        %1307 = vmatprep.subr.bf16.mxu0 0
        %1308 = vmatpush1.bf16.xpose.msra.mxu0 0
        %1309 = vmatprep.subr.bf16.mxu0 0
        %1310 = vmatpush1.bf16.xpose.msra.mxu0 0
        %1311 = vmatprep.subr.bf16.mxu0 0
        %1312 = vmatpush1.bf16.xpose.msra.mxu0 0
        %1313 = vmatprep.subr.bf16.mxu0 0
        %1314 = vmatpush1.bf16.xpose.msra.mxu0 0
        %1315 = vmatprep.subr.bf16.mxu0 0
        %1316 = vmatpush1.bf16.xpose.msra.mxu0 0
        %1317 = vmatprep.subr.bf16.mxu0 0
        %1318 = vmatpush1.bf16.xpose.msra.mxu0 0
        %1319 = vmatprep.subr.bf16.mxu0 0
        %1320 = vmatpush1.bf16.xpose.msra.mxu0 0
        %1321 = vmatprep.subr.bf16.mxu0 0
        %1322 = vmatpush1.bf16.xpose.msra.mxu0 0
        %1323 = vmatprep.subr.bf16.mxu0 0
        %1324 = vmatpush1.bf16.xpose.msra.mxu0 0
        %1325 = vmatprep.subr.bf16.mxu0 0
        %1326 = vmatpush1.bf16.xpose.msra.mxu0 0
        %1327 = vmatprep.mubr.bf16.mxu0 0
        %1328 = vmatmul.mubr.bf16.gmra.mrb[0].mxu0 %v1290
        %v1329 = vpop.f32.mrb[0].mxu0
        %v1330 = vadd.f32 %v861, %v1329
        %v1331 = vpop.f32.mrb[0].mxu0
        %v1332 = vpop.f32.mrb[0].mxu0
        %v1333 = vpop.f32.mrb[0].mxu0
        %1334 = vdwg.mxu0
        %v1335 = vsel %vm957, %v1330, -inf
        %1336 = vmax.xlane.f32.xlu0 %v1335
        %v1337 = vpop.xlane.xlu0 %1336
        %v1338 = vsub.f32 %v1330, %v1337
        %v1339 = vmul.f32 %v1338, 1.442695
        %v1340 = vpow.pop %v1339
        %v1341 = vsel %vm957, %v1340, 0.0
        %1342 = vadd.xlane.f32.xlu0 %v1341
        %v1343 = vpop.xlane.xlu0 %1342
        %v1344 = vrcp.pop %v1343
        %v1345 = vmul.f32 %v1340, %v1344
        %v1346 = vpack.c.bf16 %v1345, %v1345
        %1347 = vrot.lane.b32.xlu0 %v953, 40
        %v1348 = vpop.permute.xlu0 %1347
        %v1350 = vsel %vm957, %v1346, 0
        %v1353 = vsel %vm1021, %v1348, 0
        %1355 = vmatprep.subr.bf16.mxu0 0
        %1356 = vmatpush1.bf16.msra.mxu0 %v1353
        %1357 = vmatprep.subr.bf16.mxu0 0
        %1358 = vmatpush1.bf16.msra.mxu0 0
        %1359 = vmatprep.subr.bf16.mxu0 0
        %1360 = vmatpush1.bf16.msra.mxu0 0
        %1361 = vmatprep.subr.bf16.mxu0 0
        %1362 = vmatpush1.bf16.msra.mxu0 0
        %1363 = vmatprep.subr.bf16.mxu0 0
        %1364 = vmatpush1.bf16.msra.mxu0 0
        %1365 = vmatprep.subr.bf16.mxu0 0
        %1366 = vmatpush1.bf16.msra.mxu0 0
        %1367 = vmatprep.subr.bf16.mxu0 0
        %1368 = vmatpush1.bf16.msra.mxu0 0
        %1369 = vmatprep.subr.bf16.mxu0 0
        %1370 = vmatpush1.bf16.msra.mxu0 0
        %1371 = vmatprep.subr.bf16.mxu0 0
        %1372 = vmatpush1.bf16.msra.mxu0 0
        %1373 = vmatprep.subr.bf16.mxu0 0
        %1374 = vmatpush1.bf16.msra.mxu0 0
        %1375 = vmatprep.subr.bf16.mxu0 0
        %1376 = vmatpush1.bf16.msra.mxu0 0
        %1377 = vmatprep.subr.bf16.mxu0 0
        %1378 = vmatpush1.bf16.msra.mxu0 0
        %1379 = vmatprep.subr.bf16.mxu0 0
        %1380 = vmatpush1.bf16.msra.mxu0 0
        %1381 = vmatprep.subr.bf16.mxu0 0
        %1382 = vmatpush1.bf16.msra.mxu0 0
        %1383 = vmatprep.subr.bf16.mxu0 0
        %1384 = vmatpush1.bf16.msra.mxu0 0
        %1385 = vmatprep.subr.bf16.mxu0 0
        %1386 = vmatpush1.bf16.msra.mxu0 0
        %1387 = vmatprep.mubr.bf16.mxu0 0
        %1388 = vmatmul.mubr.bf16.gmra.mrb[0].mxu0 %v1350
        %v1389 = vpop.f32.mrb[0].mxu0
        %v1390 = vadd.f32 0.0, %v1389
        %v1391 = vpop.f32.mrb[0].mxu0
        %v1392 = vpop.f32.mrb[0].mxu0
        %v1393 = vpop.f32.mrb[0].mxu0
        %1394 = vdwg.mxu0
        %1396 = vrot.lane.b32.xlu0 %v1170, 8
        %v1397 = vpop.permute.xlu0 %1396
        %1400 = vrot.lane.b32.xlu0 %v1280, 16
        %v1401 = vpop.permute.xlu0 %1400
        %1404 = vrot.lane.b32.xlu0 %v1390, 24
        %v1405 = vpop.permute.xlu0 %1404
        %v1407 = vsel %vm957, %v1060, %v1397
        %vm1408 = vcmask 130048
        %v1409 = vsel %vm1408, %v1407, %v1401
        %vm1410 = vcmask 195584
        %v1411 = vsel %vm1410, %v1409, %v1405
        %v1412 = vpack.c.bf16 %v1411, %v1411
        %v1413 = vld [vmem:[%s4] sm:$0xf]
        %v1414 = vld [vmem:[%s4 + $0x4] sm:$0xf]
        %v1415 = vld [vmem:[%s4 + $0x8] sm:$0xf]
        %v1416 = vld [vmem:[%s4 + $0xc] sm:$0xf]
        %v1417 = vld [vmem:[%s1 + $0x9] sm:$0x1]
        %v1418 = vlaneseq
        %v1419 = vshrl.u32 %v1418, 7
        %v1420 = vsub.s32 0, %v1419
        %v1421 = vrot.slane %v1417, %v1420
        %v1426 = vunpack.c.l.b16 %v1413
        %v1427 = vunpack.c.l.b16 %v1414
        %v1428 = vunpack.c.l.b16 %v1415
        %v1429 = vunpack.c.l.b16 %v1416
        %v1430 = vpack.c.b16 %v1427, %v1426
        %v1431 = vpack.c.b16 %v1429, %v1428
        %v1435 = vsel %vm848, %v1412, 0
        %1437 = vmatprep.subr.bf16.mxu0 0
        %1438 = vmatpush1.bf16.msra.mxu0 %v1430
        %1439 = vmatprep.subr.bf16.mxu0 0
        %1440 = vmatpush1.bf16.msra.mxu0 %v1431
        %1441 = vmatprep.subr.bf16.mxu0 0
        %1442 = vmatpush1.bf16.msra.mxu0 0
        %1443 = vmatprep.subr.bf16.mxu0 0
        %1444 = vmatpush1.bf16.msra.mxu0 0
        %1445 = vmatprep.subr.bf16.mxu0 0
        %1446 = vmatpush1.bf16.msra.mxu0 0
        %1447 = vmatprep.subr.bf16.mxu0 0
        %1448 = vmatpush1.bf16.msra.mxu0 0
        %1449 = vmatprep.subr.bf16.mxu0 0
        %1450 = vmatpush1.bf16.msra.mxu0 0
        %1451 = vmatprep.subr.bf16.mxu0 0
        %1452 = vmatpush1.bf16.msra.mxu0 0
        %1453 = vmatprep.subr.bf16.mxu0 0
        %1454 = vmatpush1.bf16.msra.mxu0 0
        %1455 = vmatprep.subr.bf16.mxu0 0
        %1456 = vmatpush1.bf16.msra.mxu0 0
        %1457 = vmatprep.subr.bf16.mxu0 0
        %1458 = vmatpush1.bf16.msra.mxu0 0
        %1459 = vmatprep.subr.bf16.mxu0 0
        %1460 = vmatpush1.bf16.msra.mxu0 0
        %1461 = vmatprep.subr.bf16.mxu0 0
        %1462 = vmatpush1.bf16.msra.mxu0 0
        %1463 = vmatprep.subr.bf16.mxu0 0
        %1464 = vmatpush1.bf16.msra.mxu0 0
        %1465 = vmatprep.subr.bf16.mxu0 0
        %1466 = vmatpush1.bf16.msra.mxu0 0
        %1467 = vmatprep.subr.bf16.mxu0 0
        %1468 = vmatpush1.bf16.msra.mxu0 0
        %1469 = vmatprep.mubr.bf16.mxu0 0
        %1470 = vmatmul.mubr.bf16.gmra.mrb[0].mxu0 %v1435
        %v1471 = vpop.f32.mrb[0].mxu0
        %v1472 = vadd.f32 %v1421, %v1471
        %v1473 = vpop.f32.mrb[0].mxu0
        %v1474 = vpop.f32.mrb[0].mxu0
        %v1475 = vpop.f32.mrb[0].mxu0
        %1476 = vdwg.mxu0
        %v1477 = vadd.f32 %v857, %v1472
        %v1478 = vld [vmem:[%s1 + $0xa] sm:$0x1]
        %v1479 = vld [vmem:[%s1 + $0xb] sm:$0x1]
        %v1480 = vsel %vm848, %v1477, 0.0
        %1481 = vadd.xlane.f32.xlu0 %v1480
        %v1482 = vpop.xlane.xlu0 %1481
        %v1483 = vmul.f32 %v1482, %v867
        %v1484 = vsub.f32 %v1477, %v1483
        %v1485 = vmul.f32 %v1484, %v1484
        %v1486 = vsel %vm848, %v1485, 0.0
        %1487 = vadd.xlane.f32.xlu0 %v1486
        %v1488 = vpop.xlane.xlu0 %1487
        %v1489 = vmul.f32 %v1488, %v867
        %v1490 = vadd.f32 %v1489, 1e-06
        %v1491 = vrsqrt.pop %v1490
        %v1492 = vmul.f32 %v1484, %v1491
        %v1493 = vlaneseq
        %v1494 = vshrl.u32 %v1493, 7
        %v1495 = vsub.s32 0, %v1494
        %v1496 = vrot.slane %v1478, %v1495
        %v1497 = vmul.f32 %v1492, %v1496
        %v1498 = vlaneseq
        %v1499 = vshrl.u32 %v1498, 7
        %v1500 = vsub.s32 0, %v1499
        %v1501 = vrot.slane %v1479, %v1500
        %v1502 = vadd.f32 %v1497, %v1501
        %v1503 = vpack.c.bf16 %v1502, %v1502
        %v1504 = vld [vmem:[%s5] sm:$0xf]
        %v1505 = vld [vmem:[%s5 + $0x4] sm:$0xf]
        %v1506 = vld [vmem:[%s5 + $0x8] sm:$0xf]
        %v1507 = vld [vmem:[%s5 + $0xc] sm:$0xf]
        %v1508 = vld [vmem:[%s1 + $0xc] sm:$0x1]
        %v1509 = vlaneseq
        %v1510 = vshrl.u32 %v1509, 7
        %v1511 = vsub.s32 0, %v1510
        %v1512 = vrot.slane %v1508, %v1511
        %v1517 = vunpack.c.l.b16 %v1504
        %v1518 = vunpack.c.l.b16 %v1505
        %v1519 = vunpack.c.l.b16 %v1506
        %v1520 = vunpack.c.l.b16 %v1507
        %v1521 = vpack.c.b16 %v1518, %v1517
        %v1522 = vpack.c.b16 %v1520, %v1519
        %v1526 = vsel %vm848, %v1503, 0
        %1528 = vmatprep.subr.bf16.mxu0 0
        %1529 = vmatpush1.bf16.msra.mxu0 %v1521
        %1530 = vmatprep.subr.bf16.mxu0 0
        %1531 = vmatpush1.bf16.msra.mxu0 %v1522
        %1532 = vmatprep.subr.bf16.mxu0 0
        %1533 = vmatpush1.bf16.msra.mxu0 0
        %1534 = vmatprep.subr.bf16.mxu0 0
        %1535 = vmatpush1.bf16.msra.mxu0 0
        %1536 = vmatprep.subr.bf16.mxu0 0
        %1537 = vmatpush1.bf16.msra.mxu0 0
        %1538 = vmatprep.subr.bf16.mxu0 0
        %1539 = vmatpush1.bf16.msra.mxu0 0
        %1540 = vmatprep.subr.bf16.mxu0 0
        %1541 = vmatpush1.bf16.msra.mxu0 0
        %1542 = vmatprep.subr.bf16.mxu0 0
        %1543 = vmatpush1.bf16.msra.mxu0 0
        %1544 = vmatprep.subr.bf16.mxu0 0
        %1545 = vmatpush1.bf16.msra.mxu0 0
        %1546 = vmatprep.subr.bf16.mxu0 0
        %1547 = vmatpush1.bf16.msra.mxu0 0
        %1548 = vmatprep.subr.bf16.mxu0 0
        %1549 = vmatpush1.bf16.msra.mxu0 0
        %1550 = vmatprep.subr.bf16.mxu0 0
        %1551 = vmatpush1.bf16.msra.mxu0 0
        %1552 = vmatprep.subr.bf16.mxu0 0
        %1553 = vmatpush1.bf16.msra.mxu0 0
        %1554 = vmatprep.subr.bf16.mxu0 0
        %1555 = vmatpush1.bf16.msra.mxu0 0
        %1556 = vmatprep.subr.bf16.mxu0 0
        %1557 = vmatpush1.bf16.msra.mxu0 0
        %1558 = vmatprep.subr.bf16.mxu0 0
        %1559 = vmatpush1.bf16.msra.mxu0 0
        %1560 = vmatprep.mubr.bf16.mxu0 0
        %1561 = vmatmul.mubr.bf16.gmra.mrb[0].mxu0 %v1526
        %v1562 = vpop.f32.mrb[0].mxu0
        %v1563 = vadd.f32 %v1512, %v1562
        %v1564 = vpop.f32.mrb[0].mxu0
        %v1565 = vpop.f32.mrb[0].mxu0
        %v1566 = vpop.f32.mrb[0].mxu0
        %1567 = vdwg.mxu0
        %v1568 = vmul.f32 %v1563, 0.5
        %v1569 = vmul.f32 %v1563, 0.044715
        %v1570 = vmul.f32 %v1569, %v1563
        %v1571 = vmul.f32 %v1570, %v1563
        %v1572 = vadd.f32 %v1563, %v1571
        %v1573 = vmul.f32 %v1572, 0.7978846
        %v1574 = vtanh.pop %v1573
        %v1575 = vadd.f32 %v1574, 1.0
        %v1576 = vmul.f32 %v1568, %v1575
        %v1577 = vpack.c.bf16 %v1576, %v1576
        %v1578 = vld [vmem:[%s6] sm:$0xf]
        %v1579 = vld [vmem:[%s6 + $0x4] sm:$0xf]
        %v1580 = vld [vmem:[%s6 + $0x8] sm:$0xf]
        %v1581 = vld [vmem:[%s6 + $0xc] sm:$0xf]
        %v1582 = vld [vmem:[%s6 + $0x10] sm:$0xf]
        %v1583 = vld [vmem:[%s6 + $0x14] sm:$0xf]
        %v1584 = vld [vmem:[%s6 + $0x18] sm:$0xf]
        %v1585 = vld [vmem:[%s6 + $0x1c] sm:$0xf]
        %v1586 = vld [vmem:[%s6 + $0x20] sm:$0xf]
        %v1587 = vld [vmem:[%s6 + $0x24] sm:$0xf]
        %v1588 = vld [vmem:[%s6 + $0x28] sm:$0xf]
        %v1589 = vld [vmem:[%s6 + $0x2c] sm:$0xf]
        %v1590 = vld [vmem:[%s6 + $0x30] sm:$0xf]
        %v1591 = vld [vmem:[%s6 + $0x34] sm:$0xf]
        %v1592 = vld [vmem:[%s6 + $0x38] sm:$0xf]
        %v1593 = vld [vmem:[%s6 + $0x3c] sm:$0xf]
        %v1594 = vld [vmem:[%s1 + $0xd] sm:$0x1]
        %v1595 = vlaneseq
        %v1596 = vshrl.u32 %v1595, 7
        %v1597 = vsub.s32 0, %v1596
        %v1598 = vrot.slane %v1594, %v1597
        %v1615 = vunpack.c.l.b16 %v1578
        %v1616 = vunpack.c.l.b16 %v1579
        %v1617 = vunpack.c.l.b16 %v1580
        %v1618 = vunpack.c.l.b16 %v1581
        %v1619 = vunpack.c.l.b16 %v1582
        %v1620 = vunpack.c.l.b16 %v1583
        %v1621 = vunpack.c.l.b16 %v1584
        %v1622 = vunpack.c.l.b16 %v1585
        %v1623 = vunpack.c.l.b16 %v1586
        %v1624 = vunpack.c.l.b16 %v1587
        %v1625 = vunpack.c.l.b16 %v1588
        %v1626 = vunpack.c.l.b16 %v1589
        %v1627 = vunpack.c.l.b16 %v1590
        %v1628 = vunpack.c.l.b16 %v1591
        %v1629 = vunpack.c.l.b16 %v1592
        %v1630 = vunpack.c.l.b16 %v1593
        %v1631 = vpack.c.b16 %v1616, %v1615
        %v1632 = vpack.c.b16 %v1618, %v1617
        %v1633 = vpack.c.b16 %v1620, %v1619
        %v1634 = vpack.c.b16 %v1622, %v1621
        %v1635 = vpack.c.b16 %v1624, %v1623
        %v1636 = vpack.c.b16 %v1626, %v1625
        %v1637 = vpack.c.b16 %v1628, %v1627
        %v1638 = vpack.c.b16 %v1630, %v1629
        %1647 = vmatprep.subr.bf16.mxu0 0
        %1648 = vmatpush1.bf16.msra.mxu0 %v1631
        %1649 = vmatprep.subr.bf16.mxu0 0
        %1650 = vmatpush1.bf16.msra.mxu0 %v1632
        %1651 = vmatprep.subr.bf16.mxu0 0
        %1652 = vmatpush1.bf16.msra.mxu0 %v1633
        %1653 = vmatprep.subr.bf16.mxu0 0
        %1654 = vmatpush1.bf16.msra.mxu0 %v1634
        %1655 = vmatprep.subr.bf16.mxu0 0
        %1656 = vmatpush1.bf16.msra.mxu0 %v1635
        %1657 = vmatprep.subr.bf16.mxu0 0
        %1658 = vmatpush1.bf16.msra.mxu0 %v1636
        %1659 = vmatprep.subr.bf16.mxu0 0
        %1660 = vmatpush1.bf16.msra.mxu0 %v1637
        %1661 = vmatprep.subr.bf16.mxu0 0
        %1662 = vmatpush1.bf16.msra.mxu0 %v1638
        %1663 = vmatprep.subr.bf16.mxu0 0
        %1664 = vmatpush1.bf16.msra.mxu0 0
        %1665 = vmatprep.subr.bf16.mxu0 0
        %1666 = vmatpush1.bf16.msra.mxu0 0
        %1667 = vmatprep.subr.bf16.mxu0 0
        %1668 = vmatpush1.bf16.msra.mxu0 0
        %1669 = vmatprep.subr.bf16.mxu0 0
        %1670 = vmatpush1.bf16.msra.mxu0 0
        %1671 = vmatprep.subr.bf16.mxu0 0
        %1672 = vmatpush1.bf16.msra.mxu0 0
        %1673 = vmatprep.subr.bf16.mxu0 0
        %1674 = vmatpush1.bf16.msra.mxu0 0
        %1675 = vmatprep.subr.bf16.mxu0 0
        %1676 = vmatpush1.bf16.msra.mxu0 0
        %1677 = vmatprep.subr.bf16.mxu0 0
        %1678 = vmatpush1.bf16.msra.mxu0 0
        %1679 = vmatprep.mubr.bf16.mxu0 0
        %1680 = vmatmul.mubr.bf16.gmra.mrb[0].mxu0 %v1577
        %v1681 = vpop.f32.mrb[0].mxu0
        %v1682 = vadd.f32 %v1598, %v1681
        %v1683 = vpop.f32.mrb[0].mxu0
        %v1684 = vpop.f32.mrb[0].mxu0
        %v1685 = vpop.f32.mrb[0].mxu0
        %1686 = vdwg.mxu0
        %v1687 = vadd.f32 %v1477, %v1682
        %v1688 = vld [vmem:[%s1 + $0xe] sm:$0x1]
        %v1689 = vld [vmem:[%s1 + $0xf] sm:$0x1]
        %v1690 = vsel %vm848, %v1687, 0.0
        %1691 = vadd.xlane.f32.xlu0 %v1690
        %v1692 = vpop.xlane.xlu0 %1691
        %v1693 = vmul.f32 %v1692, %v867
        %v1694 = vsub.f32 %v1687, %v1693
        %v1695 = vmul.f32 %v1694, %v1694
        %v1696 = vsel %vm848, %v1695, 0.0
        %1697 = vadd.xlane.f32.xlu0 %v1696
        %v1698 = vpop.xlane.xlu0 %1697
        %v1699 = vmul.f32 %v1698, %v867
        %v1700 = vadd.f32 %v1699, 1e-06
        %v1701 = vrsqrt.pop %v1700
        %v1702 = vmul.f32 %v1694, %v1701
        %v1703 = vlaneseq
        %v1704 = vshrl.u32 %v1703, 7
        %v1705 = vsub.s32 0, %v1704
        %v1706 = vrot.slane %v1688, %v1705
        %v1707 = vmul.f32 %v1702, %v1706
        %v1708 = vlaneseq
        %v1709 = vshrl.u32 %v1708, 7
        %v1710 = vsub.s32 0, %v1709
        %v1711 = vrot.slane %v1689, %v1710
        %v1712 = vadd.f32 %v1707, %v1711
        %v1713 = vpack.c.bf16 %v1712, %v1712
        %s1714 = scalar_lea.vmem %s3, 16
        %v1715 = vld [vmem:[%s1714] sm:$0xf]
        %v1716 = vld [vmem:[%s1714 + $0x4] sm:$0xf]
        %v1717 = vld [vmem:[%s1714 + $0x8] sm:$0xf]
        %v1718 = vld [vmem:[%s1714 + $0xc] sm:$0xf]
        %v1719 = vld [vmem:[%s1 + $0x10] sm:$0x1]
        %v1720 = vlaneseq
        %v1721 = vshrl.u32 %v1720, 7
        %v1722 = vsub.s32 0, %v1721
        %v1723 = vrot.slane %v1719, %v1722
        %v1728 = vunpack.c.l.b16 %v1715
        %v1729 = vunpack.c.l.b16 %v1716
        %v1730 = vunpack.c.l.b16 %v1717
        %v1731 = vunpack.c.l.b16 %v1718
        %v1732 = vpack.c.b16 %v1729, %v1728
        %v1733 = vpack.c.b16 %v1731, %v1730
        %v1737 = vsel %vm848, %v1713, 0
        %1739 = vmatprep.subr.bf16.mxu0 0
        %1740 = vmatpush1.bf16.msra.mxu0 %v1732
        %1741 = vmatprep.subr.bf16.mxu0 0
        %1742 = vmatpush1.bf16.msra.mxu0 %v1733
        %1743 = vmatprep.subr.bf16.mxu0 0
        %1744 = vmatpush1.bf16.msra.mxu0 0
        %1745 = vmatprep.subr.bf16.mxu0 0
        %1746 = vmatpush1.bf16.msra.mxu0 0
        %1747 = vmatprep.subr.bf16.mxu0 0
        %1748 = vmatpush1.bf16.msra.mxu0 0
        %1749 = vmatprep.subr.bf16.mxu0 0
        %1750 = vmatpush1.bf16.msra.mxu0 0
        %1751 = vmatprep.subr.bf16.mxu0 0
        %1752 = vmatpush1.bf16.msra.mxu0 0
        %1753 = vmatprep.subr.bf16.mxu0 0
        %1754 = vmatpush1.bf16.msra.mxu0 0
        %1755 = vmatprep.subr.bf16.mxu0 0
        %1756 = vmatpush1.bf16.msra.mxu0 0
        %1757 = vmatprep.subr.bf16.mxu0 0
        %1758 = vmatpush1.bf16.msra.mxu0 0
        %1759 = vmatprep.subr.bf16.mxu0 0
        %1760 = vmatpush1.bf16.msra.mxu0 0
        %1761 = vmatprep.subr.bf16.mxu0 0
        %1762 = vmatpush1.bf16.msra.mxu0 0
        %1763 = vmatprep.subr.bf16.mxu0 0
        %1764 = vmatpush1.bf16.msra.mxu0 0
        %1765 = vmatprep.subr.bf16.mxu0 0
        %1766 = vmatpush1.bf16.msra.mxu0 0
        %1767 = vmatprep.subr.bf16.mxu0 0
        %1768 = vmatpush1.bf16.msra.mxu0 0
        %1769 = vmatprep.subr.bf16.mxu0 0
        %1770 = vmatpush1.bf16.msra.mxu0 0
        %1771 = vmatprep.mubr.bf16.mxu0 0
        %1772 = vmatmul.mubr.bf16.gmra.mrb[0].mxu0 %v1737
        %v1773 = vpop.f32.mrb[0].mxu0
        %v1774 = vadd.f32 %v1723, %v1773
        %v1775 = vpop.f32.mrb[0].mxu0
        %v1776 = vpop.f32.mrb[0].mxu0
        %v1777 = vpop.f32.mrb[0].mxu0
        %1778 = vdwg.mxu0
        %v1779 = vpack.c.bf16 %v1774, %v1774
        %1781 = vrot.lane.b32.xlu0 %v1779, 96
        %v1782 = vpop.permute.xlu0 %1781
        %v1784 = vsel %vm957, %v1779, 0
        %v1787 = vsel %vm957, %v1782, 0
        %1789 = vmatprep.subr.bf16.mxu0 0
        %1790 = vmatpush1.bf16.xpose.msra.mxu0 %v1787
        %1791 = vmatprep.subr.bf16.mxu0 0
        %1792 = vmatpush1.bf16.xpose.msra.mxu0 0
        %1793 = vmatprep.subr.bf16.mxu0 0
        %1794 = vmatpush1.bf16.xpose.msra.mxu0 0
        %1795 = vmatprep.subr.bf16.mxu0 0
        %1796 = vmatpush1.bf16.xpose.msra.mxu0 0
        %1797 = vmatprep.subr.bf16.mxu0 0
        %1798 = vmatpush1.bf16.xpose.msra.mxu0 0
        %1799 = vmatprep.subr.bf16.mxu0 0
        %1800 = vmatpush1.bf16.xpose.msra.mxu0 0
        %1801 = vmatprep.subr.bf16.mxu0 0
        %1802 = vmatpush1.bf16.xpose.msra.mxu0 0
        %1803 = vmatprep.subr.bf16.mxu0 0
        %1804 = vmatpush1.bf16.xpose.msra.mxu0 0
        %1805 = vmatprep.subr.bf16.mxu0 0
        %1806 = vmatpush1.bf16.xpose.msra.mxu0 0
        %1807 = vmatprep.subr.bf16.mxu0 0
        %1808 = vmatpush1.bf16.xpose.msra.mxu0 0
        %1809 = vmatprep.subr.bf16.mxu0 0
        %1810 = vmatpush1.bf16.xpose.msra.mxu0 0
        %1811 = vmatprep.subr.bf16.mxu0 0
        %1812 = vmatpush1.bf16.xpose.msra.mxu0 0
        %1813 = vmatprep.subr.bf16.mxu0 0
        %1814 = vmatpush1.bf16.xpose.msra.mxu0 0
        %1815 = vmatprep.subr.bf16.mxu0 0
        %1816 = vmatpush1.bf16.xpose.msra.mxu0 0
        %1817 = vmatprep.subr.bf16.mxu0 0
        %1818 = vmatpush1.bf16.xpose.msra.mxu0 0
        %1819 = vmatprep.subr.bf16.mxu0 0
        %1820 = vmatpush1.bf16.xpose.msra.mxu0 0
        %1821 = vmatprep.mubr.bf16.mxu0 0
        %1822 = vmatmul.mubr.bf16.gmra.mrb[0].mxu0 %v1784
        %v1823 = vpop.f32.mrb[0].mxu0
        %v1824 = vadd.f32 %v861, %v1823
        %v1825 = vpop.f32.mrb[0].mxu0
        %v1826 = vpop.f32.mrb[0].mxu0
        %v1827 = vpop.f32.mrb[0].mxu0
        %1828 = vdwg.mxu0
        %v1829 = vsel %vm957, %v1824, -inf
        %1830 = vmax.xlane.f32.xlu0 %v1829
        %v1831 = vpop.xlane.xlu0 %1830
        %v1832 = vsub.f32 %v1824, %v1831
        %v1833 = vmul.f32 %v1832, 1.442695
        %v1834 = vpow.pop %v1833
        %v1835 = vsel %vm957, %v1834, 0.0
        %1836 = vadd.xlane.f32.xlu0 %v1835
        %v1837 = vpop.xlane.xlu0 %1836
        %v1838 = vrcp.pop %v1837
        %v1839 = vmul.f32 %v1834, %v1838
        %v1840 = vpack.c.bf16 %v1839, %v1839
        %1841 = vrot.lane.b32.xlu0 %v1779, 64
        %v1842 = vpop.permute.xlu0 %1841
        %v1844 = vsel %vm957, %v1840, 0
        %v1847 = vsel %vm1021, %v1842, 0
        %1849 = vmatprep.subr.bf16.mxu0 0
        %1850 = vmatpush1.bf16.msra.mxu0 %v1847
        %1851 = vmatprep.subr.bf16.mxu0 0
        %1852 = vmatpush1.bf16.msra.mxu0 0
        %1853 = vmatprep.subr.bf16.mxu0 0
        %1854 = vmatpush1.bf16.msra.mxu0 0
        %1855 = vmatprep.subr.bf16.mxu0 0
        %1856 = vmatpush1.bf16.msra.mxu0 0
        %1857 = vmatprep.subr.bf16.mxu0 0
        %1858 = vmatpush1.bf16.msra.mxu0 0
        %1859 = vmatprep.subr.bf16.mxu0 0
        %1860 = vmatpush1.bf16.msra.mxu0 0
        %1861 = vmatprep.subr.bf16.mxu0 0
        %1862 = vmatpush1.bf16.msra.mxu0 0
        %1863 = vmatprep.subr.bf16.mxu0 0
        %1864 = vmatpush1.bf16.msra.mxu0 0
        %1865 = vmatprep.subr.bf16.mxu0 0
        %1866 = vmatpush1.bf16.msra.mxu0 0
        %1867 = vmatprep.subr.bf16.mxu0 0
        %1868 = vmatpush1.bf16.msra.mxu0 0
        %1869 = vmatprep.subr.bf16.mxu0 0
        %1870 = vmatpush1.bf16.msra.mxu0 0
        %1871 = vmatprep.subr.bf16.mxu0 0
        %1872 = vmatpush1.bf16.msra.mxu0 0
        %1873 = vmatprep.subr.bf16.mxu0 0
        %1874 = vmatpush1.bf16.msra.mxu0 0
        %1875 = vmatprep.subr.bf16.mxu0 0
        %1876 = vmatpush1.bf16.msra.mxu0 0
        %1877 = vmatprep.subr.bf16.mxu0 0
        %1878 = vmatpush1.bf16.msra.mxu0 0
        %1879 = vmatprep.subr.bf16.mxu0 0
        %1880 = vmatpush1.bf16.msra.mxu0 0
        %1881 = vmatprep.mubr.bf16.mxu0 0
        %1882 = vmatmul.mubr.bf16.gmra.mrb[0].mxu0 %v1844
        %v1883 = vpop.f32.mrb[0].mxu0
        %v1884 = vadd.f32 0.0, %v1883
        %v1885 = vpop.f32.mrb[0].mxu0
        %v1886 = vpop.f32.mrb[0].mxu0
        %v1887 = vpop.f32.mrb[0].mxu0
        %1888 = vdwg.mxu0
        %1889 = vrot.lane.b32.xlu0 %v1779, 120
        %v1890 = vpop.permute.xlu0 %1889
        %1891 = vrot.lane.b32.xlu0 %v1779, 88
        %v1892 = vpop.permute.xlu0 %1891
        %v1894 = vsel %vm957, %v1890, 0
        %v1897 = vsel %vm957, %v1892, 0
        %1899 = vmatprep.subr.bf16.mxu0 0
        %1900 = vmatpush1.bf16.xpose.msra.mxu0 %v1897
        %1901 = vmatprep.subr.bf16.mxu0 0
        %1902 = vmatpush1.bf16.xpose.msra.mxu0 0
        %1903 = vmatprep.subr.bf16.mxu0 0
        %1904 = vmatpush1.bf16.xpose.msra.mxu0 0
        %1905 = vmatprep.subr.bf16.mxu0 0
        %1906 = vmatpush1.bf16.xpose.msra.mxu0 0
        %1907 = vmatprep.subr.bf16.mxu0 0
        %1908 = vmatpush1.bf16.xpose.msra.mxu0 0
        %1909 = vmatprep.subr.bf16.mxu0 0
        %1910 = vmatpush1.bf16.xpose.msra.mxu0 0
        %1911 = vmatprep.subr.bf16.mxu0 0
        %1912 = vmatpush1.bf16.xpose.msra.mxu0 0
        %1913 = vmatprep.subr.bf16.mxu0 0
        %1914 = vmatpush1.bf16.xpose.msra.mxu0 0
        %1915 = vmatprep.subr.bf16.mxu0 0
        %1916 = vmatpush1.bf16.xpose.msra.mxu0 0
        %1917 = vmatprep.subr.bf16.mxu0 0
        %1918 = vmatpush1.bf16.xpose.msra.mxu0 0
        %1919 = vmatprep.subr.bf16.mxu0 0
        %1920 = vmatpush1.bf16.xpose.msra.mxu0 0
        %1921 = vmatprep.subr.bf16.mxu0 0
        %1922 = vmatpush1.bf16.xpose.msra.mxu0 0
        %1923 = vmatprep.subr.bf16.mxu0 0
        %1924 = vmatpush1.bf16.xpose.msra.mxu0 0
        %1925 = vmatprep.subr.bf16.mxu0 0
        %1926 = vmatpush1.bf16.xpose.msra.mxu0 0
        %1927 = vmatprep.subr.bf16.mxu0 0
        %1928 = vmatpush1.bf16.xpose.msra.mxu0 0
        %1929 = vmatprep.subr.bf16.mxu0 0
        %1930 = vmatpush1.bf16.xpose.msra.mxu0 0
        %1931 = vmatprep.mubr.bf16.mxu0 0
        %1932 = vmatmul.mubr.bf16.gmra.mrb[0].mxu0 %v1894
        %v1933 = vpop.f32.mrb[0].mxu0
        %v1934 = vadd.f32 %v861, %v1933
        %v1935 = vpop.f32.mrb[0].mxu0
        %v1936 = vpop.f32.mrb[0].mxu0
        %v1937 = vpop.f32.mrb[0].mxu0
        %1938 = vdwg.mxu0
        %v1939 = vsel %vm957, %v1934, -inf
        %1940 = vmax.xlane.f32.xlu0 %v1939
        %v1941 = vpop.xlane.xlu0 %1940
        %v1942 = vsub.f32 %v1934, %v1941
        %v1943 = vmul.f32 %v1942, 1.442695
        %v1944 = vpow.pop %v1943
        %v1945 = vsel %vm957, %v1944, 0.0
        %1946 = vadd.xlane.f32.xlu0 %v1945
        %v1947 = vpop.xlane.xlu0 %1946
        %v1948 = vrcp.pop %v1947
        %v1949 = vmul.f32 %v1944, %v1948
        %v1950 = vpack.c.bf16 %v1949, %v1949
        %1951 = vrot.lane.b32.xlu0 %v1779, 56
        %v1952 = vpop.permute.xlu0 %1951
        %v1954 = vsel %vm957, %v1950, 0
        %v1957 = vsel %vm1021, %v1952, 0
        %1959 = vmatprep.subr.bf16.mxu0 0
        %1960 = vmatpush1.bf16.msra.mxu0 %v1957
        %1961 = vmatprep.subr.bf16.mxu0 0
        %1962 = vmatpush1.bf16.msra.mxu0 0
        %1963 = vmatprep.subr.bf16.mxu0 0
        %1964 = vmatpush1.bf16.msra.mxu0 0
        %1965 = vmatprep.subr.bf16.mxu0 0
        %1966 = vmatpush1.bf16.msra.mxu0 0
        %1967 = vmatprep.subr.bf16.mxu0 0
        %1968 = vmatpush1.bf16.msra.mxu0 0
        %1969 = vmatprep.subr.bf16.mxu0 0
        %1970 = vmatpush1.bf16.msra.mxu0 0
        %1971 = vmatprep.subr.bf16.mxu0 0
        %1972 = vmatpush1.bf16.msra.mxu0 0
        %1973 = vmatprep.subr.bf16.mxu0 0
        %1974 = vmatpush1.bf16.msra.mxu0 0
        %1975 = vmatprep.subr.bf16.mxu0 0
        %1976 = vmatpush1.bf16.msra.mxu0 0
        %1977 = vmatprep.subr.bf16.mxu0 0
        %1978 = vmatpush1.bf16.msra.mxu0 0
        %1979 = vmatprep.subr.bf16.mxu0 0
        %1980 = vmatpush1.bf16.msra.mxu0 0
        %1981 = vmatprep.subr.bf16.mxu0 0
        %1982 = vmatpush1.bf16.msra.mxu0 0
        %1983 = vmatprep.subr.bf16.mxu0 0
        %1984 = vmatpush1.bf16.msra.mxu0 0
        %1985 = vmatprep.subr.bf16.mxu0 0
        %1986 = vmatpush1.bf16.msra.mxu0 0
        %1987 = vmatprep.subr.bf16.mxu0 0
        %1988 = vmatpush1.bf16.msra.mxu0 0
        %1989 = vmatprep.subr.bf16.mxu0 0
        %1990 = vmatpush1.bf16.msra.mxu0 0
        %1991 = vmatprep.mubr.bf16.mxu0 0
        %1992 = vmatmul.mubr.bf16.gmra.mrb[0].mxu0 %v1954
        %v1993 = vpop.f32.mrb[0].mxu0
        %v1994 = vadd.f32 0.0, %v1993
        %v1995 = vpop.f32.mrb[0].mxu0
        %v1996 = vpop.f32.mrb[0].mxu0
        %v1997 = vpop.f32.mrb[0].mxu0
        %1998 = vdwg.mxu0
        %1999 = vrot.lane.b32.xlu0 %v1779, 112
        %v2000 = vpop.permute.xlu0 %1999
        %2001 = vrot.lane.b32.xlu0 %v1779, 80
        %v2002 = vpop.permute.xlu0 %2001
        %v2004 = vsel %vm957, %v2000, 0
        %v2007 = vsel %vm957, %v2002, 0
        %2009 = vmatprep.subr.bf16.mxu0 0
        %2010 = vmatpush1.bf16.xpose.msra.mxu0 %v2007
        %2011 = vmatprep.subr.bf16.mxu0 0
        %2012 = vmatpush1.bf16.xpose.msra.mxu0 0
        %2013 = vmatprep.subr.bf16.mxu0 0
        %2014 = vmatpush1.bf16.xpose.msra.mxu0 0
        %2015 = vmatprep.subr.bf16.mxu0 0
        %2016 = vmatpush1.bf16.xpose.msra.mxu0 0
        %2017 = vmatprep.subr.bf16.mxu0 0
        %2018 = vmatpush1.bf16.xpose.msra.mxu0 0
        %2019 = vmatprep.subr.bf16.mxu0 0
        %2020 = vmatpush1.bf16.xpose.msra.mxu0 0
        %2021 = vmatprep.subr.bf16.mxu0 0
        %2022 = vmatpush1.bf16.xpose.msra.mxu0 0
        %2023 = vmatprep.subr.bf16.mxu0 0
        %2024 = vmatpush1.bf16.xpose.msra.mxu0 0
        %2025 = vmatprep.subr.bf16.mxu0 0
        %2026 = vmatpush1.bf16.xpose.msra.mxu0 0
        %2027 = vmatprep.subr.bf16.mxu0 0
        %2028 = vmatpush1.bf16.xpose.msra.mxu0 0
        %2029 = vmatprep.subr.bf16.mxu0 0
        %2030 = vmatpush1.bf16.xpose.msra.mxu0 0
        %2031 = vmatprep.subr.bf16.mxu0 0
        %2032 = vmatpush1.bf16.xpose.msra.mxu0 0
        %2033 = vmatprep.subr.bf16.mxu0 0
        %2034 = vmatpush1.bf16.xpose.msra.mxu0 0
        %2035 = vmatprep.subr.bf16.mxu0 0
        %2036 = vmatpush1.bf16.xpose.msra.mxu0 0
        %2037 = vmatprep.subr.bf16.mxu0 0
        %2038 = vmatpush1.bf16.xpose.msra.mxu0 0
        %2039 = vmatprep.subr.bf16.mxu0 0
        %2040 = vmatpush1.bf16.xpose.msra.mxu0 0
        %2041 = vmatprep.mubr.bf16.mxu0 0
        %2042 = vmatmul.mubr.bf16.gmra.mrb[0].mxu0 %v2004
        %v2043 = vpop.f32.mrb[0].mxu0
        %v2044 = vadd.f32 %v861, %v2043
        %v2045 = vpop.f32.mrb[0].mxu0
        %v2046 = vpop.f32.mrb[0].mxu0
        %v2047 = vpop.f32.mrb[0].mxu0
        %2048 = vdwg.mxu0
        %v2049 = vsel %vm957, %v2044, -inf
        %2050 = vmax.xlane.f32.xlu0 %v2049
        %v2051 = vpop.xlane.xlu0 %2050
        %v2052 = vsub.f32 %v2044, %v2051
        %v2053 = vmul.f32 %v2052, 1.442695
        %v2054 = vpow.pop %v2053
        %v2055 = vsel %vm957, %v2054, 0.0
        %2056 = vadd.xlane.f32.xlu0 %v2055
        %v2057 = vpop.xlane.xlu0 %2056
        %v2058 = vrcp.pop %v2057
        %v2059 = vmul.f32 %v2054, %v2058
        %v2060 = vpack.c.bf16 %v2059, %v2059
        %2061 = vrot.lane.b32.xlu0 %v1779, 48
        %v2062 = vpop.permute.xlu0 %2061
        %v2064 = vsel %vm957, %v2060, 0
        %v2067 = vsel %vm1021, %v2062, 0
        %2069 = vmatprep.subr.bf16.mxu0 0
        %2070 = vmatpush1.bf16.msra.mxu0 %v2067
        %2071 = vmatprep.subr.bf16.mxu0 0
        %2072 = vmatpush1.bf16.msra.mxu0 0
        %2073 = vmatprep.subr.bf16.mxu0 0
        %2074 = vmatpush1.bf16.msra.mxu0 0
        %2075 = vmatprep.subr.bf16.mxu0 0
        %2076 = vmatpush1.bf16.msra.mxu0 0
        %2077 = vmatprep.subr.bf16.mxu0 0
        %2078 = vmatpush1.bf16.msra.mxu0 0
        %2079 = vmatprep.subr.bf16.mxu0 0
        %2080 = vmatpush1.bf16.msra.mxu0 0
        %2081 = vmatprep.subr.bf16.mxu0 0
        %2082 = vmatpush1.bf16.msra.mxu0 0
        %2083 = vmatprep.subr.bf16.mxu0 0
        %2084 = vmatpush1.bf16.msra.mxu0 0
        %2085 = vmatprep.subr.bf16.mxu0 0
        %2086 = vmatpush1.bf16.msra.mxu0 0
        %2087 = vmatprep.subr.bf16.mxu0 0
        %2088 = vmatpush1.bf16.msra.mxu0 0
        %2089 = vmatprep.subr.bf16.mxu0 0
        %2090 = vmatpush1.bf16.msra.mxu0 0
        %2091 = vmatprep.subr.bf16.mxu0 0
        %2092 = vmatpush1.bf16.msra.mxu0 0
        %2093 = vmatprep.subr.bf16.mxu0 0
        %2094 = vmatpush1.bf16.msra.mxu0 0
        %2095 = vmatprep.subr.bf16.mxu0 0
        %2096 = vmatpush1.bf16.msra.mxu0 0
        %2097 = vmatprep.subr.bf16.mxu0 0
        %2098 = vmatpush1.bf16.msra.mxu0 0
        %2099 = vmatprep.subr.bf16.mxu0 0
        %2100 = vmatpush1.bf16.msra.mxu0 0
        %2101 = vmatprep.mubr.bf16.mxu0 0
        %2102 = vmatmul.mubr.bf16.gmra.mrb[0].mxu0 %v2064
        %v2103 = vpop.f32.mrb[0].mxu0
        %v2104 = vadd.f32 0.0, %v2103
        %v2105 = vpop.f32.mrb[0].mxu0
        %v2106 = vpop.f32.mrb[0].mxu0
        %v2107 = vpop.f32.mrb[0].mxu0
        %2108 = vdwg.mxu0
        %2109 = vrot.lane.b32.xlu0 %v1779, 104
        %v2110 = vpop.permute.xlu0 %2109
        %2111 = vrot.lane.b32.xlu0 %v1779, 72
        %v2112 = vpop.permute.xlu0 %2111
        %v2114 = vsel %vm957, %v2110, 0
        %v2117 = vsel %vm957, %v2112, 0
        %2119 = vmatprep.subr.bf16.mxu0 0
        %2120 = vmatpush1.bf16.xpose.msra.mxu0 %v2117
        %2121 = vmatprep.subr.bf16.mxu0 0
        %2122 = vmatpush1.bf16.xpose.msra.mxu0 0
        %2123 = vmatprep.subr.bf16.mxu0 0
        %2124 = vmatpush1.bf16.xpose.msra.mxu0 0
        %2125 = vmatprep.subr.bf16.mxu0 0
        %2126 = vmatpush1.bf16.xpose.msra.mxu0 0
        %2127 = vmatprep.subr.bf16.mxu0 0
        %2128 = vmatpush1.bf16.xpose.msra.mxu0 0
        %2129 = vmatprep.subr.bf16.mxu0 0
        %2130 = vmatpush1.bf16.xpose.msra.mxu0 0
        %2131 = vmatprep.subr.bf16.mxu0 0
        %2132 = vmatpush1.bf16.xpose.msra.mxu0 0
        %2133 = vmatprep.subr.bf16.mxu0 0
        %2134 = vmatpush1.bf16.xpose.msra.mxu0 0
        %2135 = vmatprep.subr.bf16.mxu0 0
        %2136 = vmatpush1.bf16.xpose.msra.mxu0 0
        %2137 = vmatprep.subr.bf16.mxu0 0
        %2138 = vmatpush1.bf16.xpose.msra.mxu0 0
        %2139 = vmatprep.subr.bf16.mxu0 0
        %2140 = vmatpush1.bf16.xpose.msra.mxu0 0
        %2141 = vmatprep.subr.bf16.mxu0 0
        %2142 = vmatpush1.bf16.xpose.msra.mxu0 0
        %2143 = vmatprep.subr.bf16.mxu0 0
        %2144 = vmatpush1.bf16.xpose.msra.mxu0 0
        %2145 = vmatprep.subr.bf16.mxu0 0
        %2146 = vmatpush1.bf16.xpose.msra.mxu0 0
        %2147 = vmatprep.subr.bf16.mxu0 0
        %2148 = vmatpush1.bf16.xpose.msra.mxu0 0
        %2149 = vmatprep.subr.bf16.mxu0 0
        %2150 = vmatpush1.bf16.xpose.msra.mxu0 0
        %2151 = vmatprep.mubr.bf16.mxu0 0
        %2152 = vmatmul.mubr.bf16.gmra.mrb[0].mxu0 %v2114
        %v2153 = vpop.f32.mrb[0].mxu0
        %v2154 = vadd.f32 %v861, %v2153
        %v2155 = vpop.f32.mrb[0].mxu0
        %v2156 = vpop.f32.mrb[0].mxu0
        %v2157 = vpop.f32.mrb[0].mxu0
        %2158 = vdwg.mxu0
        %v2159 = vsel %vm957, %v2154, -inf
        %2160 = vmax.xlane.f32.xlu0 %v2159
        %v2161 = vpop.xlane.xlu0 %2160
        %v2162 = vsub.f32 %v2154, %v2161
        %v2163 = vmul.f32 %v2162, 1.442695
        %v2164 = vpow.pop %v2163
        %v2165 = vsel %vm957, %v2164, 0.0
        %2166 = vadd.xlane.f32.xlu0 %v2165
        %v2167 = vpop.xlane.xlu0 %2166
        %v2168 = vrcp.pop %v2167
        %v2169 = vmul.f32 %v2164, %v2168
        %v2170 = vpack.c.bf16 %v2169, %v2169
        %2171 = vrot.lane.b32.xlu0 %v1779, 40
        %v2172 = vpop.permute.xlu0 %2171
        %v2174 = vsel %vm957, %v2170, 0
        %v2177 = vsel %vm1021, %v2172, 0
        %2179 = vmatprep.subr.bf16.mxu0 0
        %2180 = vmatpush1.bf16.msra.mxu0 %v2177
        %2181 = vmatprep.subr.bf16.mxu0 0
        %2182 = vmatpush1.bf16.msra.mxu0 0
        %2183 = vmatprep.subr.bf16.mxu0 0
        %2184 = vmatpush1.bf16.msra.mxu0 0
        %2185 = vmatprep.subr.bf16.mxu0 0
        %2186 = vmatpush1.bf16.msra.mxu0 0
        %2187 = vmatprep.subr.bf16.mxu0 0
        %2188 = vmatpush1.bf16.msra.mxu0 0
        %2189 = vmatprep.subr.bf16.mxu0 0
        %2190 = vmatpush1.bf16.msra.mxu0 0
        %2191 = vmatprep.subr.bf16.mxu0 0
        %2192 = vmatpush1.bf16.msra.mxu0 0
        %2193 = vmatprep.subr.bf16.mxu0 0
        %2194 = vmatpush1.bf16.msra.mxu0 0
        %2195 = vmatprep.subr.bf16.mxu0 0
        %2196 = vmatpush1.bf16.msra.mxu0 0
        %2197 = vmatprep.subr.bf16.mxu0 0
        %2198 = vmatpush1.bf16.msra.mxu0 0
        %2199 = vmatprep.subr.bf16.mxu0 0
        %2200 = vmatpush1.bf16.msra.mxu0 0
        %2201 = vmatprep.subr.bf16.mxu0 0
        %2202 = vmatpush1.bf16.msra.mxu0 0
        %2203 = vmatprep.subr.bf16.mxu0 0
        %2204 = vmatpush1.bf16.msra.mxu0 0
        %2205 = vmatprep.subr.bf16.mxu0 0
        %2206 = vmatpush1.bf16.msra.mxu0 0
        %2207 = vmatprep.subr.bf16.mxu0 0
        %2208 = vmatpush1.bf16.msra.mxu0 0
        %2209 = vmatprep.subr.bf16.mxu0 0
        %2210 = vmatpush1.bf16.msra.mxu0 0
        %2211 = vmatprep.mubr.bf16.mxu0 0
        %2212 = vmatmul.mubr.bf16.gmra.mrb[0].mxu0 %v2174
        %v2213 = vpop.f32.mrb[0].mxu0
        %v2214 = vadd.f32 0.0, %v2213
        %v2215 = vpop.f32.mrb[0].mxu0
        %v2216 = vpop.f32.mrb[0].mxu0
        %v2217 = vpop.f32.mrb[0].mxu0
        %2218 = vdwg.mxu0
        %2220 = vrot.lane.b32.xlu0 %v1994, 8
        %v2221 = vpop.permute.xlu0 %2220
        %2224 = vrot.lane.b32.xlu0 %v2104, 16
        %v2225 = vpop.permute.xlu0 %2224
        %2228 = vrot.lane.b32.xlu0 %v2214, 24
        %v2229 = vpop.permute.xlu0 %2228
        %v2231 = vsel %vm957, %v1884, %v2221
        %v2232 = vsel %vm1408, %v2231, %v2225
        %v2233 = vsel %vm1410, %v2232, %v2229
        %v2234 = vpack.c.bf16 %v2233, %v2233
        %s2235 = scalar_lea.vmem %s4, 16
        %v2236 = vld [vmem:[%s2235] sm:$0xf]
        %v2237 = vld [vmem:[%s2235 + $0x4] sm:$0xf]
        %v2238 = vld [vmem:[%s2235 + $0x8] sm:$0xf]
        %v2239 = vld [vmem:[%s2235 + $0xc] sm:$0xf]
        %v2240 = vld [vmem:[%s1 + $0x11] sm:$0x1]
        %v2241 = vlaneseq
        %v2242 = vshrl.u32 %v2241, 7
        %v2243 = vsub.s32 0, %v2242
        %v2244 = vrot.slane %v2240, %v2243
        %v2249 = vunpack.c.l.b16 %v2236
        %v2250 = vunpack.c.l.b16 %v2237
        %v2251 = vunpack.c.l.b16 %v2238
        %v2252 = vunpack.c.l.b16 %v2239
        %v2253 = vpack.c.b16 %v2250, %v2249
        %v2254 = vpack.c.b16 %v2252, %v2251
        %v2258 = vsel %vm848, %v2234, 0
        %2260 = vmatprep.subr.bf16.mxu0 0
        %2261 = vmatpush1.bf16.msra.mxu0 %v2253
        %2262 = vmatprep.subr.bf16.mxu0 0
        %2263 = vmatpush1.bf16.msra.mxu0 %v2254
        %2264 = vmatprep.subr.bf16.mxu0 0
        %2265 = vmatpush1.bf16.msra.mxu0 0
        %2266 = vmatprep.subr.bf16.mxu0 0
        %2267 = vmatpush1.bf16.msra.mxu0 0
        %2268 = vmatprep.subr.bf16.mxu0 0
        %2269 = vmatpush1.bf16.msra.mxu0 0
        %2270 = vmatprep.subr.bf16.mxu0 0
        %2271 = vmatpush1.bf16.msra.mxu0 0
        %2272 = vmatprep.subr.bf16.mxu0 0
        %2273 = vmatpush1.bf16.msra.mxu0 0
        %2274 = vmatprep.subr.bf16.mxu0 0
        %2275 = vmatpush1.bf16.msra.mxu0 0
        %2276 = vmatprep.subr.bf16.mxu0 0
        %2277 = vmatpush1.bf16.msra.mxu0 0
        %2278 = vmatprep.subr.bf16.mxu0 0
        %2279 = vmatpush1.bf16.msra.mxu0 0
        %2280 = vmatprep.subr.bf16.mxu0 0
        %2281 = vmatpush1.bf16.msra.mxu0 0
        %2282 = vmatprep.subr.bf16.mxu0 0
        %2283 = vmatpush1.bf16.msra.mxu0 0
        %2284 = vmatprep.subr.bf16.mxu0 0
        %2285 = vmatpush1.bf16.msra.mxu0 0
        %2286 = vmatprep.subr.bf16.mxu0 0
        %2287 = vmatpush1.bf16.msra.mxu0 0
        %2288 = vmatprep.subr.bf16.mxu0 0
        %2289 = vmatpush1.bf16.msra.mxu0 0
        %2290 = vmatprep.subr.bf16.mxu0 0
        %2291 = vmatpush1.bf16.msra.mxu0 0
        %2292 = vmatprep.mubr.bf16.mxu0 0
        %2293 = vmatmul.mubr.bf16.gmra.mrb[0].mxu0 %v2258
        %v2294 = vpop.f32.mrb[0].mxu0
        %v2295 = vadd.f32 %v2244, %v2294
        %v2296 = vpop.f32.mrb[0].mxu0
        %v2297 = vpop.f32.mrb[0].mxu0
        %v2298 = vpop.f32.mrb[0].mxu0
        %2299 = vdwg.mxu0
        %v2300 = vadd.f32 %v1687, %v2295
        %v2301 = vld [vmem:[%s1 + $0x12] sm:$0x1]
        %v2302 = vld [vmem:[%s1 + $0x13] sm:$0x1]
        %v2303 = vsel %vm848, %v2300, 0.0
        %2304 = vadd.xlane.f32.xlu0 %v2303
        %v2305 = vpop.xlane.xlu0 %2304
        %v2306 = vmul.f32 %v2305, %v867
        %v2307 = vsub.f32 %v2300, %v2306
        %v2308 = vmul.f32 %v2307, %v2307
        %v2309 = vsel %vm848, %v2308, 0.0
        %2310 = vadd.xlane.f32.xlu0 %v2309
        %v2311 = vpop.xlane.xlu0 %2310
        %v2312 = vmul.f32 %v2311, %v867
        %v2313 = vadd.f32 %v2312, 1e-06
        %v2314 = vrsqrt.pop %v2313
        %v2315 = vmul.f32 %v2307, %v2314
        %v2316 = vlaneseq
        %v2317 = vshrl.u32 %v2316, 7
        %v2318 = vsub.s32 0, %v2317
        %v2319 = vrot.slane %v2301, %v2318
        %v2320 = vmul.f32 %v2315, %v2319
        %v2321 = vlaneseq
        %v2322 = vshrl.u32 %v2321, 7
        %v2323 = vsub.s32 0, %v2322
        %v2324 = vrot.slane %v2302, %v2323
        %v2325 = vadd.f32 %v2320, %v2324
        %v2326 = vpack.c.bf16 %v2325, %v2325
        %s2327 = scalar_lea.vmem %s5, 16
        %v2328 = vld [vmem:[%s2327] sm:$0xf]
        %v2329 = vld [vmem:[%s2327 + $0x4] sm:$0xf]
        %v2330 = vld [vmem:[%s2327 + $0x8] sm:$0xf]
        %v2331 = vld [vmem:[%s2327 + $0xc] sm:$0xf]
        %v2332 = vld [vmem:[%s1 + $0x14] sm:$0x1]
        %v2333 = vlaneseq
        %v2334 = vshrl.u32 %v2333, 7
        %v2335 = vsub.s32 0, %v2334
        %v2336 = vrot.slane %v2332, %v2335
        %v2341 = vunpack.c.l.b16 %v2328
        %v2342 = vunpack.c.l.b16 %v2329
        %v2343 = vunpack.c.l.b16 %v2330
        %v2344 = vunpack.c.l.b16 %v2331
        %v2345 = vpack.c.b16 %v2342, %v2341
        %v2346 = vpack.c.b16 %v2344, %v2343
        %v2350 = vsel %vm848, %v2326, 0
        %2352 = vmatprep.subr.bf16.mxu0 0
        %2353 = vmatpush1.bf16.msra.mxu0 %v2345
        %2354 = vmatprep.subr.bf16.mxu0 0
        %2355 = vmatpush1.bf16.msra.mxu0 %v2346
        %2356 = vmatprep.subr.bf16.mxu0 0
        %2357 = vmatpush1.bf16.msra.mxu0 0
        %2358 = vmatprep.subr.bf16.mxu0 0
        %2359 = vmatpush1.bf16.msra.mxu0 0
        %2360 = vmatprep.subr.bf16.mxu0 0
        %2361 = vmatpush1.bf16.msra.mxu0 0
        %2362 = vmatprep.subr.bf16.mxu0 0
        %2363 = vmatpush1.bf16.msra.mxu0 0
        %2364 = vmatprep.subr.bf16.mxu0 0
        %2365 = vmatpush1.bf16.msra.mxu0 0
        %2366 = vmatprep.subr.bf16.mxu0 0
        %2367 = vmatpush1.bf16.msra.mxu0 0
        %2368 = vmatprep.subr.bf16.mxu0 0
        %2369 = vmatpush1.bf16.msra.mxu0 0
        %2370 = vmatprep.subr.bf16.mxu0 0
        %2371 = vmatpush1.bf16.msra.mxu0 0
        %2372 = vmatprep.subr.bf16.mxu0 0
        %2373 = vmatpush1.bf16.msra.mxu0 0
        %2374 = vmatprep.subr.bf16.mxu0 0
        %2375 = vmatpush1.bf16.msra.mxu0 0
        %2376 = vmatprep.subr.bf16.mxu0 0
        %2377 = vmatpush1.bf16.msra.mxu0 0
        %2378 = vmatprep.subr.bf16.mxu0 0
        %2379 = vmatpush1.bf16.msra.mxu0 0
        %2380 = vmatprep.subr.bf16.mxu0 0
        %2381 = vmatpush1.bf16.msra.mxu0 0
        %2382 = vmatprep.subr.bf16.mxu0 0
        %2383 = vmatpush1.bf16.msra.mxu0 0
        %2384 = vmatprep.mubr.bf16.mxu0 0
        %2385 = vmatmul.mubr.bf16.gmra.mrb[0].mxu0 %v2350
        %v2386 = vpop.f32.mrb[0].mxu0
        %v2387 = vadd.f32 %v2336, %v2386
        %v2388 = vpop.f32.mrb[0].mxu0
        %v2389 = vpop.f32.mrb[0].mxu0
        %v2390 = vpop.f32.mrb[0].mxu0
        %2391 = vdwg.mxu0
        %v2392 = vmul.f32 %v2387, 0.5
        %v2393 = vmul.f32 %v2387, 0.044715
        %v2394 = vmul.f32 %v2393, %v2387
        %v2395 = vmul.f32 %v2394, %v2387
        %v2396 = vadd.f32 %v2387, %v2395
        %v2397 = vmul.f32 %v2396, 0.7978846
        %v2398 = vtanh.pop %v2397
        %v2399 = vadd.f32 %v2398, 1.0
        %v2400 = vmul.f32 %v2392, %v2399
        %v2401 = vpack.c.bf16 %v2400, %v2400
        %s2402 = scalar_lea.vmem %s6, 64
        %v2403 = vld [vmem:[%s2402] sm:$0xf]
        %v2404 = vld [vmem:[%s2402 + $0x4] sm:$0xf]
        %v2405 = vld [vmem:[%s2402 + $0x8] sm:$0xf]
        %v2406 = vld [vmem:[%s2402 + $0xc] sm:$0xf]
        %v2407 = vld [vmem:[%s2402 + $0x10] sm:$0xf]
        %v2408 = vld [vmem:[%s2402 + $0x14] sm:$0xf]
        %v2409 = vld [vmem:[%s2402 + $0x18] sm:$0xf]
        %v2410 = vld [vmem:[%s2402 + $0x1c] sm:$0xf]
        %v2411 = vld [vmem:[%s2402 + $0x20] sm:$0xf]
        %v2412 = vld [vmem:[%s2402 + $0x24] sm:$0xf]
        %v2413 = vld [vmem:[%s2402 + $0x28] sm:$0xf]
        %v2414 = vld [vmem:[%s2402 + $0x2c] sm:$0xf]
        %v2415 = vld [vmem:[%s2402 + $0x30] sm:$0xf]
        %v2416 = vld [vmem:[%s2402 + $0x34] sm:$0xf]
        %v2417 = vld [vmem:[%s2402 + $0x38] sm:$0xf]
        %v2418 = vld [vmem:[%s2402 + $0x3c] sm:$0xf]
        %v2419 = vld [vmem:[%s1 + $0x15] sm:$0x1]
        %v2420 = vlaneseq
        %v2421 = vshrl.u32 %v2420, 7
        %v2422 = vsub.s32 0, %v2421
        %v2423 = vrot.slane %v2419, %v2422
        %v2440 = vunpack.c.l.b16 %v2403
        %v2441 = vunpack.c.l.b16 %v2404
        %v2442 = vunpack.c.l.b16 %v2405
        %v2443 = vunpack.c.l.b16 %v2406
        %v2444 = vunpack.c.l.b16 %v2407
        %v2445 = vunpack.c.l.b16 %v2408
        %v2446 = vunpack.c.l.b16 %v2409
        %v2447 = vunpack.c.l.b16 %v2410
        %v2448 = vunpack.c.l.b16 %v2411
        %v2449 = vunpack.c.l.b16 %v2412
        %v2450 = vunpack.c.l.b16 %v2413
        %v2451 = vunpack.c.l.b16 %v2414
        %v2452 = vunpack.c.l.b16 %v2415
        %v2453 = vunpack.c.l.b16 %v2416
        %v2454 = vunpack.c.l.b16 %v2417
        %v2455 = vunpack.c.l.b16 %v2418
        %v2456 = vpack.c.b16 %v2441, %v2440
        %v2457 = vpack.c.b16 %v2443, %v2442
        %v2458 = vpack.c.b16 %v2445, %v2444
        %v2459 = vpack.c.b16 %v2447, %v2446
        %v2460 = vpack.c.b16 %v2449, %v2448
        %v2461 = vpack.c.b16 %v2451, %v2450
        %v2462 = vpack.c.b16 %v2453, %v2452
        %v2463 = vpack.c.b16 %v2455, %v2454
        %2472 = vmatprep.subr.bf16.mxu0 0
        %2473 = vmatpush1.bf16.msra.mxu0 %v2456
        %2474 = vmatprep.subr.bf16.mxu0 0
        %2475 = vmatpush1.bf16.msra.mxu0 %v2457
        %2476 = vmatprep.subr.bf16.mxu0 0
        %2477 = vmatpush1.bf16.msra.mxu0 %v2458
        %2478 = vmatprep.subr.bf16.mxu0 0
        %2479 = vmatpush1.bf16.msra.mxu0 %v2459
        %2480 = vmatprep.subr.bf16.mxu0 0
        %2481 = vmatpush1.bf16.msra.mxu0 %v2460
        %2482 = vmatprep.subr.bf16.mxu0 0
        %2483 = vmatpush1.bf16.msra.mxu0 %v2461
        %2484 = vmatprep.subr.bf16.mxu0 0
        %2485 = vmatpush1.bf16.msra.mxu0 %v2462
        %2486 = vmatprep.subr.bf16.mxu0 0
        %2487 = vmatpush1.bf16.msra.mxu0 %v2463
        %2488 = vmatprep.subr.bf16.mxu0 0
        %2489 = vmatpush1.bf16.msra.mxu0 0
        %2490 = vmatprep.subr.bf16.mxu0 0
        %2491 = vmatpush1.bf16.msra.mxu0 0
        %2492 = vmatprep.subr.bf16.mxu0 0
        %2493 = vmatpush1.bf16.msra.mxu0 0
        %2494 = vmatprep.subr.bf16.mxu0 0
        %2495 = vmatpush1.bf16.msra.mxu0 0
        %2496 = vmatprep.subr.bf16.mxu0 0
        %2497 = vmatpush1.bf16.msra.mxu0 0
        %2498 = vmatprep.subr.bf16.mxu0 0
        %2499 = vmatpush1.bf16.msra.mxu0 0
        %2500 = vmatprep.subr.bf16.mxu0 0
        %2501 = vmatpush1.bf16.msra.mxu0 0
        %2502 = vmatprep.subr.bf16.mxu0 0
        %2503 = vmatpush1.bf16.msra.mxu0 0
        %2504 = vmatprep.mubr.bf16.mxu0 0
        %2505 = vmatmul.mubr.bf16.gmra.mrb[0].mxu0 %v2401
        %v2506 = vpop.f32.mrb[0].mxu0
        %v2507 = vadd.f32 %v2423, %v2506
        %v2508 = vpop.f32.mrb[0].mxu0
        %v2509 = vpop.f32.mrb[0].mxu0
        %v2510 = vpop.f32.mrb[0].mxu0
        %2511 = vdwg.mxu0
        %v2512 = vadd.f32 %v2300, %v2507
        %v2513 = vld [vmem:[%s1 + $0x16] sm:$0x1]
        %v2514 = vld [vmem:[%s1 + $0x17] sm:$0x1]
        %v2515 = vsel %vm848, %v2512, 0.0
        %2516 = vadd.xlane.f32.xlu0 %v2515
        %v2517 = vpop.xlane.xlu0 %2516
        %v2518 = vmul.f32 %v2517, %v867
        %v2519 = vsub.f32 %v2512, %v2518
        %v2520 = vmul.f32 %v2519, %v2519
        %v2521 = vsel %vm848, %v2520, 0.0
        %2522 = vadd.xlane.f32.xlu0 %v2521
        %v2523 = vpop.xlane.xlu0 %2522
        %v2524 = vmul.f32 %v2523, %v867
        %v2525 = vadd.f32 %v2524, 1e-06
        %v2526 = vrsqrt.pop %v2525
        %v2527 = vmul.f32 %v2519, %v2526
        %v2528 = vlaneseq
        %v2529 = vshrl.u32 %v2528, 7
        %v2530 = vsub.s32 0, %v2529
        %v2531 = vrot.slane %v2513, %v2530
        %v2532 = vmul.f32 %v2527, %v2531
        %v2533 = vlaneseq
        %v2534 = vshrl.u32 %v2533, 7
        %v2535 = vsub.s32 0, %v2534
        %v2536 = vrot.slane %v2514, %v2535
        %v2537 = vadd.f32 %v2532, %v2536
        %v2538 = vpack.c.bf16 %v2537, %v2537
        %v2539 = vld [vmem:[%s7] sm:$0xf]
        %v2540 = vld [vmem:[%s7 + $0x4] sm:$0xf]
        %v2541 = vld [vmem:[%s7 + $0x8] sm:$0xf]
        %v2542 = vld [vmem:[%s7 + $0xc] sm:$0xf]
        %v2543 = vld [vmem:[%s1 + $0x18] sm:$0x1]
        %v2544 = vlaneseq
        %v2545 = vshrl.u32 %v2544, 7
        %v2546 = vsub.s32 0, %v2545
        %v2547 = vrot.slane %v2543, %v2546
        %v2552 = vunpack.c.l.b16 %v2539
        %v2553 = vunpack.c.l.b16 %v2540
        %v2554 = vunpack.c.l.b16 %v2541
        %v2555 = vunpack.c.l.b16 %v2542
        %v2556 = vpack.c.b16 %v2553, %v2552
        %v2557 = vpack.c.b16 %v2555, %v2554
        %v2561 = vsel %vm848, %v2538, 0
        %2563 = vmatprep.subr.bf16.mxu0 0
        %2564 = vmatpush1.bf16.msra.mxu0 %v2556
        %2565 = vmatprep.subr.bf16.mxu0 0
        %2566 = vmatpush1.bf16.msra.mxu0 %v2557
        %2567 = vmatprep.subr.bf16.mxu0 0
        %2568 = vmatpush1.bf16.msra.mxu0 0
        %2569 = vmatprep.subr.bf16.mxu0 0
        %2570 = vmatpush1.bf16.msra.mxu0 0
        %2571 = vmatprep.subr.bf16.mxu0 0
        %2572 = vmatpush1.bf16.msra.mxu0 0
        %2573 = vmatprep.subr.bf16.mxu0 0
        %2574 = vmatpush1.bf16.msra.mxu0 0
        %2575 = vmatprep.subr.bf16.mxu0 0
        %2576 = vmatpush1.bf16.msra.mxu0 0
        %2577 = vmatprep.subr.bf16.mxu0 0
        %2578 = vmatpush1.bf16.msra.mxu0 0
        %2579 = vmatprep.subr.bf16.mxu0 0
        %2580 = vmatpush1.bf16.msra.mxu0 0
        %2581 = vmatprep.subr.bf16.mxu0 0
        %2582 = vmatpush1.bf16.msra.mxu0 0
        %2583 = vmatprep.subr.bf16.mxu0 0
        %2584 = vmatpush1.bf16.msra.mxu0 0
        %2585 = vmatprep.subr.bf16.mxu0 0
        %2586 = vmatpush1.bf16.msra.mxu0 0
        %2587 = vmatprep.subr.bf16.mxu0 0
        %2588 = vmatpush1.bf16.msra.mxu0 0
        %2589 = vmatprep.subr.bf16.mxu0 0
        %2590 = vmatpush1.bf16.msra.mxu0 0
        %2591 = vmatprep.subr.bf16.mxu0 0
        %2592 = vmatpush1.bf16.msra.mxu0 0
        %2593 = vmatprep.subr.bf16.mxu0 0
        %2594 = vmatpush1.bf16.msra.mxu0 0
        %2595 = vmatprep.mubr.bf16.mxu0 0
        %2596 = vmatmul.mubr.bf16.gmra.mrb[0].mxu0 %v2561
        %v2597 = vpop.f32.mrb[0].mxu0
        %v2598 = vadd.f32 %v2547, %v2597
        %v2599 = vpop.f32.mrb[0].mxu0
        %v2600 = vpop.f32.mrb[0].mxu0
        %v2601 = vpop.f32.mrb[0].mxu0
        %2602 = vdwg.mxu0
        %2603 = vst [vmem:[%s297] sm:$0x1] %v2598
        %s2604 = sand.u32 %s203, 1
        %s2605 = scalar_lea.sflag [#allocation4], %s2604
        %s2606 = sand.u32 %s203, 1
        %s2607 = scalar_lea.vmem [#allocation3], %s2606
        // Predicated region
        $region53: #{food_classifier_forward.1} parent=51 // pred_check
          %p2608 = pneg %p213
        $region54: #{food_classifier_forward.1} parent=51 // pred_check_branch
          %2610 = sbr.rel (%p2608) target = $region56
        $region55: #{food_classifier_forward.1} parent=51 // pred_region
          %s2612 = ssub.s32 16, 16
          %2613 = vsyncadd %s2605, %s2612
          %s2614 = smul.addr %s22, 16
          %s2615 = scalar_lea.hbm %s8, %s2614
          %s2617 = sshll.u32 %s2607, 4
          %s2618 = int_to_ptr.vmem [resolvable:$true] %s2617
          %2620 = dma.vmem_to_hbm [thread:$0]  %s2618, 16, %s2615, %s2605
        $region56: #{food_classifier_forward.1} parent=51 // pred_fallthru
          _
      $region52: #{food_classifier_forward.1} parent=5 // pred_fallthru
        _
      %p2621 = scmp.le.s32.totalorder 2, %s17
      // Predicated region
      $region57: #{food_classifier_forward.1} parent=5 // pred_check
        %p2622 = pneg %p2621
      $region58: #{food_classifier_forward.1} parent=5 // pred_check_branch
        %2624 = sbr.rel (%p2622) target = $region60
      $region59: #{food_classifier_forward.1} parent=5 // pred_region
        %s2625 = ssub.s32 %s17, 2
        // Predicated region
        $region61: #{food_classifier_forward.1} parent=59 // pred_check
          %p2626 = pneg %p219
        $region62: #{food_classifier_forward.1} parent=59 // pred_check_branch
          %2628 = sbr.rel (%p2626) target = $region64
        $region63: #{food_classifier_forward.1} parent=59 // pred_region
          %s2629 = sand.u32 %s204, 1
          %s2630 = scalar_lea.sflag [#allocation4], %s2629
          %s2631 = sand.u32 %s204, 1
          %s2632 = scalar_lea.vmem [#allocation3], %s2631
          %2633 = dma.done %s2630, 16
        $region64: #{food_classifier_forward.1} parent=59 // pred_fallthru
          _
      $region60: #{food_classifier_forward.1} parent=5 // pred_fallthru
        _
    $region6: #{food_classifier_forward.1} parent=1 // loop_footer
      %s21 = sadd.s32 1, %s17
    $region7: #{food_classifier_forward.1} parent=1 // loop_footer_branch
      %16 = sbr.rel target = $region3
    $region8: #{food_classifier_forward.1} parent=1 // loop_exit
      _
    %2634 = vsyncpa [#allocation4], 1
    %s2635 = scalar_lea.sflag [#allocation4], 1
    %2636 = vsyncpa %s2635, 1

</llo_original>
